<compile_context>
chip_gen: v7x
topology: tpu7x:2x2x1
jax: 0.10.0
libtpu: 0.0.40
codegen_flags: <defaults>
</compile_context>

<pallas_src>
import functools

import jax
import jax.numpy as jnp
from jax.experimental import pallas as pl
from jax.experimental.pallas import tpu as pltpu


# ----------------------------------------------------------------------------
# Pallas kernel: full multi-head self-attention for one batch block.
# ----------------------------------------------------------------------------
def _mha_kernel(num_heads, mxu_dtype, approx_recip,
                x_ref, w_qkv_ref, b_qkv_ref, wo_ref, bo_ref,
                out_ref, o_scratch):
    bb, N, E = x_ref.shape
    D = E // num_heads

    # (bb, N, E) -> (bb*N, E): leading-dim merge (free); bf16 for the MXU.
    x2 = x_ref[...].reshape(bb * N, E).astype(mxu_dtype)

    # Fused Q/K/V projection: single full-width matmul, f32 accumulation,
    # f32 bias add (scaling already folded into the q columns of w_qkv/b_qkv).
    qkv = (jnp.dot(x2, w_qkv_ref[...], preferred_element_type=jnp.float32)
           + b_qkv_ref[...])                                  # (bb*N, 3E) f32

    # Per-head attention.  Static Python unroll: per-head intermediates
    # ((bb,N,N) f32) are consumed within the iteration, so live ranges stay
    # small at demo shape; revisit with a KV-tiled loop when N grows.
    for h in range(num_heads):
        q = qkv[:, h * D:(h + 1) * D].reshape(bb, N, D).astype(mxu_dtype)
        k = qkv[:, E + h * D:E + (h + 1) * D].reshape(bb, N, D).astype(mxu_dtype)
        v = qkv[:, 2 * E + h * D:2 * E + (h + 1) * D].reshape(bb, N, D).astype(mxu_dtype)

        # energy = q k^T (already scaled); softmax stats over keys in f32.
        energy = jnp.einsum('bnd,bmd->bnm', q, k,
                            preferred_element_type=jnp.float32)
        m = jnp.max(energy, axis=-1, keepdims=True)
        p = jnp.exp(energy - m)
        denom = jnp.sum(p, axis=-1, keepdims=True)
        # dropout(p=0) -> identity

        # Unnormalized att @ v, then per-row normalization on the (bb,N,D)
        # result (4x fewer VPU elements than scaling the (bb,N,N) att).
        o_un = jnp.einsum('bnm,bmd->bnd', p.astype(mxu_dtype), v,
                          preferred_element_type=jnp.float32)
        o_norm = o_un * pl.reciprocal(denom, approx=approx_recip)

        # Head merge: static masked store into the lane slice [h*D, (h+1)*D).
        o_scratch[:, :, h * D:(h + 1) * D] = o_norm

    # Single fused output projection over all heads.
    o2 = o_scratch[...].reshape(bb * N, E).astype(mxu_dtype)
    y = jnp.dot(o2, wo_ref[...], preferred_element_type=jnp.float32) + bo_ref[...]
    out_ref[...] = y.reshape(bb, N, E).astype(out_ref.dtype)


# ----------------------------------------------------------------------------
# Wrapper
# ----------------------------------------------------------------------------
def multi_head_attention(x, params, num_heads, *, batch_block=None,
                         mxu_dtype=jnp.bfloat16, approx_reciprocal=True):
    """x: (B, N, E) float32.  params: output of prepare_mha_params."""
    B, N, E = x.shape
    assert E % num_heads == 0
    w_qkv, b_qkv, wo, bo = params

    # Default: one grid step (problem fits easily in VMEM; avoids per-step
    # pipeline overhead).  On v7x pass batch_block=B//2 to feed both
    # TensorCores ("parallel" batch axis).
    bb = B if batch_block is None else batch_block
    grid = (pl.cdiv(B, bb),)

    x_spec = pl.BlockSpec((bb, N, E), lambda i: (i, 0, 0))
    wqkv_spec = pl.BlockSpec((E, 3 * E), lambda i: (0, 0))
    bqkv_spec = pl.BlockSpec((1, 3 * E), lambda i: (0, 0))
    wo_spec = pl.BlockSpec((E, E), lambda i: (0, 0))
    bo_spec = pl.BlockSpec((1, E), lambda i: (0, 0))

    kernel = functools.partial(_mha_kernel, num_heads, mxu_dtype,
                               approx_reciprocal)
    return pl.pallas_call(
        kernel,
        out_shape=jax.ShapeDtypeStruct((B, N, E), x.dtype),
        grid=grid,
        in_specs=[x_spec, wqkv_spec, bqkv_spec, wo_spec, bo_spec],
        out_specs=x_spec,
        scratch_shapes=[pltpu.VMEM((bb, N, E), jnp.float32)],
        compiler_params=pltpu.CompilerParams(
            dimension_semantics=("parallel",)),
    )(x, w_qkv, b_qkv, wo, bo)


# ----------------------------------------------------------------------------
# Parameter preparation (plain JAX, one-time layout transform).
# Inputs are nn.Linear-equivalent params stored as (in, out) / (out,):
#   y = x @ W + b.
# Weights are cast to bf16 (MXU operands); biases stay f32.  The D**-0.5
# scaling is folded into wq/bq BEFORE the bf16 cast.
# ----------------------------------------------------------------------------
def prepare_mha_params(wq, bq, wk, bk, wv, bv, wo, bo, num_heads,
                       weight_dtype=jnp.bfloat16):
    E = wq.shape[0]
    D = E // num_heads
    scaling = float(D) ** -0.5

    w_qkv = jnp.concatenate([wq * scaling, wk, wv], axis=1).astype(weight_dtype)
    b_qkv = jnp.concatenate([bq * scaling, bk, bv]).reshape(1, 3 * E)
    b_qkv = b_qkv.astype(jnp.float32)

    return (w_qkv, b_qkv,
            wo.astype(weight_dtype),
            bo.reshape(1, E).astype(jnp.float32))


# ----------------------------------------------------------------------------
# Pure-JAX reference (f32, exact), mirroring the PyTorch forward.
# ----------------------------------------------------------------------------
def mha_reference(x, wq, bq, wk, bk, wv, bv, wo, bo, num_heads):
    B, N, E = x.shape
    D = E // num_heads
    q = x @ wq + bq
    k = x @ wk + bk
    v = x @ wv + bv

    def split(t):
        return jnp.transpose(t.reshape(B, N, num_heads, D), (0, 2, 1, 3))

    qh, kh, vh = split(q), split(k), split(v)
    energy = jnp.einsum('bhnd,bhmd->bhnm', qh, kh)
    att = jax.nn.softmax(energy * (float(D) ** -0.5), axis=-1)
    o = jnp.einsum('bhnm,bhmd->bhnd', att, vh)
    o = jnp.transpose(o, (0, 2, 1, 3)).reshape(B, N, E)
    return o @ wo + bo


if __name__ == "__main__":
    key = jax.random.PRNGKey(0)
    # Small shapes consistent with the module (E divisible by num_heads).
    # E = 128 keeps every store lane-dense.
    B, N, E, H = 2, 64, 128, 8

    kx, *pk = jax.random.split(key, 10)
    x = jax.random.normal(kx, (B, N, E), jnp.float32)

    def w(k):
        return jax.random.normal(k, (E, E), jnp.float32) * 0.02

    def b(k):
        return jax.random.normal(k, (E,), jnp.float32) * 0.02

    raw = (w(pk[0]), b(pk[1]),    # queries
           w(pk[2]), b(pk[3]),    # keys
           w(pk[4]), b(pk[5]),    # values
           w(pk[6]), b(pk[7]))    # projection

    params = prepare_mha_params(*raw, num_heads=H)

    out = multi_head_attention(x, params, H)
    out = jax.block_until_ready(out)
    assert out.shape == (B, N, E)

    ref = mha_reference(x, *raw, num_heads=H)
    err = float(jnp.max(jnp.abs(out - ref)))
    # bf16 MXU operands + approximate reciprocal => small, bounded deviation.
    assert err < 5e-2, f"max abs err too large: {err}"

    print("KERNEL_OK")
</pallas_src>

<mosaic_0001>
module attributes {stable_mosaic.version = 11 : i64} {
  func.func @_mha_kernel(%arg0: i32, %arg1: memref<2x64x128xf32, #tpu.memory_space<vmem>>, %arg2: memref<128x384xbf16, #tpu.memory_space<vmem>>, %arg3: memref<1x384xf32, #tpu.memory_space<vmem>>, %arg4: memref<128x128xbf16, #tpu.memory_space<vmem>>, %arg5: memref<1x128xf32, #tpu.memory_space<vmem>>, %arg6: memref<2x64x128xf32, #tpu.memory_space<vmem>>, %arg7: memref<2x64x128xf32, #tpu.memory_space<vmem>>) attributes {dimension_semantics = [#tpu.dimension_semantics<parallel>], iteration_bounds = array<i64: 1>, scalar_prefetch = 0 : i64, scratch_operands = 1 : i64, tpu.core_type = #tpu.core_type<tc>, window_params = [{transform_indices = @transform_0, window_bounds = array<i64: 2, 64, 128>}, {pipeline_mode = #tpu.pipeline_mode<synchronous>, transform_indices = @transform_1, window_bounds = array<i64: 128, 384>}, {pipeline_mode = #tpu.pipeline_mode<synchronous>, transform_indices = @transform_2, window_bounds = array<i64: 1, 384>}, {pipeline_mode = #tpu.pipeline_mode<synchronous>, transform_indices = @transform_3, window_bounds = array<i64: 128, 128>}, {pipeline_mode = #tpu.pipeline_mode<synchronous>, transform_indices = @transform_4, window_bounds = array<i64: 1, 128>}, {transform_indices = @transform_5, window_bounds = array<i64: 2, 64, 128>}]} {
    %c0 = arith.constant 0 : index
    %c0_0 = arith.constant 0 : index
    %c0_1 = arith.constant 0 : index
    %0 = vector.load %arg1[%c0, %c0_0, %c0_1] : memref<2x64x128xf32, #tpu.memory_space<vmem>>, vector<2x64x128xf32>
    %1 = vector.shape_cast %0 : vector<2x64x128xf32> to vector<128x128xf32>
    %2 = arith.truncf %1 : vector<128x128xf32> to vector<128x128xbf16>
    %c0_2 = arith.constant 0 : index
    %c0_3 = arith.constant 0 : index
    %3 = vector.load %arg2[%c0_2, %c0_3] : memref<128x384xbf16, #tpu.memory_space<vmem>>, vector<128x384xbf16>
    %cst = arith.constant dense<0.000000e+00> : vector<128x384xf32>
    %4 = tpu.matmul %2, %3, %cst {dimension_numbers = #tpu.dot_dimension_numbers<[1], [0], [0], [1], [0, 0, 1, 1], [], []>} : vector<128x128xbf16>, vector<128x384xbf16>, vector<128x384xf32> -> vector<128x384xf32>
    %c0_4 = arith.constant 0 : index
    %c0_5 = arith.constant 0 : index
    %5 = vector.load %arg3[%c0_4, %c0_5] : memref<1x384xf32, #tpu.memory_space<vmem>>, vector<1x384xf32>
    %6 = vector.broadcast %5 : vector<1x384xf32> to vector<128x384xf32>
    %7 = arith.addf %4, %6 : vector<128x384xf32>
    %8 = vector.extract_strided_slice %7 {offsets = [0, 0], sizes = [128, 16], strides = [1, 1]} : vector<128x384xf32> to vector<128x16xf32>
    %9 = vector.shape_cast %8 : vector<128x16xf32> to vector<2x64x16xf32>
    %10 = arith.truncf %9 : vector<2x64x16xf32> to vector<2x64x16xbf16>
    %11 = vector.extract_strided_slice %7 {offsets = [0, 128], sizes = [128, 16], strides = [1, 1]} : vector<128x384xf32> to vector<128x16xf32>
    %12 = vector.shape_cast %11 : vector<128x16xf32> to vector<2x64x16xf32>
    %13 = arith.truncf %12 : vector<2x64x16xf32> to vector<2x64x16xbf16>
    %14 = vector.extract_strided_slice %7 {offsets = [0, 256], sizes = [128, 16], strides = [1, 1]} : vector<128x384xf32> to vector<128x16xf32>
    %15 = vector.shape_cast %14 : vector<128x16xf32> to vector<2x64x16xf32>
    %16 = arith.truncf %15 : vector<2x64x16xf32> to vector<2x64x16xbf16>
    "tpu.trace_start"() <{level = 10 : i32, message = "bnd,bmd->bnm"}> : () -> ()
    %cst_6 = arith.constant dense<0.000000e+00> : vector<2x64x64xf32>
    %17 = tpu.matmul %10, %13, %cst_6 {dimension_numbers = #tpu.dot_dimension_numbers<[2], [2], [1], [1], [0, 0, 0, 1, 1, 1], [0], [0]>} : vector<2x64x16xbf16>, vector<2x64x16xbf16>, vector<2x64x64xf32> -> vector<2x64x64xf32>
    "tpu.trace_stop"() : () -> ()
    %cst_7 = arith.constant dense<0xFF800000> : vector<2x64xf32>
    %18 = vector.multi_reduction <maximumf>, %17, %cst_7 [2] : vector<2x64x64xf32> to vector<2x64xf32>
    %19 = vector.shape_cast %18 : vector<2x64xf32> to vector<2x64x1xf32>
    %20 = vector.broadcast %19 : vector<2x64x1xf32> to vector<2x64x64xf32>
    %21 = arith.subf %17, %20 : vector<2x64x64xf32>
    %22 = math.exp %21 : vector<2x64x64xf32>
    %cst_8 = arith.constant dense<0.000000e+00> : vector<2x64xf32>
    %23 = vector.multi_reduction <add>, %22, %cst_8 [2] : vector<2x64x64xf32> to vector<2x64xf32>
    %24 = vector.shape_cast %23 : vector<2x64xf32> to vector<2x64x1xf32>
    %25 = arith.truncf %22 : vector<2x64x64xf32> to vector<2x64x64xbf16>
    "tpu.trace_start"() <{level = 10 : i32, message = "bnm,bmd->bnd"}> : () -> ()
    %cst_9 = arith.constant dense<0.000000e+00> : vector<2x64x16xf32>
    %26 = tpu.matmul %25, %16, %cst_9 {dimension_numbers = #tpu.dot_dimension_numbers<[2], [1], [1], [2], [0, 0, 0, 1, 1, 2], [0], [0]>} : vector<2x64x64xbf16>, vector<2x64x16xbf16>, vector<2x64x16xf32> -> vector<2x64x16xf32>
    "tpu.trace_stop"() : () -> ()
    %27 = tpu.reciprocal %24 {approx = true} : vector<2x64x1xf32> -> vector<2x64x1xf32>
    %28 = vector.broadcast %27 : vector<2x64x1xf32> to vector<2x64x16xf32>
    %29 = arith.mulf %26, %28 : vector<2x64x16xf32>
    %c0_10 = arith.constant 0 : index
    %c0_11 = arith.constant 0 : index
    %c0_12 = arith.constant 0 : index
    %30 = vector.load %arg7[%c0_10, %c0_11, %c0_12] : memref<2x64x128xf32, #tpu.memory_space<vmem>>, vector<2x64x16xf32>
    tpu.vector_store %arg7[%c0_10, %c0_11, %c0_12], %29 {strides = array<i32>} : memref<2x64x128xf32, #tpu.memory_space<vmem>>, vector<2x64x16xf32>,
    %31 = vector.extract_strided_slice %7 {offsets = [0, 16], sizes = [128, 16], strides = [1, 1]} : vector<128x384xf32> to vector<128x16xf32>
    %32 = vector.shape_cast %31 : vector<128x16xf32> to vector<2x64x16xf32>
    %33 = arith.truncf %32 : vector<2x64x16xf32> to vector<2x64x16xbf16>
    %34 = vector.extract_strided_slice %7 {offsets = [0, 144], sizes = [128, 16], strides = [1, 1]} : vector<128x384xf32> to vector<128x16xf32>
    %35 = vector.shape_cast %34 : vector<128x16xf32> to vector<2x64x16xf32>
    %36 = arith.truncf %35 : vector<2x64x16xf32> to vector<2x64x16xbf16>
    %37 = vector.extract_strided_slice %7 {offsets = [0, 272], sizes = [128, 16], strides = [1, 1]} : vector<128x384xf32> to vector<128x16xf32>
    %38 = vector.shape_cast %37 : vector<128x16xf32> to vector<2x64x16xf32>
    %39 = arith.truncf %38 : vector<2x64x16xf32> to vector<2x64x16xbf16>
    "tpu.trace_start"() <{level = 10 : i32, message = "bnd,bmd->bnm"}> : () -> ()
    %cst_13 = arith.constant dense<0.000000e+00> : vector<2x64x64xf32>
    %40 = tpu.matmul %33, %36, %cst_13 {dimension_numbers = #tpu.dot_dimension_numbers<[2], [2], [1], [1], [0, 0, 0, 1, 1, 1], [0], [0]>} : vector<2x64x16xbf16>, vector<2x64x16xbf16>, vector<2x64x64xf32> -> vector<2x64x64xf32>
    "tpu.trace_stop"() : () -> ()
    %cst_14 = arith.constant dense<0xFF800000> : vector<2x64xf32>
    %41 = vector.multi_reduction <maximumf>, %40, %cst_14 [2] : vector<2x64x64xf32> to vector<2x64xf32>
    %42 = vector.shape_cast %41 : vector<2x64xf32> to vector<2x64x1xf32>
    %43 = vector.broadcast %42 : vector<2x64x1xf32> to vector<2x64x64xf32>
    %44 = arith.subf %40, %43 : vector<2x64x64xf32>
    %45 = math.exp %44 : vector<2x64x64xf32>
    %cst_15 = arith.constant dense<0.000000e+00> : vector<2x64xf32>
    %46 = vector.multi_reduction <add>, %45, %cst_15 [2] : vector<2x64x64xf32> to vector<2x64xf32>
    %47 = vector.shape_cast %46 : vector<2x64xf32> to vector<2x64x1xf32>
    %48 = arith.truncf %45 : vector<2x64x64xf32> to vector<2x64x64xbf16>
    "tpu.trace_start"() <{level = 10 : i32, message = "bnm,bmd->bnd"}> : () -> ()
    %cst_16 = arith.constant dense<0.000000e+00> : vector<2x64x16xf32>
    %49 = tpu.matmul %48, %39, %cst_16 {dimension_numbers = #tpu.dot_dimension_numbers<[2], [1], [1], [2], [0, 0, 0, 1, 1, 2], [0], [0]>} : vector<2x64x64xbf16>, vector<2x64x16xbf16>, vector<2x64x16xf32> -> vector<2x64x16xf32>
    "tpu.trace_stop"() : () -> ()
    %50 = tpu.reciprocal %47 {approx = true} : vector<2x64x1xf32> -> vector<2x64x1xf32>
    %51 = vector.broadcast %50 : vector<2x64x1xf32> to vector<2x64x16xf32>
    %52 = arith.mulf %49, %51 : vector<2x64x16xf32>
    %c0_17 = arith.constant 0 : index
    %c0_18 = arith.constant 0 : index
    %c16 = arith.constant 16 : index
    %53 = vector.load %arg7[%c0_17, %c0_18, %c16] : memref<2x64x128xf32, #tpu.memory_space<vmem>>, vector<2x64x16xf32>
    tpu.vector_store %arg7[%c0_17, %c0_18, %c16], %52 {strides = array<i32>} : memref<2x64x128xf32, #tpu.memory_space<vmem>>, vector<2x64x16xf32>,
    %54 = vector.extract_strided_slice %7 {offsets = [0, 32], sizes = [128, 16], strides = [1, 1]} : vector<128x384xf32> to vector<128x16xf32>
    %55 = vector.shape_cast %54 : vector<128x16xf32> to vector<2x64x16xf32>
    %56 = arith.truncf %55 : vector<2x64x16xf32> to vector<2x64x16xbf16>
    %57 = vector.extract_strided_slice %7 {offsets = [0, 160], sizes = [128, 16], strides = [1, 1]} : vector<128x384xf32> to vector<128x16xf32>
    %58 = vector.shape_cast %57 : vector<128x16xf32> to vector<2x64x16xf32>
    %59 = arith.truncf %58 : vector<2x64x16xf32> to vector<2x64x16xbf16>
    %60 = vector.extract_strided_slice %7 {offsets = [0, 288], sizes = [128, 16], strides = [1, 1]} : vector<128x384xf32> to vector<128x16xf32>
    %61 = vector.shape_cast %60 : vector<128x16xf32> to vector<2x64x16xf32>
    %62 = arith.truncf %61 : vector<2x64x16xf32> to vector<2x64x16xbf16>
    "tpu.trace_start"() <{level = 10 : i32, message = "bnd,bmd->bnm"}> : () -> ()
    %cst_19 = arith.constant dense<0.000000e+00> : vector<2x64x64xf32>
    %63 = tpu.matmul %56, %59, %cst_19 {dimension_numbers = #tpu.dot_dimension_numbers<[2], [2], [1], [1], [0, 0, 0, 1, 1, 1], [0], [0]>} : vector<2x64x16xbf16>, vector<2x64x16xbf16>, vector<2x64x64xf32> -> vector<2x64x64xf32>
    "tpu.trace_stop"() : () -> ()
    %cst_20 = arith.constant dense<0xFF800000> : vector<2x64xf32>
    %64 = vector.multi_reduction <maximumf>, %63, %cst_20 [2] : vector<2x64x64xf32> to vector<2x64xf32>
    %65 = vector.shape_cast %64 : vector<2x64xf32> to vector<2x64x1xf32>
    %66 = vector.broadcast %65 : vector<2x64x1xf32> to vector<2x64x64xf32>
    %67 = arith.subf %63, %66 : vector<2x64x64xf32>
    %68 = math.exp %67 : vector<2x64x64xf32>
    %cst_21 = arith.constant dense<0.000000e+00> : vector<2x64xf32>
    %69 = vector.multi_reduction <add>, %68, %cst_21 [2] : vector<2x64x64xf32> to vector<2x64xf32>
    %70 = vector.shape_cast %69 : vector<2x64xf32> to vector<2x64x1xf32>
    %71 = arith.truncf %68 : vector<2x64x64xf32> to vector<2x64x64xbf16>
    "tpu.trace_start"() <{level = 10 : i32, message = "bnm,bmd->bnd"}> : () -> ()
    %cst_22 = arith.constant dense<0.000000e+00> : vector<2x64x16xf32>
    %72 = tpu.matmul %71, %62, %cst_22 {dimension_numbers = #tpu.dot_dimension_numbers<[2], [1], [1], [2], [0, 0, 0, 1, 1, 2], [0], [0]>} : vector<2x64x64xbf16>, vector<2x64x16xbf16>, vector<2x64x16xf32> -> vector<2x64x16xf32>
    "tpu.trace_stop"() : () -> ()
    %73 = tpu.reciprocal %70 {approx = true} : vector<2x64x1xf32> -> vector<2x64x1xf32>
    %74 = vector.broadcast %73 : vector<2x64x1xf32> to vector<2x64x16xf32>
    %75 = arith.mulf %72, %74 : vector<2x64x16xf32>
    %c0_23 = arith.constant 0 : index
    %c0_24 = arith.constant 0 : index
    %c32 = arith.constant 32 : index
    %76 = vector.load %arg7[%c0_23, %c0_24, %c32] : memref<2x64x128xf32, #tpu.memory_space<vmem>>, vector<2x64x16xf32>
    tpu.vector_store %arg7[%c0_23, %c0_24, %c32], %75 {strides = array<i32>} : memref<2x64x128xf32, #tpu.memory_space<vmem>>, vector<2x64x16xf32>,
    %77 = vector.extract_strided_slice %7 {offsets = [0, 48], sizes = [128, 16], strides = [1, 1]} : vector<128x384xf32> to vector<128x16xf32>
    %78 = vector.shape_cast %77 : vector<128x16xf32> to vector<2x64x16xf32>
    %79 = arith.truncf %78 : vector<2x64x16xf32> to vector<2x64x16xbf16>
    %80 = vector.extract_strided_slice %7 {offsets = [0, 176], sizes = [128, 16], strides = [1, 1]} : vector<128x384xf32> to vector<128x16xf32>
    %81 = vector.shape_cast %80 : vector<128x16xf32> to vector<2x64x16xf32>
    %82 = arith.truncf %81 : vector<2x64x16xf32> to vector<2x64x16xbf16>
    %83 = vector.extract_strided_slice %7 {offsets = [0, 304], sizes = [128, 16], strides = [1, 1]} : vector<128x384xf32> to vector<128x16xf32>
    %84 = vector.shape_cast %83 : vector<128x16xf32> to vector<2x64x16xf32>
    %85 = arith.truncf %84 : vector<2x64x16xf32> to vector<2x64x16xbf16>
    "tpu.trace_start"() <{level = 10 : i32, message = "bnd,bmd->bnm"}> : () -> ()
    %cst_25 = arith.constant dense<0.000000e+00> : vector<2x64x64xf32>
    %86 = tpu.matmul %79, %82, %cst_25 {dimension_numbers = #tpu.dot_dimension_numbers<[2], [2], [1], [1], [0, 0, 0, 1, 1, 1], [0], [0]>} : vector<2x64x16xbf16>, vector<2x64x16xbf16>, vector<2x64x64xf32> -> vector<2x64x64xf32>
    "tpu.trace_stop"() : () -> ()
    %cst_26 = arith.constant dense<0xFF800000> : vector<2x64xf32>
    %87 = vector.multi_reduction <maximumf>, %86, %cst_26 [2] : vector<2x64x64xf32> to vector<2x64xf32>
    %88 = vector.shape_cast %87 : vector<2x64xf32> to vector<2x64x1xf32>
    %89 = vector.broadcast %88 : vector<2x64x1xf32> to vector<2x64x64xf32>
    %90 = arith.subf %86, %89 : vector<2x64x64xf32>
    %91 = math.exp %90 : vector<2x64x64xf32>
    %cst_27 = arith.constant dense<0.000000e+00> : vector<2x64xf32>
    %92 = vector.multi_reduction <add>, %91, %cst_27 [2] : vector<2x64x64xf32> to vector<2x64xf32>
    %93 = vector.shape_cast %92 : vector<2x64xf32> to vector<2x64x1xf32>
    %94 = arith.truncf %91 : vector<2x64x64xf32> to vector<2x64x64xbf16>
    "tpu.trace_start"() <{level = 10 : i32, message = "bnm,bmd->bnd"}> : () -> ()
    %cst_28 = arith.constant dense<0.000000e+00> : vector<2x64x16xf32>
    %95 = tpu.matmul %94, %85, %cst_28 {dimension_numbers = #tpu.dot_dimension_numbers<[2], [1], [1], [2], [0, 0, 0, 1, 1, 2], [0], [0]>} : vector<2x64x64xbf16>, vector<2x64x16xbf16>, vector<2x64x16xf32> -> vector<2x64x16xf32>
    "tpu.trace_stop"() : () -> ()
    %96 = tpu.reciprocal %93 {approx = true} : vector<2x64x1xf32> -> vector<2x64x1xf32>
    %97 = vector.broadcast %96 : vector<2x64x1xf32> to vector<2x64x16xf32>
    %98 = arith.mulf %95, %97 : vector<2x64x16xf32>
    %c0_29 = arith.constant 0 : index
    %c0_30 = arith.constant 0 : index
    %c48 = arith.constant 48 : index
    %99 = vector.load %arg7[%c0_29, %c0_30, %c48] : memref<2x64x128xf32, #tpu.memory_space<vmem>>, vector<2x64x16xf32>
    tpu.vector_store %arg7[%c0_29, %c0_30, %c48], %98 {strides = array<i32>} : memref<2x64x128xf32, #tpu.memory_space<vmem>>, vector<2x64x16xf32>,
    %100 = vector.extract_strided_slice %7 {offsets = [0, 64], sizes = [128, 16], strides = [1, 1]} : vector<128x384xf32> to vector<128x16xf32>
    %101 = vector.shape_cast %100 : vector<128x16xf32> to vector<2x64x16xf32>
    %102 = arith.truncf %101 : vector<2x64x16xf32> to vector<2x64x16xbf16>
    %103 = vector.extract_strided_slice %7 {offsets = [0, 192], sizes = [128, 16], strides = [1, 1]} : vector<128x384xf32> to vector<128x16xf32>
    %104 = vector.shape_cast %103 : vector<128x16xf32> to vector<2x64x16xf32>
    %105 = arith.truncf %104 : vector<2x64x16xf32> to vector<2x64x16xbf16>
    %106 = vector.extract_strided_slice %7 {offsets = [0, 320], sizes = [128, 16], strides = [1, 1]} : vector<128x384xf32> to vector<128x16xf32>
    %107 = vector.shape_cast %106 : vector<128x16xf32> to vector<2x64x16xf32>
    %108 = arith.truncf %107 : vector<2x64x16xf32> to vector<2x64x16xbf16>
    "tpu.trace_start"() <{level = 10 : i32, message = "bnd,bmd->bnm"}> : () -> ()
    %cst_31 = arith.constant dense<0.000000e+00> : vector<2x64x64xf32>
    %109 = tpu.matmul %102, %105, %cst_31 {dimension_numbers = #tpu.dot_dimension_numbers<[2], [2], [1], [1], [0, 0, 0, 1, 1, 1], [0], [0]>} : vector<2x64x16xbf16>, vector<2x64x16xbf16>, vector<2x64x64xf32> -> vector<2x64x64xf32>
    "tpu.trace_stop"() : () -> ()
    %cst_32 = arith.constant dense<0xFF800000> : vector<2x64xf32>
    %110 = vector.multi_reduction <maximumf>, %109, %cst_32 [2] : vector<2x64x64xf32> to vector<2x64xf32>
    %111 = vector.shape_cast %110 : vector<2x64xf32> to vector<2x64x1xf32>
    %112 = vector.broadcast %111 : vector<2x64x1xf32> to vector<2x64x64xf32>
    %113 = arith.subf %109, %112 : vector<2x64x64xf32>
    %114 = math.exp %113 : vector<2x64x64xf32>
    %cst_33 = arith.constant dense<0.000000e+00> : vector<2x64xf32>
    %115 = vector.multi_reduction <add>, %114, %cst_33 [2] : vector<2x64x64xf32> to vector<2x64xf32>
    %116 = vector.shape_cast %115 : vector<2x64xf32> to vector<2x64x1xf32>
    %117 = arith.truncf %114 : vector<2x64x64xf32> to vector<2x64x64xbf16>
    "tpu.trace_start"() <{level = 10 : i32, message = "bnm,bmd->bnd"}> : () -> ()
    %cst_34 = arith.constant dense<0.000000e+00> : vector<2x64x16xf32>
    %118 = tpu.matmul %117, %108, %cst_34 {dimension_numbers = #tpu.dot_dimension_numbers<[2], [1], [1], [2], [0, 0, 0, 1, 1, 2], [0], [0]>} : vector<2x64x64xbf16>, vector<2x64x16xbf16>, vector<2x64x16xf32> -> vector<2x64x16xf32>
    "tpu.trace_stop"() : () -> ()
    %119 = tpu.reciprocal %116 {approx = true} : vector<2x64x1xf32> -> vector<2x64x1xf32>
    %120 = vector.broadcast %119 : vector<2x64x1xf32> to vector<2x64x16xf32>
    %121 = arith.mulf %118, %120 : vector<2x64x16xf32>
    %c0_35 = arith.constant 0 : index
    %c0_36 = arith.constant 0 : index
    %c64 = arith.constant 64 : index
    %122 = vector.load %arg7[%c0_35, %c0_36, %c64] : memref<2x64x128xf32, #tpu.memory_space<vmem>>, vector<2x64x16xf32>
    tpu.vector_store %arg7[%c0_35, %c0_36, %c64], %121 {strides = array<i32>} : memref<2x64x128xf32, #tpu.memory_space<vmem>>, vector<2x64x16xf32>,
    %123 = vector.extract_strided_slice %7 {offsets = [0, 80], sizes = [128, 16], strides = [1, 1]} : vector<128x384xf32> to vector<128x16xf32>
    %124 = vector.shape_cast %123 : vector<128x16xf32> to vector<2x64x16xf32>
    %125 = arith.truncf %124 : vector<2x64x16xf32> to vector<2x64x16xbf16>
    %126 = vector.extract_strided_slice %7 {offsets = [0, 208], sizes = [128, 16], strides = [1, 1]} : vector<128x384xf32> to vector<128x16xf32>
    %127 = vector.shape_cast %126 : vector<128x16xf32> to vector<2x64x16xf32>
    %128 = arith.truncf %127 : vector<2x64x16xf32> to vector<2x64x16xbf16>
    %129 = vector.extract_strided_slice %7 {offsets = [0, 336], sizes = [128, 16], strides = [1, 1]} : vector<128x384xf32> to vector<128x16xf32>
    %130 = vector.shape_cast %129 : vector<128x16xf32> to vector<2x64x16xf32>
    %131 = arith.truncf %130 : vector<2x64x16xf32> to vector<2x64x16xbf16>
    "tpu.trace_start"() <{level = 10 : i32, message = "bnd,bmd->bnm"}> : () -> ()
    %cst_37 = arith.constant dense<0.000000e+00> : vector<2x64x64xf32>
    %132 = tpu.matmul %125, %128, %cst_37 {dimension_numbers = #tpu.dot_dimension_numbers<[2], [2], [1], [1], [0, 0, 0, 1, 1, 1], [0], [0]>} : vector<2x64x16xbf16>, vector<2x64x16xbf16>, vector<2x64x64xf32> -> vector<2x64x64xf32>
    "tpu.trace_stop"() : () -> ()
    %cst_38 = arith.constant dense<0xFF800000> : vector<2x64xf32>
    %133 = vector.multi_reduction <maximumf>, %132, %cst_38 [2] : vector<2x64x64xf32> to vector<2x64xf32>
    %134 = vector.shape_cast %133 : vector<2x64xf32> to vector<2x64x1xf32>
    %135 = vector.broadcast %134 : vector<2x64x1xf32> to vector<2x64x64xf32>
    %136 = arith.subf %132, %135 : vector<2x64x64xf32>
    %137 = math.exp %136 : vector<2x64x64xf32>
    %cst_39 = arith.constant dense<0.000000e+00> : vector<2x64xf32>
    %138 = vector.multi_reduction <add>, %137, %cst_39 [2] : vector<2x64x64xf32> to vector<2x64xf32>
    %139 = vector.shape_cast %138 : vector<2x64xf32> to vector<2x64x1xf32>
    %140 = arith.truncf %137 : vector<2x64x64xf32> to vector<2x64x64xbf16>
    "tpu.trace_start"() <{level = 10 : i32, message = "bnm,bmd->bnd"}> : () -> ()
    %cst_40 = arith.constant dense<0.000000e+00> : vector<2x64x16xf32>
    %141 = tpu.matmul %140, %131, %cst_40 {dimension_numbers = #tpu.dot_dimension_numbers<[2], [1], [1], [2], [0, 0, 0, 1, 1, 2], [0], [0]>} : vector<2x64x64xbf16>, vector<2x64x16xbf16>, vector<2x64x16xf32> -> vector<2x64x16xf32>
    "tpu.trace_stop"() : () -> ()
    %142 = tpu.reciprocal %139 {approx = true} : vector<2x64x1xf32> -> vector<2x64x1xf32>
    %143 = vector.broadcast %142 : vector<2x64x1xf32> to vector<2x64x16xf32>
    %144 = arith.mulf %141, %143 : vector<2x64x16xf32>
    %c0_41 = arith.constant 0 : index
    %c0_42 = arith.constant 0 : index
    %c80 = arith.constant 80 : index
    %145 = vector.load %arg7[%c0_41, %c0_42, %c80] : memref<2x64x128xf32, #tpu.memory_space<vmem>>, vector<2x64x16xf32>
    tpu.vector_store %arg7[%c0_41, %c0_42, %c80], %144 {strides = array<i32>} : memref<2x64x128xf32, #tpu.memory_space<vmem>>, vector<2x64x16xf32>,
    %146 = vector.extract_strided_slice %7 {offsets = [0, 96], sizes = [128, 16], strides = [1, 1]} : vector<128x384xf32> to vector<128x16xf32>
    %147 = vector.shape_cast %146 : vector<128x16xf32> to vector<2x64x16xf32>
    %148 = arith.truncf %147 : vector<2x64x16xf32> to vector<2x64x16xbf16>
    %149 = vector.extract_strided_slice %7 {offsets = [0, 224], sizes = [128, 16], strides = [1, 1]} : vector<128x384xf32> to vector<128x16xf32>
    %150 = vector.shape_cast %149 : vector<128x16xf32> to vector<2x64x16xf32>
    %151 = arith.truncf %150 : vector<2x64x16xf32> to vector<2x64x16xbf16>
    %152 = vector.extract_strided_slice %7 {offsets = [0, 352], sizes = [128, 16], strides = [1, 1]} : vector<128x384xf32> to vector<128x16xf32>
    %153 = vector.shape_cast %152 : vector<128x16xf32> to vector<2x64x16xf32>
    %154 = arith.truncf %153 : vector<2x64x16xf32> to vector<2x64x16xbf16>
    "tpu.trace_start"() <{level = 10 : i32, message = "bnd,bmd->bnm"}> : () -> ()
    %cst_43 = arith.constant dense<0.000000e+00> : vector<2x64x64xf32>
    %155 = tpu.matmul %148, %151, %cst_43 {dimension_numbers = #tpu.dot_dimension_numbers<[2], [2], [1], [1], [0, 0, 0, 1, 1, 1], [0], [0]>} : vector<2x64x16xbf16>, vector<2x64x16xbf16>, vector<2x64x64xf32> -> vector<2x64x64xf32>
    "tpu.trace_stop"() : () -> ()
    %cst_44 = arith.constant dense<0xFF800000> : vector<2x64xf32>
    %156 = vector.multi_reduction <maximumf>, %155, %cst_44 [2] : vector<2x64x64xf32> to vector<2x64xf32>
    %157 = vector.shape_cast %156 : vector<2x64xf32> to vector<2x64x1xf32>
    %158 = vector.broadcast %157 : vector<2x64x1xf32> to vector<2x64x64xf32>
    %159 = arith.subf %155, %158 : vector<2x64x64xf32>
    %160 = math.exp %159 : vector<2x64x64xf32>
    %cst_45 = arith.constant dense<0.000000e+00> : vector<2x64xf32>
    %161 = vector.multi_reduction <add>, %160, %cst_45 [2] : vector<2x64x64xf32> to vector<2x64xf32>
    %162 = vector.shape_cast %161 : vector<2x64xf32> to vector<2x64x1xf32>
    %163 = arith.truncf %160 : vector<2x64x64xf32> to vector<2x64x64xbf16>
    "tpu.trace_start"() <{level = 10 : i32, message = "bnm,bmd->bnd"}> : () -> ()
    %cst_46 = arith.constant dense<0.000000e+00> : vector<2x64x16xf32>
    %164 = tpu.matmul %163, %154, %cst_46 {dimension_numbers = #tpu.dot_dimension_numbers<[2], [1], [1], [2], [0, 0, 0, 1, 1, 2], [0], [0]>} : vector<2x64x64xbf16>, vector<2x64x16xbf16>, vector<2x64x16xf32> -> vector<2x64x16xf32>
    "tpu.trace_stop"() : () -> ()
    %165 = tpu.reciprocal %162 {approx = true} : vector<2x64x1xf32> -> vector<2x64x1xf32>
    %166 = vector.broadcast %165 : vector<2x64x1xf32> to vector<2x64x16xf32>
    %167 = arith.mulf %164, %166 : vector<2x64x16xf32>
    %c0_47 = arith.constant 0 : index
    %c0_48 = arith.constant 0 : index
    %c96 = arith.constant 96 : index
    %168 = vector.load %arg7[%c0_47, %c0_48, %c96] : memref<2x64x128xf32, #tpu.memory_space<vmem>>, vector<2x64x16xf32>
    tpu.vector_store %arg7[%c0_47, %c0_48, %c96], %167 {strides = array<i32>} : memref<2x64x128xf32, #tpu.memory_space<vmem>>, vector<2x64x16xf32>,
    %169 = vector.extract_strided_slice %7 {offsets = [0, 112], sizes = [128, 16], strides = [1, 1]} : vector<128x384xf32> to vector<128x16xf32>
    %170 = vector.shape_cast %169 : vector<128x16xf32> to vector<2x64x16xf32>
    %171 = arith.truncf %170 : vector<2x64x16xf32> to vector<2x64x16xbf16>
    %172 = vector.extract_strided_slice %7 {offsets = [0, 240], sizes = [128, 16], strides = [1, 1]} : vector<128x384xf32> to vector<128x16xf32>
    %173 = vector.shape_cast %172 : vector<128x16xf32> to vector<2x64x16xf32>
    %174 = arith.truncf %173 : vector<2x64x16xf32> to vector<2x64x16xbf16>
    %175 = vector.extract_strided_slice %7 {offsets = [0, 368], sizes = [128, 16], strides = [1, 1]} : vector<128x384xf32> to vector<128x16xf32>
    %176 = vector.shape_cast %175 : vector<128x16xf32> to vector<2x64x16xf32>
    %177 = arith.truncf %176 : vector<2x64x16xf32> to vector<2x64x16xbf16>
    "tpu.trace_start"() <{level = 10 : i32, message = "bnd,bmd->bnm"}> : () -> ()
    %cst_49 = arith.constant dense<0.000000e+00> : vector<2x64x64xf32>
    %178 = tpu.matmul %171, %174, %cst_49 {dimension_numbers = #tpu.dot_dimension_numbers<[2], [2], [1], [1], [0, 0, 0, 1, 1, 1], [0], [0]>} : vector<2x64x16xbf16>, vector<2x64x16xbf16>, vector<2x64x64xf32> -> vector<2x64x64xf32>
    "tpu.trace_stop"() : () -> ()
    %cst_50 = arith.constant dense<0xFF800000> : vector<2x64xf32>
    %179 = vector.multi_reduction <maximumf>, %178, %cst_50 [2] : vector<2x64x64xf32> to vector<2x64xf32>
    %180 = vector.shape_cast %179 : vector<2x64xf32> to vector<2x64x1xf32>
    %181 = vector.broadcast %180 : vector<2x64x1xf32> to vector<2x64x64xf32>
    %182 = arith.subf %178, %181 : vector<2x64x64xf32>
    %183 = math.exp %182 : vector<2x64x64xf32>
    %cst_51 = arith.constant dense<0.000000e+00> : vector<2x64xf32>
    %184 = vector.multi_reduction <add>, %183, %cst_51 [2] : vector<2x64x64xf32> to vector<2x64xf32>
    %185 = vector.shape_cast %184 : vector<2x64xf32> to vector<2x64x1xf32>
    %186 = arith.truncf %183 : vector<2x64x64xf32> to vector<2x64x64xbf16>
    "tpu.trace_start"() <{level = 10 : i32, message = "bnm,bmd->bnd"}> : () -> ()
    %cst_52 = arith.constant dense<0.000000e+00> : vector<2x64x16xf32>
    %187 = tpu.matmul %186, %177, %cst_52 {dimension_numbers = #tpu.dot_dimension_numbers<[2], [1], [1], [2], [0, 0, 0, 1, 1, 2], [0], [0]>} : vector<2x64x64xbf16>, vector<2x64x16xbf16>, vector<2x64x16xf32> -> vector<2x64x16xf32>
    "tpu.trace_stop"() : () -> ()
    %188 = tpu.reciprocal %185 {approx = true} : vector<2x64x1xf32> -> vector<2x64x1xf32>
    %189 = vector.broadcast %188 : vector<2x64x1xf32> to vector<2x64x16xf32>
    %190 = arith.mulf %187, %189 : vector<2x64x16xf32>
    %c0_53 = arith.constant 0 : index
    %c0_54 = arith.constant 0 : index
    %c112 = arith.constant 112 : index
    %191 = vector.load %arg7[%c0_53, %c0_54, %c112] : memref<2x64x128xf32, #tpu.memory_space<vmem>>, vector<2x64x16xf32>
    tpu.vector_store %arg7[%c0_53, %c0_54, %c112], %190 {strides = array<i32>} : memref<2x64x128xf32, #tpu.memory_space<vmem>>, vector<2x64x16xf32>,
    %c0_55 = arith.constant 0 : index
    %c0_56 = arith.constant 0 : index
    %c0_57 = arith.constant 0 : index
    %192 = vector.load %arg7[%c0_55, %c0_56, %c0_57] : memref<2x64x128xf32, #tpu.memory_space<vmem>>, vector<2x64x128xf32>
    %193 = vector.shape_cast %192 : vector<2x64x128xf32> to vector<128x128xf32>
    %194 = arith.truncf %193 : vector<128x128xf32> to vector<128x128xbf16>
    %c0_58 = arith.constant 0 : index
    %c0_59 = arith.constant 0 : index
    %195 = vector.load %arg4[%c0_58, %c0_59] : memref<128x128xbf16, #tpu.memory_space<vmem>>, vector<128x128xbf16>
    %cst_60 = arith.constant dense<0.000000e+00> : vector<128x128xf32>
    %196 = tpu.matmul %194, %195, %cst_60 {dimension_numbers = #tpu.dot_dimension_numbers<[1], [0], [0], [1], [0, 0, 1, 1], [], []>} : vector<128x128xbf16>, vector<128x128xbf16>, vector<128x128xf32> -> vector<128x128xf32>
    %c0_61 = arith.constant 0 : index
    %c0_62 = arith.constant 0 : index
    %197 = vector.load %arg5[%c0_61, %c0_62] : memref<1x128xf32, #tpu.memory_space<vmem>>, vector<1x128xf32>
    %198 = vector.broadcast %197 : vector<1x128xf32> to vector<128x128xf32>
    %199 = arith.addf %196, %198 : vector<128x128xf32>
    %200 = vector.shape_cast %199 : vector<128x128xf32> to vector<2x64x128xf32>
    %c0_63 = arith.constant 0 : index
    %c0_64 = arith.constant 0 : index
    %c0_65 = arith.constant 0 : index
    %201 = vector.load %arg6[%c0_63, %c0_64, %c0_65] : memref<2x64x128xf32, #tpu.memory_space<vmem>>, vector<2x64x128xf32>
    tpu.vector_store %arg6[%c0_63, %c0_64, %c0_65], %200 {strides = array<i32>} : memref<2x64x128xf32, #tpu.memory_space<vmem>>, vector<2x64x128xf32>,
    return
  }
  func.func @transform_0(%arg0: i32) -> (i32, i32, i32) {
    %c0_i32 = arith.constant 0 : i32
    %c0_i32_0 = arith.constant 0 : i32
    %c0_i32_1 = arith.constant 0 : i32
    return %arg0, %c0_i32, %c0_i32_0 : i32, i32, i32
  }
  func.func @transform_1(%arg0: i32) -> (i32, i32) {
    %c0_i32 = arith.constant 0 : i32
    %c0_i32_0 = arith.constant 0 : i32
    %c0_i32_1 = arith.constant 0 : i32
    return %c0_i32, %c0_i32_0 : i32, i32
  }
  func.func @transform_2(%arg0: i32) -> (i32, i32) {
    %c0_i32 = arith.constant 0 : i32
    %c0_i32_0 = arith.constant 0 : i32
    %c0_i32_1 = arith.constant 0 : i32
    return %c0_i32, %c0_i32_0 : i32, i32
  }
  func.func @transform_3(%arg0: i32) -> (i32, i32) {
    %c0_i32 = arith.constant 0 : i32
    %c0_i32_0 = arith.constant 0 : i32
    %c0_i32_1 = arith.constant 0 : i32
    return %c0_i32, %c0_i32_0 : i32, i32
  }
  func.func @transform_4(%arg0: i32) -> (i32, i32) {
    %c0_i32 = arith.constant 0 : i32
    %c0_i32_0 = arith.constant 0 : i32
    %c0_i32_1 = arith.constant 0 : i32
    return %c0_i32, %c0_i32_0 : i32, i32
  }
  func.func @transform_5(%arg0: i32) -> (i32, i32, i32) {
    %c0_i32 = arith.constant 0 : i32
    %c0_i32_0 = arith.constant 0 : i32
    %c0_i32_1 = arith.constant 0 : i32
    return %arg0, %c0_i32, %c0_i32_0 : i32, i32, i32
  }
}

</mosaic_0001>

<llo_original>
// kernel: tpu_custom_call.1
$region0: #{tpu_custom_call.1}
  #allocation0 [shape = 'u32[]', space=smem, size = 0x4, offset = 0x4, fixed_abs, tag = 'smem constant byte address 0x4 - core index']
  #allocation1 [shape = 'u32[144,128]{1,0:T(1,128)}', space=vmem, size = 0x12000, scoped, tag = 'internal scratch']
  #allocation2 [shape = 'f32[2,64,128]{2,1,0:T(8,128)}', space=vmem, size = 0x10000, scoped, tag = 'scratch operand']
  %s0 = inlined_call_operand.hbm [shape: f32[2,64,128], index: 0, kind: input, shape index: {}]
  %s1 = inlined_call_operand.hbm [shape: bf16[128,384], index: 1, kind: input, shape index: {}]
  %s2 = inlined_call_operand.vmem [shape: f32[1,384], index: 2, kind: input, shape index: {}]
  %s3 = inlined_call_operand.hbm [shape: bf16[128,128], index: 3, kind: input, shape index: {}]
  %s4 = inlined_call_operand.vmem [shape: f32[1,128], index: 4, kind: input, shape index: {}]
  %s5 = inlined_call_operand.hbm [shape: f32[2,64,128], index: 5, kind: output, shape index: {}]
  %s6 = sld [smem:[#allocation0]]
  $region42: #{tpu_custom_call.1} parent=0
    _
  %s8 = ssub.s32 1, %s6
  %s9 = scalar_select 0, %s8, %s6
  $region1: #{tpu_custom_call.1} parent=0
    #allocation3 [shape = 'u8[65536]{0}', space=vmem, size = 0x10000, scoped, tag = 'input window, operand 0, single buffered']
    #allocation4 [shape = 's32[1]{0}', space=sflag, size = 0x4, scoped, tag = 'scoped memory for tpu_custom_call.1']
    #allocation5 [shape = 's32[1]{0}', space=sflag, size = 0x4, scoped, tag = 'scoped memory for tpu_custom_call.1']
    #allocation6 [shape = 'u8[98304]{0}', space=vmem, size = 0x18000, scoped, tag = 'input window, operand 1, single buffered']
    #allocation7 [shape = 's32[1]{0}', space=sflag, size = 0x4, scoped, tag = 'scoped memory for tpu_custom_call.1']
    #allocation8 [shape = 'u8[32768]{0}', space=vmem, size = 0x8000, scoped, tag = 'input window, operand 3, single buffered']
    #allocation9 [shape = 'u8[65536]{0}', space=vmem, size = 0x10000, scoped, tag = 'output window, operand 0, single buffered']
    %10 = vsyncpa [#allocation4], 0
    %11 = vsyncpa [#allocation7], 0
    %12 = vsyncpa [#allocation5], 0
    // Predicated region
    $region2: #{tpu_custom_call.1} parent=1 // pred_check
      _
    $region3: #{tpu_custom_call.1} parent=1 // pred_check_branch
      %14 = sbr.rel (0) target = $region5
    $region4: #{tpu_custom_call.1} parent=1 // pred_region
      %s16 = ssub.s32 2048, 2048
      %17 = vsyncadd [#allocation4], %s16
      %s18 = sshll.u32 [#allocation3], 4
      %s19 = int_to_ptr.vmem [resolvable:$true] %s18
      %24 = dma.hbm_to_vmem [thread:$0]  %s0, 2048, %s19, [#allocation4], 128, 128, 8
    $region5: #{tpu_custom_call.1} parent=1 // pred_fallthru
      _
    // Predicated region
    $region6: #{tpu_custom_call.1} parent=1 // pred_check
      _
    $region7: #{tpu_custom_call.1} parent=1 // pred_check_branch
      %26 = sbr.rel (0) target = $region9
    $region8: #{tpu_custom_call.1} parent=1 // pred_region
      %s28 = ssub.s32 3072, 3072
      %29 = vsyncadd [#allocation7], %s28
      %s30 = sshll.u32 [#allocation6], 4
      %s31 = int_to_ptr.vmem [resolvable:$true] %s30
      %36 = dma.hbm_to_vmem [thread:$0]  %s1, 3072, %s31, [#allocation7], 192, 192, 12
    $region9: #{tpu_custom_call.1} parent=1 // pred_fallthru
      _
    // Predicated region
    $region10: #{tpu_custom_call.1} parent=1 // pred_check
      _
    $region11: #{tpu_custom_call.1} parent=1 // pred_check_branch
      %38 = sbr.rel (0) target = $region13
    $region12: #{tpu_custom_call.1} parent=1 // pred_region
      _
    $region13: #{tpu_custom_call.1} parent=1 // pred_fallthru
      _
    // Predicated region
    $region14: #{tpu_custom_call.1} parent=1 // pred_check
      _
    $region15: #{tpu_custom_call.1} parent=1 // pred_check_branch
      %40 = sbr.rel (0) target = $region17
    $region16: #{tpu_custom_call.1} parent=1 // pred_region
      %s42 = ssub.s32 1024, 1024
      %43 = vsyncadd [#allocation7], %s42
      %s44 = sshll.u32 [#allocation8], 4
      %s45 = int_to_ptr.vmem [resolvable:$true] %s44
      %50 = dma.hbm_to_vmem [thread:$0]  %s3, 1024, %s45, [#allocation7], 64, 64, 4
    $region17: #{tpu_custom_call.1} parent=1 // pred_fallthru
      _
    // Predicated region
    $region18: #{tpu_custom_call.1} parent=1 // pred_check
      _
    $region19: #{tpu_custom_call.1} parent=1 // pred_check_branch
      %52 = sbr.rel (0) target = $region21
    $region20: #{tpu_custom_call.1} parent=1 // pred_region
      _
    $region21: #{tpu_custom_call.1} parent=1 // pred_fallthru
      _
    // Predicated region
    $region22: #{tpu_custom_call.1} parent=1 // pred_check
      _
    $region23: #{tpu_custom_call.1} parent=1 // pred_check_branch
      %54 = sbr.rel (0) target = $region25
    $region24: #{tpu_custom_call.1} parent=1 // pred_region
      %55 = dma.done [#allocation4], 2048
    $region25: #{tpu_custom_call.1} parent=1 // pred_fallthru
      _
    // Predicated region
    $region26: #{tpu_custom_call.1} parent=1 // pred_check
      _
    $region27: #{tpu_custom_call.1} parent=1 // pred_check_branch
      %57 = sbr.rel (0) target = $region29
    $region28: #{tpu_custom_call.1} parent=1 // pred_region
      %58 = dma.done [#allocation7], 3072
    $region29: #{tpu_custom_call.1} parent=1 // pred_fallthru
      _
    // Predicated region
    $region30: #{tpu_custom_call.1} parent=1 // pred_check
      _
    $region31: #{tpu_custom_call.1} parent=1 // pred_check_branch
      %60 = sbr.rel (0) target = $region33
    $region32: #{tpu_custom_call.1} parent=1 // pred_region
      %61 = dma.done [#allocation7], 1024
    $region33: #{tpu_custom_call.1} parent=1 // pred_fallthru
      _
    %v63 = vld [vmem:[#allocation3] sm:$0xff]
    %v64 = vld [vmem:[#allocation3 + $0x8] sm:$0xff]
    %v65 = vld [vmem:[#allocation3 + $0x10] sm:$0xff]
    %v66 = vld [vmem:[#allocation3 + $0x18] sm:$0xff]
    %v67 = vld [vmem:[#allocation3 + $0x20] sm:$0xff]
    %v68 = vld [vmem:[#allocation3 + $0x28] sm:$0xff]
    %v69 = vld [vmem:[#allocation3 + $0x30] sm:$0xff]
    %v70 = vld [vmem:[#allocation3 + $0x38] sm:$0xff]
    %v71 = vld [vmem:[#allocation3 + $0x40] sm:$0xff]
    %v72 = vld [vmem:[#allocation3 + $0x48] sm:$0xff]
    %v73 = vld [vmem:[#allocation3 + $0x50] sm:$0xff]
    %v74 = vld [vmem:[#allocation3 + $0x58] sm:$0xff]
    %v75 = vld [vmem:[#allocation3 + $0x60] sm:$0xff]
    %v76 = vld [vmem:[#allocation3 + $0x68] sm:$0xff]
    %v77 = vld [vmem:[#allocation3 + $0x70] sm:$0xff]
    %v78 = vld [vmem:[#allocation3 + $0x78] sm:$0xff]
    %v79 = vpack.c.bf16 %v64, %v63
    %v80 = vpack.c.bf16 %v66, %v65
    %v81 = vpack.c.bf16 %v68, %v67
    %v82 = vpack.c.bf16 %v70, %v69
    %v83 = vpack.c.bf16 %v72, %v71
    %v84 = vpack.c.bf16 %v74, %v73
    %v85 = vpack.c.bf16 %v76, %v75
    %v86 = vpack.c.bf16 %v78, %v77
    %v87 = vld [vmem:[#allocation6] sm:$0xff]
    %v88 = vld [vmem:[#allocation6 + $0x8] sm:$0xf]
    %v89 = vld [vmem:[#allocation6 + $0xc] sm:$0xff]
    %v90 = vld [vmem:[#allocation6 + $0x14] sm:$0xf]
    %v91 = vld [vmem:[#allocation6 + $0x18] sm:$0xff]
    %v92 = vld [vmem:[#allocation6 + $0x20] sm:$0xf]
    %v93 = vld [vmem:[#allocation6 + $0x24] sm:$0xff]
    %v94 = vld [vmem:[#allocation6 + $0x2c] sm:$0xf]
    %v95 = vld [vmem:[#allocation6 + $0x30] sm:$0xff]
    %v96 = vld [vmem:[#allocation6 + $0x38] sm:$0xf]
    %v97 = vld [vmem:[#allocation6 + $0x3c] sm:$0xff]
    %v98 = vld [vmem:[#allocation6 + $0x44] sm:$0xf]
    %v99 = vld [vmem:[#allocation6 + $0x48] sm:$0xff]
    %v100 = vld [vmem:[#allocation6 + $0x50] sm:$0xf]
    %v101 = vld [vmem:[#allocation6 + $0x54] sm:$0xff]
    %v102 = vld [vmem:[#allocation6 + $0x5c] sm:$0xf]
    %v103 = vld [vmem:[#allocation6 + $0x60] sm:$0xff]
    %v104 = vld [vmem:[#allocation6 + $0x68] sm:$0xf]
    %v105 = vld [vmem:[#allocation6 + $0x6c] sm:$0xff]
    %v106 = vld [vmem:[#allocation6 + $0x74] sm:$0xf]
    %v107 = vld [vmem:[#allocation6 + $0x78] sm:$0xff]
    %v108 = vld [vmem:[#allocation6 + $0x80] sm:$0xf]
    %v109 = vld [vmem:[#allocation6 + $0x84] sm:$0xff]
    %v110 = vld [vmem:[#allocation6 + $0x8c] sm:$0xf]
    %v111 = vld [vmem:[#allocation6 + $0x90] sm:$0xff]
    %v112 = vld [vmem:[#allocation6 + $0x98] sm:$0xf]
    %v113 = vld [vmem:[#allocation6 + $0x9c] sm:$0xff]
    %v114 = vld [vmem:[#allocation6 + $0xa4] sm:$0xf]
    %v115 = vld [vmem:[#allocation6 + $0xa8] sm:$0xff]
    %v116 = vld [vmem:[#allocation6 + $0xb0] sm:$0xf]
    %v117 = vld [vmem:[#allocation6 + $0xb4] sm:$0xff]
    %v118 = vld [vmem:[#allocation6 + $0xbc] sm:$0xf]
    %v119 = vld [vmem:[%s2] sm:$0x7]
    %v121 = vlaneseq
    %v122 = vshrl.u32 %v121, 7
    %v123 = vsub.s32 0, %v122
    %v124 = vrot.slane %v119, %v123
    %v125 = vlaneseq
    %v126 = vshrl.u32 %v125, 7
    %v127 = vsub.s32 1, %v126
    %v128 = vrot.slane %v119, %v127
    %v129 = vlaneseq
    %v130 = vshrl.u32 %v129, 7
    %v131 = vsub.s32 2, %v130
    %v132 = vrot.slane %v119, %v131
    %v168 = vunpack.c.l.b16 %v87
    %v169 = vunpack.c.h.b16 %v87
    %v170 = vunpack.c.l.b16 %v88
    %v171 = vunpack.c.l.b16 %v89
    %v172 = vunpack.c.h.b16 %v89
    %v173 = vunpack.c.l.b16 %v90
    %v174 = vunpack.c.l.b16 %v91
    %v175 = vunpack.c.h.b16 %v91
    %v176 = vunpack.c.l.b16 %v92
    %v177 = vunpack.c.l.b16 %v93
    %v178 = vunpack.c.h.b16 %v93
    %v179 = vunpack.c.l.b16 %v94
    %v180 = vunpack.c.l.b16 %v95
    %v181 = vunpack.c.h.b16 %v95
    %v182 = vunpack.c.l.b16 %v96
    %v183 = vunpack.c.l.b16 %v97
    %v184 = vunpack.c.h.b16 %v97
    %v185 = vunpack.c.l.b16 %v98
    %v186 = vunpack.c.l.b16 %v99
    %v187 = vunpack.c.h.b16 %v99
    %v188 = vunpack.c.l.b16 %v100
    %v189 = vunpack.c.l.b16 %v101
    %v190 = vunpack.c.h.b16 %v101
    %v191 = vunpack.c.l.b16 %v102
    %v192 = vunpack.c.l.b16 %v103
    %v193 = vunpack.c.h.b16 %v103
    %v194 = vunpack.c.l.b16 %v104
    %v195 = vunpack.c.l.b16 %v105
    %v196 = vunpack.c.h.b16 %v105
    %v197 = vunpack.c.l.b16 %v106
    %v198 = vunpack.c.l.b16 %v107
    %v199 = vunpack.c.h.b16 %v107
    %v200 = vunpack.c.l.b16 %v108
    %v201 = vunpack.c.l.b16 %v109
    %v202 = vunpack.c.h.b16 %v109
    %v203 = vunpack.c.l.b16 %v110
    %v204 = vunpack.c.l.b16 %v111
    %v205 = vunpack.c.h.b16 %v111
    %v206 = vunpack.c.l.b16 %v112
    %v207 = vunpack.c.l.b16 %v113
    %v208 = vunpack.c.h.b16 %v113
    %v209 = vunpack.c.l.b16 %v114
    %v210 = vunpack.c.l.b16 %v115
    %v211 = vunpack.c.h.b16 %v115
    %v212 = vunpack.c.l.b16 %v116
    %v213 = vunpack.c.l.b16 %v117
    %v214 = vunpack.c.h.b16 %v117
    %v215 = vunpack.c.l.b16 %v118
    %v216 = vpack.c.b16 %v171, %v168
    %v217 = vpack.c.b16 %v172, %v169
    %v218 = vpack.c.b16 %v173, %v170
    %v219 = vpack.c.b16 %v177, %v174
    %v220 = vpack.c.b16 %v178, %v175
    %v221 = vpack.c.b16 %v179, %v176
    %v222 = vpack.c.b16 %v183, %v180
    %v223 = vpack.c.b16 %v184, %v181
    %v224 = vpack.c.b16 %v185, %v182
    %v225 = vpack.c.b16 %v189, %v186
    %v226 = vpack.c.b16 %v190, %v187
    %v227 = vpack.c.b16 %v191, %v188
    %v228 = vpack.c.b16 %v195, %v192
    %v229 = vpack.c.b16 %v196, %v193
    %v230 = vpack.c.b16 %v197, %v194
    %v231 = vpack.c.b16 %v201, %v198
    %v232 = vpack.c.b16 %v202, %v199
    %v233 = vpack.c.b16 %v203, %v200
    %v234 = vpack.c.b16 %v207, %v204
    %v235 = vpack.c.b16 %v208, %v205
    %v236 = vpack.c.b16 %v209, %v206
    %v237 = vpack.c.b16 %v213, %v210
    %v238 = vpack.c.b16 %v214, %v211
    %v239 = vpack.c.b16 %v215, %v212
    %264 = vmatprep.subr.bf16.mxu0 %v217
    %265 = vmatpush1.bf16.msra.mxu0 %v216
    %266 = vmatprep.subr.bf16.mxu0 %v220
    %267 = vmatpush1.bf16.msra.mxu0 %v219
    %268 = vmatprep.subr.bf16.mxu0 %v223
    %269 = vmatpush1.bf16.msra.mxu0 %v222
    %270 = vmatprep.subr.bf16.mxu0 %v226
    %271 = vmatpush1.bf16.msra.mxu0 %v225
    %272 = vmatprep.subr.bf16.mxu0 %v229
    %273 = vmatpush1.bf16.msra.mxu0 %v228
    %274 = vmatprep.subr.bf16.mxu0 %v232
    %275 = vmatpush1.bf16.msra.mxu0 %v231
    %276 = vmatprep.subr.bf16.mxu0 %v235
    %277 = vmatpush1.bf16.msra.mxu0 %v234
    %278 = vmatprep.subr.bf16.mxu0 %v238
    %279 = vmatpush1.bf16.msra.mxu0 %v237
    %280 = vmatprep.subr.bf16.mxu0 0
    %281 = vmatpush1.bf16.msra.mxu0 0
    %282 = vmatprep.subr.bf16.mxu0 0
    %283 = vmatpush1.bf16.msra.mxu0 0
    %284 = vmatprep.subr.bf16.mxu0 0
    %285 = vmatpush1.bf16.msra.mxu0 0
    %286 = vmatprep.subr.bf16.mxu0 0
    %287 = vmatpush1.bf16.msra.mxu0 0
    %288 = vmatprep.subr.bf16.mxu0 0
    %289 = vmatpush1.bf16.msra.mxu0 0
    %290 = vmatprep.subr.bf16.mxu0 0
    %291 = vmatpush1.bf16.msra.mxu0 0
    %292 = vmatprep.subr.bf16.mxu0 0
    %293 = vmatpush1.bf16.msra.mxu0 0
    %294 = vmatprep.subr.bf16.mxu0 0
    %295 = vmatpush1.bf16.msra.mxu0 0
    %296 = vmatprep.mubr.bf16.mxu0 0
    %297 = vmatmul.mubr.bf16.gmra.mrb[0].mxu0 %v79
    %v298 = vpop.f32.mrb[0].mxu0
    %v299 = vadd.f32 %v124, %v298
    %v300 = vpop.f32.mrb[0].mxu0
    %v301 = vadd.f32 %v128, %v300
    %v302 = vpop.f32.mrb[0].mxu0
    %v303 = vadd.f32 %v124, %v302
    %v304 = vpop.f32.mrb[0].mxu0
    %v305 = vadd.f32 %v128, %v304
    %306 = vmatprep.mubr.bf16.mxu0 0
    %307 = vmatmul.mubr.bf16.gmra.mrb[0].mxu0 %v80
    %v308 = vpop.f32.mrb[0].mxu0
    %v309 = vadd.f32 %v124, %v308
    %v310 = vpop.f32.mrb[0].mxu0
    %v311 = vadd.f32 %v128, %v310
    %v312 = vpop.f32.mrb[0].mxu0
    %v313 = vadd.f32 %v124, %v312
    %v314 = vpop.f32.mrb[0].mxu0
    %v315 = vadd.f32 %v128, %v314
    %316 = vmatprep.mubr.bf16.mxu0 0
    %317 = vmatmul.mubr.bf16.gmra.mrb[0].mxu0 %v81
    %v318 = vpop.f32.mrb[0].mxu0
    %v319 = vadd.f32 %v124, %v318
    %v320 = vpop.f32.mrb[0].mxu0
    %v321 = vadd.f32 %v128, %v320
    %v322 = vpop.f32.mrb[0].mxu0
    %v323 = vadd.f32 %v124, %v322
    %v324 = vpop.f32.mrb[0].mxu0
    %v325 = vadd.f32 %v128, %v324
    %326 = vmatprep.mubr.bf16.mxu0 0
    %327 = vmatmul.mubr.bf16.gmra.mrb[0].mxu0 %v82
    %v328 = vpop.f32.mrb[0].mxu0
    %v329 = vadd.f32 %v124, %v328
    %v330 = vpop.f32.mrb[0].mxu0
    %v331 = vadd.f32 %v128, %v330
    %v332 = vpop.f32.mrb[0].mxu0
    %v333 = vadd.f32 %v124, %v332
    %v334 = vpop.f32.mrb[0].mxu0
    %v335 = vadd.f32 %v128, %v334
    %336 = vmatprep.mubr.bf16.mxu0 0
    %337 = vmatmul.mubr.bf16.gmra.mrb[0].mxu0 %v83
    %v338 = vpop.f32.mrb[0].mxu0
    %v339 = vadd.f32 %v124, %v338
    %v340 = vpop.f32.mrb[0].mxu0
    %v341 = vadd.f32 %v128, %v340
    %v342 = vpop.f32.mrb[0].mxu0
    %v343 = vadd.f32 %v124, %v342
    %v344 = vpop.f32.mrb[0].mxu0
    %v345 = vadd.f32 %v128, %v344
    %346 = vmatprep.mubr.bf16.mxu0 0
    %347 = vmatmul.mubr.bf16.gmra.mrb[0].mxu0 %v84
    %v348 = vpop.f32.mrb[0].mxu0
    %v349 = vadd.f32 %v124, %v348
    %v350 = vpop.f32.mrb[0].mxu0
    %v351 = vadd.f32 %v128, %v350
    %v352 = vpop.f32.mrb[0].mxu0
    %v353 = vadd.f32 %v124, %v352
    %v354 = vpop.f32.mrb[0].mxu0
    %v355 = vadd.f32 %v128, %v354
    %356 = vmatprep.mubr.bf16.mxu0 0
    %357 = vmatmul.mubr.bf16.gmra.mrb[0].mxu0 %v85
    %v358 = vpop.f32.mrb[0].mxu0
    %v359 = vadd.f32 %v124, %v358
    %v360 = vpop.f32.mrb[0].mxu0
    %v361 = vadd.f32 %v128, %v360
    %v362 = vpop.f32.mrb[0].mxu0
    %v363 = vadd.f32 %v124, %v362
    %v364 = vpop.f32.mrb[0].mxu0
    %v365 = vadd.f32 %v128, %v364
    %366 = vmatprep.mubr.bf16.mxu0 0
    %367 = vmatmul.mubr.bf16.gmra.mrb[0].mxu0 %v86
    %v368 = vpop.f32.mrb[0].mxu0
    %v369 = vadd.f32 %v124, %v368
    %v370 = vpop.f32.mrb[0].mxu0
    %v371 = vadd.f32 %v128, %v370
    %v372 = vpop.f32.mrb[0].mxu0
    %v373 = vadd.f32 %v124, %v372
    %v374 = vpop.f32.mrb[0].mxu0
    %v375 = vadd.f32 %v128, %v374
    %376 = vdwg.mxu0
    %377 = vmatprep.subr.bf16.mxu0 0
    %378 = vmatpush1.bf16.msra.mxu0 %v218
    %379 = vmatprep.subr.bf16.mxu0 0
    %380 = vmatpush1.bf16.msra.mxu0 %v221
    %381 = vmatprep.subr.bf16.mxu0 0
    %382 = vmatpush1.bf16.msra.mxu0 %v224
    %383 = vmatprep.subr.bf16.mxu0 0
    %384 = vmatpush1.bf16.msra.mxu0 %v227
    %385 = vmatprep.subr.bf16.mxu0 0
    %386 = vmatpush1.bf16.msra.mxu0 %v230
    %387 = vmatprep.subr.bf16.mxu0 0
    %388 = vmatpush1.bf16.msra.mxu0 %v233
    %389 = vmatprep.subr.bf16.mxu0 0
    %390 = vmatpush1.bf16.msra.mxu0 %v236
    %391 = vmatprep.subr.bf16.mxu0 0
    %392 = vmatpush1.bf16.msra.mxu0 %v239
    %393 = vmatprep.subr.bf16.mxu0 0
    %394 = vmatpush1.bf16.msra.mxu0 0
    %395 = vmatprep.subr.bf16.mxu0 0
    %396 = vmatpush1.bf16.msra.mxu0 0
    %397 = vmatprep.subr.bf16.mxu0 0
    %398 = vmatpush1.bf16.msra.mxu0 0
    %399 = vmatprep.subr.bf16.mxu0 0
    %400 = vmatpush1.bf16.msra.mxu0 0
    %401 = vmatprep.subr.bf16.mxu0 0
    %402 = vmatpush1.bf16.msra.mxu0 0
    %403 = vmatprep.subr.bf16.mxu0 0
    %404 = vmatpush1.bf16.msra.mxu0 0
    %405 = vmatprep.subr.bf16.mxu0 0
    %406 = vmatpush1.bf16.msra.mxu0 0
    %407 = vmatprep.subr.bf16.mxu0 0
    %408 = vmatpush1.bf16.msra.mxu0 0
    %409 = vmatprep.mubr.bf16.mxu0 0
    %410 = vmatmul.mubr.bf16.gmra.mrb[0].mxu0 %v79
    %v411 = vpop.f32.mrb[0].mxu0
    %v412 = vadd.f32 %v132, %v411
    %v413 = vpop.f32.mrb[0].mxu0
    %v414 = vpop.f32.mrb[0].mxu0
    %v415 = vadd.f32 %v132, %v414
    %v416 = vpop.f32.mrb[0].mxu0
    %417 = vmatprep.mubr.bf16.mxu0 0
    %418 = vmatmul.mubr.bf16.gmra.mrb[0].mxu0 %v80
    %v419 = vpop.f32.mrb[0].mxu0
    %v420 = vadd.f32 %v132, %v419
    %v421 = vpop.f32.mrb[0].mxu0
    %v422 = vpop.f32.mrb[0].mxu0
    %v423 = vadd.f32 %v132, %v422
    %v424 = vpop.f32.mrb[0].mxu0
    %425 = vmatprep.mubr.bf16.mxu0 0
    %426 = vmatmul.mubr.bf16.gmra.mrb[0].mxu0 %v81
    %v427 = vpop.f32.mrb[0].mxu0
    %v428 = vadd.f32 %v132, %v427
    %v429 = vpop.f32.mrb[0].mxu0
    %v430 = vpop.f32.mrb[0].mxu0
    %v431 = vadd.f32 %v132, %v430
    %v432 = vpop.f32.mrb[0].mxu0
    %433 = vmatprep.mubr.bf16.mxu0 0
    %434 = vmatmul.mubr.bf16.gmra.mrb[0].mxu0 %v82
    %v435 = vpop.f32.mrb[0].mxu0
    %v436 = vadd.f32 %v132, %v435
    %v437 = vpop.f32.mrb[0].mxu0
    %v438 = vpop.f32.mrb[0].mxu0
    %v439 = vadd.f32 %v132, %v438
    %v440 = vpop.f32.mrb[0].mxu0
    %441 = vmatprep.mubr.bf16.mxu0 0
    %442 = vmatmul.mubr.bf16.gmra.mrb[0].mxu0 %v83
    %v443 = vpop.f32.mrb[0].mxu0
    %v444 = vadd.f32 %v132, %v443
    %v445 = vpop.f32.mrb[0].mxu0
    %v446 = vpop.f32.mrb[0].mxu0
    %v447 = vadd.f32 %v132, %v446
    %v448 = vpop.f32.mrb[0].mxu0
    %449 = vmatprep.mubr.bf16.mxu0 0
    %450 = vmatmul.mubr.bf16.gmra.mrb[0].mxu0 %v84
    %v451 = vpop.f32.mrb[0].mxu0
    %v452 = vadd.f32 %v132, %v451
    %v453 = vpop.f32.mrb[0].mxu0
    %v454 = vpop.f32.mrb[0].mxu0
    %v455 = vadd.f32 %v132, %v454
    %v456 = vpop.f32.mrb[0].mxu0
    %457 = vmatprep.mubr.bf16.mxu0 0
    %458 = vmatmul.mubr.bf16.gmra.mrb[0].mxu0 %v85
    %v459 = vpop.f32.mrb[0].mxu0
    %v460 = vadd.f32 %v132, %v459
    %v461 = vpop.f32.mrb[0].mxu0
    %v462 = vpop.f32.mrb[0].mxu0
    %v463 = vadd.f32 %v132, %v462
    %v464 = vpop.f32.mrb[0].mxu0
    %465 = vmatprep.mubr.bf16.mxu0 0
    %466 = vmatmul.mubr.bf16.gmra.mrb[0].mxu0 %v86
    %v467 = vpop.f32.mrb[0].mxu0
    %v468 = vadd.f32 %v132, %v467
    %v469 = vpop.f32.mrb[0].mxu0
    %v470 = vpop.f32.mrb[0].mxu0
    %v471 = vadd.f32 %v132, %v470
    %v472 = vpop.f32.mrb[0].mxu0
    %473 = vdwg.mxu0
    %v474 = vpack.c.bf16 %v303, %v299
    %v475 = vpack.c.bf16 %v313, %v309
    %v476 = vpack.c.bf16 %v323, %v319
    %v477 = vpack.c.bf16 %v333, %v329
    %v478 = vpack.c.bf16 %v343, %v339
    %v479 = vpack.c.bf16 %v353, %v349
    %v480 = vpack.c.bf16 %v363, %v359
    %v481 = vpack.c.bf16 %v373, %v369
    %v482 = vpack.c.bf16 %v305, %v301
    %v483 = vpack.c.bf16 %v315, %v311
    %v484 = vpack.c.bf16 %v325, %v321
    %v485 = vpack.c.bf16 %v335, %v331
    %v486 = vpack.c.bf16 %v345, %v341
    %v487 = vpack.c.bf16 %v355, %v351
    %v488 = vpack.c.bf16 %v365, %v361
    %v489 = vpack.c.bf16 %v375, %v371
    %v490 = vpack.c.bf16 %v415, %v412
    %v491 = vpack.c.bf16 %v423, %v420
    %v492 = vpack.c.bf16 %v431, %v428
    %v493 = vpack.c.bf16 %v439, %v436
    %v494 = vpack.c.bf16 %v447, %v444
    %v495 = vpack.c.bf16 %v455, %v452
    %v496 = vpack.c.bf16 %v463, %v460
    %v497 = vpack.c.bf16 %v471, %v468
    %vm498 = vcmask 130048
    %v500 = vsel %vm498, %v474, 0
    %v503 = vsel %vm498, %v475, 0
    %v506 = vsel %vm498, %v476, 0
    %v509 = vsel %vm498, %v477, 0
    %v512 = vsel %vm498, %v482, 0
    %v515 = vsel %vm498, %v483, 0
    %v518 = vsel %vm498, %v484, 0
    %v521 = vsel %vm498, %v485, 0
    %523 = vmatprep.subr.bf16.mxu0 0
    %524 = vmatpush1.bf16.xpose.msra.mxu0 %v512
    %525 = vmatprep.subr.bf16.mxu0 0
    %526 = vmatpush1.bf16.xpose.msra.mxu0 %v515
    %527 = vmatprep.subr.bf16.mxu0 0
    %528 = vmatpush1.bf16.xpose.msra.mxu0 %v518
    %529 = vmatprep.subr.bf16.mxu0 0
    %530 = vmatpush1.bf16.xpose.msra.mxu0 %v521
    %531 = vmatprep.subr.bf16.mxu0 0
    %532 = vmatpush1.bf16.xpose.msra.mxu0 0
    %533 = vmatprep.subr.bf16.mxu0 0
    %534 = vmatpush1.bf16.xpose.msra.mxu0 0
    %535 = vmatprep.subr.bf16.mxu0 0
    %536 = vmatpush1.bf16.xpose.msra.mxu0 0
    %537 = vmatprep.subr.bf16.mxu0 0
    %538 = vmatpush1.bf16.xpose.msra.mxu0 0
    %539 = vmatprep.subr.bf16.mxu0 0
    %540 = vmatpush1.bf16.xpose.msra.mxu0 0
    %541 = vmatprep.subr.bf16.mxu0 0
    %542 = vmatpush1.bf16.xpose.msra.mxu0 0
    %543 = vmatprep.subr.bf16.mxu0 0
    %544 = vmatpush1.bf16.xpose.msra.mxu0 0
    %545 = vmatprep.subr.bf16.mxu0 0
    %546 = vmatpush1.bf16.xpose.msra.mxu0 0
    %547 = vmatprep.subr.bf16.mxu0 0
    %548 = vmatpush1.bf16.xpose.msra.mxu0 0
    %549 = vmatprep.subr.bf16.mxu0 0
    %550 = vmatpush1.bf16.xpose.msra.mxu0 0
    %551 = vmatprep.subr.bf16.mxu0 0
    %552 = vmatpush1.bf16.xpose.msra.mxu0 0
    %553 = vmatprep.subr.bf16.mxu0 0
    %554 = vmatpush1.bf16.xpose.msra.mxu0 0
    %555 = vmatprep.mubr.bf16.mxu0 0
    %556 = vmatmul.mubr.bf16.gmra.mrb[0].mxu0 %v500
    %v557 = vpop.f32.mrb[0].mxu0
    %v558 = vadd.f32 0.0, %v557
    %v559 = vpop.f32.mrb[0].mxu0
    %v560 = vpop.f32.mrb[0].mxu0
    %v561 = vadd.f32 0.0, %v560
    %v562 = vpop.f32.mrb[0].mxu0
    %563 = vmatprep.mubr.bf16.mxu0 0
    %564 = vmatmul.mubr.bf16.gmra.mrb[0].mxu0 %v503
    %v565 = vpop.f32.mrb[0].mxu0
    %v566 = vadd.f32 0.0, %v565
    %v567 = vpop.f32.mrb[0].mxu0
    %v568 = vpop.f32.mrb[0].mxu0
    %v569 = vadd.f32 0.0, %v568
    %v570 = vpop.f32.mrb[0].mxu0
    %571 = vmatprep.mubr.bf16.mxu0 0
    %572 = vmatmul.mubr.bf16.gmra.mrb[0].mxu0 %v506
    %v573 = vpop.f32.mrb[0].mxu0
    %v574 = vadd.f32 0.0, %v573
    %v575 = vpop.f32.mrb[0].mxu0
    %v576 = vpop.f32.mrb[0].mxu0
    %v577 = vadd.f32 0.0, %v576
    %v578 = vpop.f32.mrb[0].mxu0
    %579 = vmatprep.mubr.bf16.mxu0 0
    %580 = vmatmul.mubr.bf16.gmra.mrb[0].mxu0 %v509
    %v581 = vpop.f32.mrb[0].mxu0
    %v582 = vadd.f32 0.0, %v581
    %v583 = vpop.f32.mrb[0].mxu0
    %v584 = vpop.f32.mrb[0].mxu0
    %v585 = vadd.f32 0.0, %v584
    %v586 = vpop.f32.mrb[0].mxu0
    %587 = vdwg.mxu0
    %v589 = vsel %vm498, %v478, 0
    %v592 = vsel %vm498, %v479, 0
    %v595 = vsel %vm498, %v480, 0
    %v598 = vsel %vm498, %v481, 0
    %v601 = vsel %vm498, %v486, 0
    %v604 = vsel %vm498, %v487, 0
    %v607 = vsel %vm498, %v488, 0
    %v610 = vsel %vm498, %v489, 0
    %612 = vmatprep.subr.bf16.mxu0 0
    %613 = vmatpush1.bf16.xpose.msra.mxu0 %v601
    %614 = vmatprep.subr.bf16.mxu0 0
    %615 = vmatpush1.bf16.xpose.msra.mxu0 %v604
    %616 = vmatprep.subr.bf16.mxu0 0
    %617 = vmatpush1.bf16.xpose.msra.mxu0 %v607
    %618 = vmatprep.subr.bf16.mxu0 0
    %619 = vmatpush1.bf16.xpose.msra.mxu0 %v610
    %620 = vmatprep.subr.bf16.mxu0 0
    %621 = vmatpush1.bf16.xpose.msra.mxu0 0
    %622 = vmatprep.subr.bf16.mxu0 0
    %623 = vmatpush1.bf16.xpose.msra.mxu0 0
    %624 = vmatprep.subr.bf16.mxu0 0
    %625 = vmatpush1.bf16.xpose.msra.mxu0 0
    %626 = vmatprep.subr.bf16.mxu0 0
    %627 = vmatpush1.bf16.xpose.msra.mxu0 0
    %628 = vmatprep.subr.bf16.mxu0 0
    %629 = vmatpush1.bf16.xpose.msra.mxu0 0
    %630 = vmatprep.subr.bf16.mxu0 0
    %631 = vmatpush1.bf16.xpose.msra.mxu0 0
    %632 = vmatprep.subr.bf16.mxu0 0
    %633 = vmatpush1.bf16.xpose.msra.mxu0 0
    %634 = vmatprep.subr.bf16.mxu0 0
    %635 = vmatpush1.bf16.xpose.msra.mxu0 0
    %636 = vmatprep.subr.bf16.mxu0 0
    %637 = vmatpush1.bf16.xpose.msra.mxu0 0
    %638 = vmatprep.subr.bf16.mxu0 0
    %639 = vmatpush1.bf16.xpose.msra.mxu0 0
    %640 = vmatprep.subr.bf16.mxu0 0
    %641 = vmatpush1.bf16.xpose.msra.mxu0 0
    %642 = vmatprep.subr.bf16.mxu0 0
    %643 = vmatpush1.bf16.xpose.msra.mxu0 0
    %644 = vmatprep.mubr.bf16.mxu0 0
    %645 = vmatmul.mubr.bf16.gmra.mrb[0].mxu0 %v589
    %v646 = vpop.f32.mrb[0].mxu0
    %v647 = vadd.f32 0.0, %v646
    %v648 = vpop.f32.mrb[0].mxu0
    %v649 = vpop.f32.mrb[0].mxu0
    %v650 = vadd.f32 0.0, %v649
    %v651 = vpop.f32.mrb[0].mxu0
    %652 = vmatprep.mubr.bf16.mxu0 0
    %653 = vmatmul.mubr.bf16.gmra.mrb[0].mxu0 %v592
    %v654 = vpop.f32.mrb[0].mxu0
    %v655 = vadd.f32 0.0, %v654
    %v656 = vpop.f32.mrb[0].mxu0
    %v657 = vpop.f32.mrb[0].mxu0
    %v658 = vadd.f32 0.0, %v657
    %v659 = vpop.f32.mrb[0].mxu0
    %660 = vmatprep.mubr.bf16.mxu0 0
    %661 = vmatmul.mubr.bf16.gmra.mrb[0].mxu0 %v595
    %v662 = vpop.f32.mrb[0].mxu0
    %v663 = vadd.f32 0.0, %v662
    %v664 = vpop.f32.mrb[0].mxu0
    %v665 = vpop.f32.mrb[0].mxu0
    %v666 = vadd.f32 0.0, %v665
    %v667 = vpop.f32.mrb[0].mxu0
    %668 = vmatprep.mubr.bf16.mxu0 0
    %669 = vmatmul.mubr.bf16.gmra.mrb[0].mxu0 %v598
    %v670 = vpop.f32.mrb[0].mxu0
    %v671 = vadd.f32 0.0, %v670
    %v672 = vpop.f32.mrb[0].mxu0
    %v673 = vpop.f32.mrb[0].mxu0
    %v674 = vadd.f32 0.0, %v673
    %v675 = vpop.f32.mrb[0].mxu0
    %676 = vdwg.mxu0
    %vm677 = vcmask 523264
    %v678 = vsel %vm677, %v558, -inf
    %679 = vmax.xlane.f32.xlu0 %v678
    %v680 = vpop.xlane.xlu0 %679
    %v681 = vsel %vm677, %v561, -inf
    %682 = vmax.xlane.f32.xlu0 %v681
    %v683 = vpop.xlane.xlu0 %682
    %v684 = vsel %vm677, %v566, -inf
    %685 = vmax.xlane.f32.xlu0 %v684
    %v686 = vpop.xlane.xlu0 %685
    %v687 = vsel %vm677, %v569, -inf
    %688 = vmax.xlane.f32.xlu0 %v687
    %v689 = vpop.xlane.xlu0 %688
    %v690 = vsel %vm677, %v574, -inf
    %691 = vmax.xlane.f32.xlu0 %v690
    %v692 = vpop.xlane.xlu0 %691
    %v693 = vsel %vm677, %v577, -inf
    %694 = vmax.xlane.f32.xlu0 %v693
    %v695 = vpop.xlane.xlu0 %694
    %v696 = vsel %vm677, %v582, -inf
    %697 = vmax.xlane.f32.xlu0 %v696
    %v698 = vpop.xlane.xlu0 %697
    %v699 = vsel %vm677, %v585, -inf
    %700 = vmax.xlane.f32.xlu0 %v699
    %v701 = vpop.xlane.xlu0 %700
    %v702 = vsel %vm677, %v647, -inf
    %703 = vmax.xlane.f32.xlu0 %v702
    %v704 = vpop.xlane.xlu0 %703
    %v705 = vsel %vm677, %v650, -inf
    %706 = vmax.xlane.f32.xlu0 %v705
    %v707 = vpop.xlane.xlu0 %706
    %v708 = vsel %vm677, %v655, -inf
    %709 = vmax.xlane.f32.xlu0 %v708
    %v710 = vpop.xlane.xlu0 %709
    %v711 = vsel %vm677, %v658, -inf
    %712 = vmax.xlane.f32.xlu0 %v711
    %v713 = vpop.xlane.xlu0 %712
    %v714 = vsel %vm677, %v663, -inf
    %715 = vmax.xlane.f32.xlu0 %v714
    %v716 = vpop.xlane.xlu0 %715
    %v717 = vsel %vm677, %v666, -inf
    %718 = vmax.xlane.f32.xlu0 %v717
    %v719 = vpop.xlane.xlu0 %718
    %v720 = vsel %vm677, %v671, -inf
    %721 = vmax.xlane.f32.xlu0 %v720
    %v722 = vpop.xlane.xlu0 %721
    %v723 = vsel %vm677, %v674, -inf
    %724 = vmax.xlane.f32.xlu0 %v723
    %v725 = vpop.xlane.xlu0 %724
    %v726 = vsub.f32 %v558, %v680
    %v727 = vsub.f32 %v561, %v683
    %v728 = vsub.f32 %v566, %v686
    %v729 = vsub.f32 %v569, %v689
    %v730 = vsub.f32 %v574, %v692
    %v731 = vsub.f32 %v577, %v695
    %v732 = vsub.f32 %v582, %v698
    %v733 = vsub.f32 %v585, %v701
    %v734 = vsub.f32 %v647, %v704
    %v735 = vsub.f32 %v650, %v707
    %v736 = vsub.f32 %v655, %v710
    %v737 = vsub.f32 %v658, %v713
    %v738 = vsub.f32 %v663, %v716
    %v739 = vsub.f32 %v666, %v719
    %v740 = vsub.f32 %v671, %v722
    %v741 = vsub.f32 %v674, %v725
    %v742 = vmul.f32 %v726, 1.442695
    %v743 = vpow.pop %v742
    %v744 = vmul.f32 %v727, 1.442695
    %v745 = vpow.pop %v744
    %v746 = vmul.f32 %v728, 1.442695
    %v747 = vpow.pop %v746
    %v748 = vmul.f32 %v729, 1.442695
    %v749 = vpow.pop %v748
    %v750 = vmul.f32 %v730, 1.442695
    %v751 = vpow.pop %v750
    %v752 = vmul.f32 %v731, 1.442695
    %v753 = vpow.pop %v752
    %v754 = vmul.f32 %v732, 1.442695
    %v755 = vpow.pop %v754
    %v756 = vmul.f32 %v733, 1.442695
    %v757 = vpow.pop %v756
    %v758 = vmul.f32 %v734, 1.442695
    %v759 = vpow.pop %v758
    %v760 = vmul.f32 %v735, 1.442695
    %v761 = vpow.pop %v760
    %v762 = vmul.f32 %v736, 1.442695
    %v763 = vpow.pop %v762
    %v764 = vmul.f32 %v737, 1.442695
    %v765 = vpow.pop %v764
    %v766 = vmul.f32 %v738, 1.442695
    %v767 = vpow.pop %v766
    %v768 = vmul.f32 %v739, 1.442695
    %v769 = vpow.pop %v768
    %v770 = vmul.f32 %v740, 1.442695
    %v771 = vpow.pop %v770
    %v772 = vmul.f32 %v741, 1.442695
    %v773 = vpow.pop %v772
    %v774 = vsel %vm677, %v743, 0.0
    %775 = vadd.xlane.f32.xlu0 %v774
    %v776 = vpop.xlane.xlu0 %775
    %v777 = vsel %vm677, %v745, 0.0
    %778 = vadd.xlane.f32.xlu0 %v777
    %v779 = vpop.xlane.xlu0 %778
    %v780 = vsel %vm677, %v747, 0.0
    %781 = vadd.xlane.f32.xlu0 %v780
    %v782 = vpop.xlane.xlu0 %781
    %v783 = vsel %vm677, %v749, 0.0
    %784 = vadd.xlane.f32.xlu0 %v783
    %v785 = vpop.xlane.xlu0 %784
    %v786 = vsel %vm677, %v751, 0.0
    %787 = vadd.xlane.f32.xlu0 %v786
    %v788 = vpop.xlane.xlu0 %787
    %v789 = vsel %vm677, %v753, 0.0
    %790 = vadd.xlane.f32.xlu0 %v789
    %v791 = vpop.xlane.xlu0 %790
    %v792 = vsel %vm677, %v755, 0.0
    %793 = vadd.xlane.f32.xlu0 %v792
    %v794 = vpop.xlane.xlu0 %793
    %v795 = vsel %vm677, %v757, 0.0
    %796 = vadd.xlane.f32.xlu0 %v795
    %v797 = vpop.xlane.xlu0 %796
    %v798 = vsel %vm677, %v759, 0.0
    %799 = vadd.xlane.f32.xlu0 %v798
    %v800 = vpop.xlane.xlu0 %799
    %v801 = vsel %vm677, %v761, 0.0
    %802 = vadd.xlane.f32.xlu0 %v801
    %v803 = vpop.xlane.xlu0 %802
    %v804 = vsel %vm677, %v763, 0.0
    %805 = vadd.xlane.f32.xlu0 %v804
    %v806 = vpop.xlane.xlu0 %805
    %v807 = vsel %vm677, %v765, 0.0
    %808 = vadd.xlane.f32.xlu0 %v807
    %v809 = vpop.xlane.xlu0 %808
    %v810 = vsel %vm677, %v767, 0.0
    %811 = vadd.xlane.f32.xlu0 %v810
    %v812 = vpop.xlane.xlu0 %811
    %v813 = vsel %vm677, %v769, 0.0
    %814 = vadd.xlane.f32.xlu0 %v813
    %v815 = vpop.xlane.xlu0 %814
    %v816 = vsel %vm677, %v771, 0.0
    %817 = vadd.xlane.f32.xlu0 %v816
    %v818 = vpop.xlane.xlu0 %817
    %v819 = vsel %vm677, %v773, 0.0
    %820 = vadd.xlane.f32.xlu0 %v819
    %v821 = vpop.xlane.xlu0 %820
    %v822 = vpack.c.bf16 %v745, %v743
    %v823 = vpack.c.bf16 %v749, %v747
    %v824 = vpack.c.bf16 %v753, %v751
    %v825 = vpack.c.bf16 %v757, %v755
    %v826 = vpack.c.bf16 %v761, %v759
    %v827 = vpack.c.bf16 %v765, %v763
    %v828 = vpack.c.bf16 %v769, %v767
    %v829 = vpack.c.bf16 %v773, %v771
    %v831 = vsel %vm677, %v822, 0
    %v834 = vsel %vm677, %v823, 0
    %v837 = vsel %vm677, %v824, 0
    %v840 = vsel %vm677, %v825, 0
    %842 = vmatprep.subr.bf16.mxu0 0
    %843 = vmatpush1.bf16.msra.mxu0 %v490
    %844 = vmatprep.subr.bf16.mxu0 0
    %845 = vmatpush1.bf16.msra.mxu0 %v491
    %846 = vmatprep.subr.bf16.mxu0 0
    %847 = vmatpush1.bf16.msra.mxu0 %v492
    %848 = vmatprep.subr.bf16.mxu0 0
    %849 = vmatpush1.bf16.msra.mxu0 %v493
    %850 = vmatprep.subr.bf16.mxu0 0
    %851 = vmatpush1.bf16.msra.mxu0 0
    %852 = vmatprep.subr.bf16.mxu0 0
    %853 = vmatpush1.bf16.msra.mxu0 0
    %854 = vmatprep.subr.bf16.mxu0 0
    %855 = vmatpush1.bf16.msra.mxu0 0
    %856 = vmatprep.subr.bf16.mxu0 0
    %857 = vmatpush1.bf16.msra.mxu0 0
    %858 = vmatprep.subr.bf16.mxu0 0
    %859 = vmatpush1.bf16.msra.mxu0 0
    %860 = vmatprep.subr.bf16.mxu0 0
    %861 = vmatpush1.bf16.msra.mxu0 0
    %862 = vmatprep.subr.bf16.mxu0 0
    %863 = vmatpush1.bf16.msra.mxu0 0
    %864 = vmatprep.subr.bf16.mxu0 0
    %865 = vmatpush1.bf16.msra.mxu0 0
    %866 = vmatprep.subr.bf16.mxu0 0
    %867 = vmatpush1.bf16.msra.mxu0 0
    %868 = vmatprep.subr.bf16.mxu0 0
    %869 = vmatpush1.bf16.msra.mxu0 0
    %870 = vmatprep.subr.bf16.mxu0 0
    %871 = vmatpush1.bf16.msra.mxu0 0
    %872 = vmatprep.subr.bf16.mxu0 0
    %873 = vmatpush1.bf16.msra.mxu0 0
    %874 = vmatprep.mubr.bf16.mxu0 0
    %875 = vmatmul.mubr.bf16.gmra.mrb[0].mxu0 %v831
    %v876 = vpop.f32.mrb[0].mxu0
    %v877 = vadd.f32 0.0, %v876
    %v878 = vpop.f32.mrb[0].mxu0
    %v879 = vpop.f32.mrb[0].mxu0
    %v880 = vadd.f32 0.0, %v879
    %v881 = vpop.f32.mrb[0].mxu0
    %882 = vmatprep.mubr.bf16.mxu0 0
    %883 = vmatmul.mubr.bf16.gmra.mrb[0].mxu0 %v834
    %v884 = vpop.f32.mrb[0].mxu0
    %v885 = vadd.f32 0.0, %v884
    %v886 = vpop.f32.mrb[0].mxu0
    %v887 = vpop.f32.mrb[0].mxu0
    %v888 = vadd.f32 0.0, %v887
    %v889 = vpop.f32.mrb[0].mxu0
    %890 = vmatprep.mubr.bf16.mxu0 0
    %891 = vmatmul.mubr.bf16.gmra.mrb[0].mxu0 %v837
    %v892 = vpop.f32.mrb[0].mxu0
    %v893 = vadd.f32 0.0, %v892
    %v894 = vpop.f32.mrb[0].mxu0
    %v895 = vpop.f32.mrb[0].mxu0
    %v896 = vadd.f32 0.0, %v895
    %v897 = vpop.f32.mrb[0].mxu0
    %898 = vmatprep.mubr.bf16.mxu0 0
    %899 = vmatmul.mubr.bf16.gmra.mrb[0].mxu0 %v840
    %v900 = vpop.f32.mrb[0].mxu0
    %v901 = vadd.f32 0.0, %v900
    %v902 = vpop.f32.mrb[0].mxu0
    %v903 = vpop.f32.mrb[0].mxu0
    %v904 = vadd.f32 0.0, %v903
    %v905 = vpop.f32.mrb[0].mxu0
    %906 = vdwg.mxu0
    %v908 = vsel %vm677, %v826, 0
    %v911 = vsel %vm677, %v827, 0
    %v914 = vsel %vm677, %v828, 0
    %v917 = vsel %vm677, %v829, 0
    %919 = vmatprep.subr.bf16.mxu0 0
    %920 = vmatpush1.bf16.msra.mxu0 %v494
    %921 = vmatprep.subr.bf16.mxu0 0
    %922 = vmatpush1.bf16.msra.mxu0 %v495
    %923 = vmatprep.subr.bf16.mxu0 0
    %924 = vmatpush1.bf16.msra.mxu0 %v496
    %925 = vmatprep.subr.bf16.mxu0 0
    %926 = vmatpush1.bf16.msra.mxu0 %v497
    %927 = vmatprep.subr.bf16.mxu0 0
    %928 = vmatpush1.bf16.msra.mxu0 0
    %929 = vmatprep.subr.bf16.mxu0 0
    %930 = vmatpush1.bf16.msra.mxu0 0
    %931 = vmatprep.subr.bf16.mxu0 0
    %932 = vmatpush1.bf16.msra.mxu0 0
    %933 = vmatprep.subr.bf16.mxu0 0
    %934 = vmatpush1.bf16.msra.mxu0 0
    %935 = vmatprep.subr.bf16.mxu0 0
    %936 = vmatpush1.bf16.msra.mxu0 0
    %937 = vmatprep.subr.bf16.mxu0 0
    %938 = vmatpush1.bf16.msra.mxu0 0
    %939 = vmatprep.subr.bf16.mxu0 0
    %940 = vmatpush1.bf16.msra.mxu0 0
    %941 = vmatprep.subr.bf16.mxu0 0
    %942 = vmatpush1.bf16.msra.mxu0 0
    %943 = vmatprep.subr.bf16.mxu0 0
    %944 = vmatpush1.bf16.msra.mxu0 0
    %945 = vmatprep.subr.bf16.mxu0 0
    %946 = vmatpush1.bf16.msra.mxu0 0
    %947 = vmatprep.subr.bf16.mxu0 0
    %948 = vmatpush1.bf16.msra.mxu0 0
    %949 = vmatprep.subr.bf16.mxu0 0
    %950 = vmatpush1.bf16.msra.mxu0 0
    %951 = vmatprep.mubr.bf16.mxu0 0
    %952 = vmatmul.mubr.bf16.gmra.mrb[0].mxu0 %v908
    %v953 = vpop.f32.mrb[0].mxu0
    %v954 = vadd.f32 0.0, %v953
    %v955 = vpop.f32.mrb[0].mxu0
    %v956 = vpop.f32.mrb[0].mxu0
    %v957 = vadd.f32 0.0, %v956
    %v958 = vpop.f32.mrb[0].mxu0
    %959 = vmatprep.mubr.bf16.mxu0 0
    %960 = vmatmul.mubr.bf16.gmra.mrb[0].mxu0 %v911
    %v961 = vpop.f32.mrb[0].mxu0
    %v962 = vadd.f32 0.0, %v961
    %v963 = vpop.f32.mrb[0].mxu0
    %v964 = vpop.f32.mrb[0].mxu0
    %v965 = vadd.f32 0.0, %v964
    %v966 = vpop.f32.mrb[0].mxu0
    %967 = vmatprep.mubr.bf16.mxu0 0
    %968 = vmatmul.mubr.bf16.gmra.mrb[0].mxu0 %v914
    %v969 = vpop.f32.mrb[0].mxu0
    %v970 = vadd.f32 0.0, %v969
    %v971 = vpop.f32.mrb[0].mxu0
    %v972 = vpop.f32.mrb[0].mxu0
    %v973 = vadd.f32 0.0, %v972
    %v974 = vpop.f32.mrb[0].mxu0
    %975 = vmatprep.mubr.bf16.mxu0 0
    %976 = vmatmul.mubr.bf16.gmra.mrb[0].mxu0 %v917
    %v977 = vpop.f32.mrb[0].mxu0
    %v978 = vadd.f32 0.0, %v977
    %v979 = vpop.f32.mrb[0].mxu0
    %v980 = vpop.f32.mrb[0].mxu0
    %v981 = vadd.f32 0.0, %v980
    %v982 = vpop.f32.mrb[0].mxu0
    %983 = vdwg.mxu0
    %v984 = vrcp.pop %v776
    %v985 = vrcp.pop %v779
    %v986 = vrcp.pop %v782
    %v987 = vrcp.pop %v785
    %v988 = vrcp.pop %v788
    %v989 = vrcp.pop %v791
    %v990 = vrcp.pop %v794
    %v991 = vrcp.pop %v797
    %v992 = vrcp.pop %v800
    %v993 = vrcp.pop %v803
    %v994 = vrcp.pop %v806
    %v995 = vrcp.pop %v809
    %v996 = vrcp.pop %v812
    %v997 = vrcp.pop %v815
    %v998 = vrcp.pop %v818
    %v999 = vrcp.pop %v821
    %v1000 = vmul.f32 %v877, %v984
    %v1001 = vmul.f32 %v880, %v985
    %v1002 = vmul.f32 %v885, %v986
    %v1003 = vmul.f32 %v888, %v987
    %v1004 = vmul.f32 %v893, %v988
    %v1005 = vmul.f32 %v896, %v989
    %v1006 = vmul.f32 %v901, %v990
    %v1007 = vmul.f32 %v904, %v991
    %v1008 = vmul.f32 %v954, %v992
    %v1009 = vmul.f32 %v957, %v993
    %v1010 = vmul.f32 %v962, %v994
    %v1011 = vmul.f32 %v965, %v995
    %v1012 = vmul.f32 %v970, %v996
    %v1013 = vmul.f32 %v973, %v997
    %v1014 = vmul.f32 %v978, %v998
    %v1015 = vmul.f32 %v981, %v999
    %1016 = vst.msk [vmem:[#allocation2] sm:$0xff] %vm498, %v1000
    %1017 = vst.msk [vmem:[#allocation2 + $0x8] sm:$0xff] %vm498, %v1001
    %1018 = vst.msk [vmem:[#allocation2 + $0x10] sm:$0xff] %vm498, %v1002
    %1019 = vst.msk [vmem:[#allocation2 + $0x18] sm:$0xff] %vm498, %v1003
    %1020 = vst.msk [vmem:[#allocation2 + $0x20] sm:$0xff] %vm498, %v1004
    %1021 = vst.msk [vmem:[#allocation2 + $0x28] sm:$0xff] %vm498, %v1005
    %1022 = vst.msk [vmem:[#allocation2 + $0x30] sm:$0xff] %vm498, %v1006
    %1023 = vst.msk [vmem:[#allocation2 + $0x38] sm:$0xff] %vm498, %v1007
    %1024 = vst.msk [vmem:[#allocation2 + $0x40] sm:$0xff] %vm498, %v1008
    %1025 = vst.msk [vmem:[#allocation2 + $0x48] sm:$0xff] %vm498, %v1009
    %1026 = vst.msk [vmem:[#allocation2 + $0x50] sm:$0xff] %vm498, %v1010
    %1027 = vst.msk [vmem:[#allocation2 + $0x58] sm:$0xff] %vm498, %v1011
    %1028 = vst.msk [vmem:[#allocation2 + $0x60] sm:$0xff] %vm498, %v1012
    %1029 = vst.msk [vmem:[#allocation2 + $0x68] sm:$0xff] %vm498, %v1013
    %1030 = vst.msk [vmem:[#allocation2 + $0x70] sm:$0xff] %vm498, %v1014
    %1031 = vst.msk [vmem:[#allocation2 + $0x78] sm:$0xff] %vm498, %v1015
    %1036 = vrot.lane.b32.xlu0 %v474, 112
    %v1037 = vpop.permute.xlu0 %1036
    %1038 = vrot.lane.b32.xlu0 %v475, 112
    %v1039 = vpop.permute.xlu0 %1038
    %1040 = vrot.lane.b32.xlu0 %v476, 112
    %v1041 = vpop.permute.xlu0 %1040
    %1042 = vrot.lane.b32.xlu0 %v477, 112
    %v1043 = vpop.permute.xlu0 %1042
    %1048 = vrot.lane.b32.xlu0 %v482, 112
    %v1049 = vpop.permute.xlu0 %1048
    %1050 = vrot.lane.b32.xlu0 %v483, 112
    %v1051 = vpop.permute.xlu0 %1050
    %1052 = vrot.lane.b32.xlu0 %v484, 112
    %v1053 = vpop.permute.xlu0 %1052
    %1054 = vrot.lane.b32.xlu0 %v485, 112
    %v1055 = vpop.permute.xlu0 %1054
    %v1057 = vsel %vm498, %v1037, 0
    %v1060 = vsel %vm498, %v1039, 0
    %v1063 = vsel %vm498, %v1041, 0
    %v1066 = vsel %vm498, %v1043, 0
    %v1069 = vsel %vm498, %v1049, 0
    %v1072 = vsel %vm498, %v1051, 0
    %v1075 = vsel %vm498, %v1053, 0
    %v1078 = vsel %vm498, %v1055, 0
    %1080 = vmatprep.subr.bf16.mxu0 0
    %1081 = vmatpush1.bf16.xpose.msra.mxu0 %v1069
    %1082 = vmatprep.subr.bf16.mxu0 0
    %1083 = vmatpush1.bf16.xpose.msra.mxu0 %v1072
    %1084 = vmatprep.subr.bf16.mxu0 0
    %1085 = vmatpush1.bf16.xpose.msra.mxu0 %v1075
    %1086 = vmatprep.subr.bf16.mxu0 0
    %1087 = vmatpush1.bf16.xpose.msra.mxu0 %v1078
    %1088 = vmatprep.subr.bf16.mxu0 0
    %1089 = vmatpush1.bf16.xpose.msra.mxu0 0
    %1090 = vmatprep.subr.bf16.mxu0 0
    %1091 = vmatpush1.bf16.xpose.msra.mxu0 0
    %1092 = vmatprep.subr.bf16.mxu0 0
    %1093 = vmatpush1.bf16.xpose.msra.mxu0 0
    %1094 = vmatprep.subr.bf16.mxu0 0
    %1095 = vmatpush1.bf16.xpose.msra.mxu0 0
    %1096 = vmatprep.subr.bf16.mxu0 0
    %1097 = vmatpush1.bf16.xpose.msra.mxu0 0
    %1098 = vmatprep.subr.bf16.mxu0 0
    %1099 = vmatpush1.bf16.xpose.msra.mxu0 0
    %1100 = vmatprep.subr.bf16.mxu0 0
    %1101 = vmatpush1.bf16.xpose.msra.mxu0 0
    %1102 = vmatprep.subr.bf16.mxu0 0
    %1103 = vmatpush1.bf16.xpose.msra.mxu0 0
    %1104 = vmatprep.subr.bf16.mxu0 0
    %1105 = vmatpush1.bf16.xpose.msra.mxu0 0
    %1106 = vmatprep.subr.bf16.mxu0 0
    %1107 = vmatpush1.bf16.xpose.msra.mxu0 0
    %1108 = vmatprep.subr.bf16.mxu0 0
    %1109 = vmatpush1.bf16.xpose.msra.mxu0 0
    %1110 = vmatprep.subr.bf16.mxu0 0
    %1111 = vmatpush1.bf16.xpose.msra.mxu0 0
    %1112 = vmatprep.mubr.bf16.mxu0 0
    %1113 = vmatmul.mubr.bf16.gmra.mrb[0].mxu0 %v1057
    %v1114 = vpop.f32.mrb[0].mxu0
    %v1115 = vadd.f32 0.0, %v1114
    %v1116 = vpop.f32.mrb[0].mxu0
    %v1117 = vpop.f32.mrb[0].mxu0
    %v1118 = vadd.f32 0.0, %v1117
    %v1119 = vpop.f32.mrb[0].mxu0
    %1120 = vmatprep.mubr.bf16.mxu0 0
    %1121 = vmatmul.mubr.bf16.gmra.mrb[0].mxu0 %v1060
    %v1122 = vpop.f32.mrb[0].mxu0
    %v1123 = vadd.f32 0.0, %v1122
    %v1124 = vpop.f32.mrb[0].mxu0
    %v1125 = vpop.f32.mrb[0].mxu0
    %v1126 = vadd.f32 0.0, %v1125
    %v1127 = vpop.f32.mrb[0].mxu0
    %1128 = vmatprep.mubr.bf16.mxu0 0
    %1129 = vmatmul.mubr.bf16.gmra.mrb[0].mxu0 %v1063
    %v1130 = vpop.f32.mrb[0].mxu0
    %v1131 = vadd.f32 0.0, %v1130
    %v1132 = vpop.f32.mrb[0].mxu0
    %v1133 = vpop.f32.mrb[0].mxu0
    %v1134 = vadd.f32 0.0, %v1133
    %v1135 = vpop.f32.mrb[0].mxu0
    %1136 = vmatprep.mubr.bf16.mxu0 0
    %1137 = vmatmul.mubr.bf16.gmra.mrb[0].mxu0 %v1066
    %v1138 = vpop.f32.mrb[0].mxu0
    %v1139 = vadd.f32 0.0, %v1138
    %v1140 = vpop.f32.mrb[0].mxu0
    %v1141 = vpop.f32.mrb[0].mxu0
    %v1142 = vadd.f32 0.0, %v1141
    %v1143 = vpop.f32.mrb[0].mxu0
    %1144 = vdwg.mxu0
    %1149 = vrot.lane.b32.xlu0 %v478, 112
    %v1150 = vpop.permute.xlu0 %1149
    %1151 = vrot.lane.b32.xlu0 %v479, 112
    %v1152 = vpop.permute.xlu0 %1151
    %1153 = vrot.lane.b32.xlu0 %v480, 112
    %v1154 = vpop.permute.xlu0 %1153
    %1155 = vrot.lane.b32.xlu0 %v481, 112
    %v1156 = vpop.permute.xlu0 %1155
    %1161 = vrot.lane.b32.xlu0 %v486, 112
    %v1162 = vpop.permute.xlu0 %1161
    %1163 = vrot.lane.b32.xlu0 %v487, 112
    %v1164 = vpop.permute.xlu0 %1163
    %1165 = vrot.lane.b32.xlu0 %v488, 112
    %v1166 = vpop.permute.xlu0 %1165
    %1167 = vrot.lane.b32.xlu0 %v489, 112
    %v1168 = vpop.permute.xlu0 %1167
    %v1170 = vsel %vm498, %v1150, 0
    %v1173 = vsel %vm498, %v1152, 0
    %v1176 = vsel %vm498, %v1154, 0
    %v1179 = vsel %vm498, %v1156, 0
    %v1182 = vsel %vm498, %v1162, 0
    %v1185 = vsel %vm498, %v1164, 0
    %v1188 = vsel %vm498, %v1166, 0
    %v1191 = vsel %vm498, %v1168, 0
    %1193 = vmatprep.subr.bf16.mxu0 0
    %1194 = vmatpush1.bf16.xpose.msra.mxu0 %v1182
    %1195 = vmatprep.subr.bf16.mxu0 0
    %1196 = vmatpush1.bf16.xpose.msra.mxu0 %v1185
    %1197 = vmatprep.subr.bf16.mxu0 0
    %1198 = vmatpush1.bf16.xpose.msra.mxu0 %v1188
    %1199 = vmatprep.subr.bf16.mxu0 0
    %1200 = vmatpush1.bf16.xpose.msra.mxu0 %v1191
    %1201 = vmatprep.subr.bf16.mxu0 0
    %1202 = vmatpush1.bf16.xpose.msra.mxu0 0
    %1203 = vmatprep.subr.bf16.mxu0 0
    %1204 = vmatpush1.bf16.xpose.msra.mxu0 0
    %1205 = vmatprep.subr.bf16.mxu0 0
    %1206 = vmatpush1.bf16.xpose.msra.mxu0 0
    %1207 = vmatprep.subr.bf16.mxu0 0
    %1208 = vmatpush1.bf16.xpose.msra.mxu0 0
    %1209 = vmatprep.subr.bf16.mxu0 0
    %1210 = vmatpush1.bf16.xpose.msra.mxu0 0
    %1211 = vmatprep.subr.bf16.mxu0 0
    %1212 = vmatpush1.bf16.xpose.msra.mxu0 0
    %1213 = vmatprep.subr.bf16.mxu0 0
    %1214 = vmatpush1.bf16.xpose.msra.mxu0 0
    %1215 = vmatprep.subr.bf16.mxu0 0
    %1216 = vmatpush1.bf16.xpose.msra.mxu0 0
    %1217 = vmatprep.subr.bf16.mxu0 0
    %1218 = vmatpush1.bf16.xpose.msra.mxu0 0
    %1219 = vmatprep.subr.bf16.mxu0 0
    %1220 = vmatpush1.bf16.xpose.msra.mxu0 0
    %1221 = vmatprep.subr.bf16.mxu0 0
    %1222 = vmatpush1.bf16.xpose.msra.mxu0 0
    %1223 = vmatprep.subr.bf16.mxu0 0
    %1224 = vmatpush1.bf16.xpose.msra.mxu0 0
    %1225 = vmatprep.mubr.bf16.mxu0 0
    %1226 = vmatmul.mubr.bf16.gmra.mrb[0].mxu0 %v1170
    %v1227 = vpop.f32.mrb[0].mxu0
    %v1228 = vadd.f32 0.0, %v1227
    %v1229 = vpop.f32.mrb[0].mxu0
    %v1230 = vpop.f32.mrb[0].mxu0
    %v1231 = vadd.f32 0.0, %v1230
    %v1232 = vpop.f32.mrb[0].mxu0
    %1233 = vmatprep.mubr.bf16.mxu0 0
    %1234 = vmatmul.mubr.bf16.gmra.mrb[0].mxu0 %v1173
    %v1235 = vpop.f32.mrb[0].mxu0
    %v1236 = vadd.f32 0.0, %v1235
    %v1237 = vpop.f32.mrb[0].mxu0
    %v1238 = vpop.f32.mrb[0].mxu0
    %v1239 = vadd.f32 0.0, %v1238
    %v1240 = vpop.f32.mrb[0].mxu0
    %1241 = vmatprep.mubr.bf16.mxu0 0
    %1242 = vmatmul.mubr.bf16.gmra.mrb[0].mxu0 %v1176
    %v1243 = vpop.f32.mrb[0].mxu0
    %v1244 = vadd.f32 0.0, %v1243
    %v1245 = vpop.f32.mrb[0].mxu0
    %v1246 = vpop.f32.mrb[0].mxu0
    %v1247 = vadd.f32 0.0, %v1246
    %v1248 = vpop.f32.mrb[0].mxu0
    %1249 = vmatprep.mubr.bf16.mxu0 0
    %1250 = vmatmul.mubr.bf16.gmra.mrb[0].mxu0 %v1179
    %v1251 = vpop.f32.mrb[0].mxu0
    %v1252 = vadd.f32 0.0, %v1251
    %v1253 = vpop.f32.mrb[0].mxu0
    %v1254 = vpop.f32.mrb[0].mxu0
    %v1255 = vadd.f32 0.0, %v1254
    %v1256 = vpop.f32.mrb[0].mxu0
    %1257 = vdwg.mxu0
    %v1258 = vsel %vm677, %v1115, -inf
    %1259 = vmax.xlane.f32.xlu0 %v1258
    %v1260 = vpop.xlane.xlu0 %1259
    %v1261 = vsel %vm677, %v1118, -inf
    %1262 = vmax.xlane.f32.xlu0 %v1261
    %v1263 = vpop.xlane.xlu0 %1262
    %v1264 = vsel %vm677, %v1123, -inf
    %1265 = vmax.xlane.f32.xlu0 %v1264
    %v1266 = vpop.xlane.xlu0 %1265
    %v1267 = vsel %vm677, %v1126, -inf
    %1268 = vmax.xlane.f32.xlu0 %v1267
    %v1269 = vpop.xlane.xlu0 %1268
    %v1270 = vsel %vm677, %v1131, -inf
    %1271 = vmax.xlane.f32.xlu0 %v1270
    %v1272 = vpop.xlane.xlu0 %1271
    %v1273 = vsel %vm677, %v1134, -inf
    %1274 = vmax.xlane.f32.xlu0 %v1273
    %v1275 = vpop.xlane.xlu0 %1274
    %v1276 = vsel %vm677, %v1139, -inf
    %1277 = vmax.xlane.f32.xlu0 %v1276
    %v1278 = vpop.xlane.xlu0 %1277
    %v1279 = vsel %vm677, %v1142, -inf
    %1280 = vmax.xlane.f32.xlu0 %v1279
    %v1281 = vpop.xlane.xlu0 %1280
    %v1282 = vsel %vm677, %v1228, -inf
    %1283 = vmax.xlane.f32.xlu0 %v1282
    %v1284 = vpop.xlane.xlu0 %1283
    %v1285 = vsel %vm677, %v1231, -inf
    %1286 = vmax.xlane.f32.xlu0 %v1285
    %v1287 = vpop.xlane.xlu0 %1286
    %v1288 = vsel %vm677, %v1236, -inf
    %1289 = vmax.xlane.f32.xlu0 %v1288
    %v1290 = vpop.xlane.xlu0 %1289
    %v1291 = vsel %vm677, %v1239, -inf
    %1292 = vmax.xlane.f32.xlu0 %v1291
    %v1293 = vpop.xlane.xlu0 %1292
    %v1294 = vsel %vm677, %v1244, -inf
    %1295 = vmax.xlane.f32.xlu0 %v1294
    %v1296 = vpop.xlane.xlu0 %1295
    %v1297 = vsel %vm677, %v1247, -inf
    %1298 = vmax.xlane.f32.xlu0 %v1297
    %v1299 = vpop.xlane.xlu0 %1298
    %v1300 = vsel %vm677, %v1252, -inf
    %1301 = vmax.xlane.f32.xlu0 %v1300
    %v1302 = vpop.xlane.xlu0 %1301
    %v1303 = vsel %vm677, %v1255, -inf
    %1304 = vmax.xlane.f32.xlu0 %v1303
    %v1305 = vpop.xlane.xlu0 %1304
    %v1306 = vsub.f32 %v1115, %v1260
    %v1307 = vsub.f32 %v1118, %v1263
    %v1308 = vsub.f32 %v1123, %v1266
    %v1309 = vsub.f32 %v1126, %v1269
    %v1310 = vsub.f32 %v1131, %v1272
    %v1311 = vsub.f32 %v1134, %v1275
    %v1312 = vsub.f32 %v1139, %v1278
    %v1313 = vsub.f32 %v1142, %v1281
    %v1314 = vsub.f32 %v1228, %v1284
    %v1315 = vsub.f32 %v1231, %v1287
    %v1316 = vsub.f32 %v1236, %v1290
    %v1317 = vsub.f32 %v1239, %v1293
    %v1318 = vsub.f32 %v1244, %v1296
    %v1319 = vsub.f32 %v1247, %v1299
    %v1320 = vsub.f32 %v1252, %v1302
    %v1321 = vsub.f32 %v1255, %v1305
    %v1322 = vmul.f32 %v1306, 1.442695
    %v1323 = vpow.pop %v1322
    %v1324 = vmul.f32 %v1307, 1.442695
    %v1325 = vpow.pop %v1324
    %v1326 = vmul.f32 %v1308, 1.442695
    %v1327 = vpow.pop %v1326
    %v1328 = vmul.f32 %v1309, 1.442695
    %v1329 = vpow.pop %v1328
    %v1330 = vmul.f32 %v1310, 1.442695
    %v1331 = vpow.pop %v1330
    %v1332 = vmul.f32 %v1311, 1.442695
    %v1333 = vpow.pop %v1332
    %v1334 = vmul.f32 %v1312, 1.442695
    %v1335 = vpow.pop %v1334
    %v1336 = vmul.f32 %v1313, 1.442695
    %v1337 = vpow.pop %v1336
    %v1338 = vmul.f32 %v1314, 1.442695
    %v1339 = vpow.pop %v1338
    %v1340 = vmul.f32 %v1315, 1.442695
    %v1341 = vpow.pop %v1340
    %v1342 = vmul.f32 %v1316, 1.442695
    %v1343 = vpow.pop %v1342
    %v1344 = vmul.f32 %v1317, 1.442695
    %v1345 = vpow.pop %v1344
    %v1346 = vmul.f32 %v1318, 1.442695
    %v1347 = vpow.pop %v1346
    %v1348 = vmul.f32 %v1319, 1.442695
    %v1349 = vpow.pop %v1348
    %v1350 = vmul.f32 %v1320, 1.442695
    %v1351 = vpow.pop %v1350
    %v1352 = vmul.f32 %v1321, 1.442695
    %v1353 = vpow.pop %v1352
    %v1354 = vsel %vm677, %v1323, 0.0
    %1355 = vadd.xlane.f32.xlu0 %v1354
    %v1356 = vpop.xlane.xlu0 %1355
    %v1357 = vsel %vm677, %v1325, 0.0
    %1358 = vadd.xlane.f32.xlu0 %v1357
    %v1359 = vpop.xlane.xlu0 %1358
    %v1360 = vsel %vm677, %v1327, 0.0
    %1361 = vadd.xlane.f32.xlu0 %v1360
    %v1362 = vpop.xlane.xlu0 %1361
    %v1363 = vsel %vm677, %v1329, 0.0
    %1364 = vadd.xlane.f32.xlu0 %v1363
    %v1365 = vpop.xlane.xlu0 %1364
    %v1366 = vsel %vm677, %v1331, 0.0
    %1367 = vadd.xlane.f32.xlu0 %v1366
    %v1368 = vpop.xlane.xlu0 %1367
    %v1369 = vsel %vm677, %v1333, 0.0
    %1370 = vadd.xlane.f32.xlu0 %v1369
    %v1371 = vpop.xlane.xlu0 %1370
    %v1372 = vsel %vm677, %v1335, 0.0
    %1373 = vadd.xlane.f32.xlu0 %v1372
    %v1374 = vpop.xlane.xlu0 %1373
    %v1375 = vsel %vm677, %v1337, 0.0
    %1376 = vadd.xlane.f32.xlu0 %v1375
    %v1377 = vpop.xlane.xlu0 %1376
    %v1378 = vsel %vm677, %v1339, 0.0
    %1379 = vadd.xlane.f32.xlu0 %v1378
    %v1380 = vpop.xlane.xlu0 %1379
    %v1381 = vsel %vm677, %v1341, 0.0
    %1382 = vadd.xlane.f32.xlu0 %v1381
    %v1383 = vpop.xlane.xlu0 %1382
    %v1384 = vsel %vm677, %v1343, 0.0
    %1385 = vadd.xlane.f32.xlu0 %v1384
    %v1386 = vpop.xlane.xlu0 %1385
    %v1387 = vsel %vm677, %v1345, 0.0
    %1388 = vadd.xlane.f32.xlu0 %v1387
    %v1389 = vpop.xlane.xlu0 %1388
    %v1390 = vsel %vm677, %v1347, 0.0
    %1391 = vadd.xlane.f32.xlu0 %v1390
    %v1392 = vpop.xlane.xlu0 %1391
    %v1393 = vsel %vm677, %v1349, 0.0
    %1394 = vadd.xlane.f32.xlu0 %v1393
    %v1395 = vpop.xlane.xlu0 %1394
    %v1396 = vsel %vm677, %v1351, 0.0
    %1397 = vadd.xlane.f32.xlu0 %v1396
    %v1398 = vpop.xlane.xlu0 %1397
    %v1399 = vsel %vm677, %v1353, 0.0
    %1400 = vadd.xlane.f32.xlu0 %v1399
    %v1401 = vpop.xlane.xlu0 %1400
    %v1402 = vpack.c.bf16 %v1325, %v1323
    %v1403 = vpack.c.bf16 %v1329, %v1327
    %v1404 = vpack.c.bf16 %v1333, %v1331
    %v1405 = vpack.c.bf16 %v1337, %v1335
    %v1406 = vpack.c.bf16 %v1341, %v1339
    %v1407 = vpack.c.bf16 %v1345, %v1343
    %v1408 = vpack.c.bf16 %v1349, %v1347
    %v1409 = vpack.c.bf16 %v1353, %v1351
    %1414 = vrot.lane.b32.xlu0 %v490, 112
    %v1415 = vpop.permute.xlu0 %1414
    %1416 = vrot.lane.b32.xlu0 %v491, 112
    %v1417 = vpop.permute.xlu0 %1416
    %1418 = vrot.lane.b32.xlu0 %v492, 112
    %v1419 = vpop.permute.xlu0 %1418
    %1420 = vrot.lane.b32.xlu0 %v493, 112
    %v1421 = vpop.permute.xlu0 %1420
    %v1427 = vsel %vm677, %v1402, 0
    %v1430 = vsel %vm677, %v1403, 0
    %v1433 = vsel %vm677, %v1404, 0
    %v1436 = vsel %vm677, %v1405, 0
    %1438 = vmatprep.subr.bf16.mxu0 0
    %1439 = vmatpush1.bf16.msra.mxu0 %v1415
    %1440 = vmatprep.subr.bf16.mxu0 0
    %1441 = vmatpush1.bf16.msra.mxu0 %v1417
    %1442 = vmatprep.subr.bf16.mxu0 0
    %1443 = vmatpush1.bf16.msra.mxu0 %v1419
    %1444 = vmatprep.subr.bf16.mxu0 0
    %1445 = vmatpush1.bf16.msra.mxu0 %v1421
    %1446 = vmatprep.subr.bf16.mxu0 0
    %1447 = vmatpush1.bf16.msra.mxu0 0
    %1448 = vmatprep.subr.bf16.mxu0 0
    %1449 = vmatpush1.bf16.msra.mxu0 0
    %1450 = vmatprep.subr.bf16.mxu0 0
    %1451 = vmatpush1.bf16.msra.mxu0 0
    %1452 = vmatprep.subr.bf16.mxu0 0
    %1453 = vmatpush1.bf16.msra.mxu0 0
    %1454 = vmatprep.subr.bf16.mxu0 0
    %1455 = vmatpush1.bf16.msra.mxu0 0
    %1456 = vmatprep.subr.bf16.mxu0 0
    %1457 = vmatpush1.bf16.msra.mxu0 0
    %1458 = vmatprep.subr.bf16.mxu0 0
    %1459 = vmatpush1.bf16.msra.mxu0 0
    %1460 = vmatprep.subr.bf16.mxu0 0
    %1461 = vmatpush1.bf16.msra.mxu0 0
    %1462 = vmatprep.subr.bf16.mxu0 0
    %1463 = vmatpush1.bf16.msra.mxu0 0
    %1464 = vmatprep.subr.bf16.mxu0 0
    %1465 = vmatpush1.bf16.msra.mxu0 0
    %1466 = vmatprep.subr.bf16.mxu0 0
    %1467 = vmatpush1.bf16.msra.mxu0 0
    %1468 = vmatprep.subr.bf16.mxu0 0
    %1469 = vmatpush1.bf16.msra.mxu0 0
    %1470 = vmatprep.mubr.bf16.mxu0 0
    %1471 = vmatmul.mubr.bf16.gmra.mrb[0].mxu0 %v1427
    %v1472 = vpop.f32.mrb[0].mxu0
    %v1473 = vadd.f32 0.0, %v1472
    %v1474 = vpop.f32.mrb[0].mxu0
    %v1475 = vpop.f32.mrb[0].mxu0
    %v1476 = vadd.f32 0.0, %v1475
    %v1477 = vpop.f32.mrb[0].mxu0
    %1478 = vmatprep.mubr.bf16.mxu0 0
    %1479 = vmatmul.mubr.bf16.gmra.mrb[0].mxu0 %v1430
    %v1480 = vpop.f32.mrb[0].mxu0
    %v1481 = vadd.f32 0.0, %v1480
    %v1482 = vpop.f32.mrb[0].mxu0
    %v1483 = vpop.f32.mrb[0].mxu0
    %v1484 = vadd.f32 0.0, %v1483
    %v1485 = vpop.f32.mrb[0].mxu0
    %1486 = vmatprep.mubr.bf16.mxu0 0
    %1487 = vmatmul.mubr.bf16.gmra.mrb[0].mxu0 %v1433
    %v1488 = vpop.f32.mrb[0].mxu0
    %v1489 = vadd.f32 0.0, %v1488
    %v1490 = vpop.f32.mrb[0].mxu0
    %v1491 = vpop.f32.mrb[0].mxu0
    %v1492 = vadd.f32 0.0, %v1491
    %v1493 = vpop.f32.mrb[0].mxu0
    %1494 = vmatprep.mubr.bf16.mxu0 0
    %1495 = vmatmul.mubr.bf16.gmra.mrb[0].mxu0 %v1436
    %v1496 = vpop.f32.mrb[0].mxu0
    %v1497 = vadd.f32 0.0, %v1496
    %v1498 = vpop.f32.mrb[0].mxu0
    %v1499 = vpop.f32.mrb[0].mxu0
    %v1500 = vadd.f32 0.0, %v1499
    %v1501 = vpop.f32.mrb[0].mxu0
    %1502 = vdwg.mxu0
    %1507 = vrot.lane.b32.xlu0 %v494, 112
    %v1508 = vpop.permute.xlu0 %1507
    %1509 = vrot.lane.b32.xlu0 %v495, 112
    %v1510 = vpop.permute.xlu0 %1509
    %1511 = vrot.lane.b32.xlu0 %v496, 112
    %v1512 = vpop.permute.xlu0 %1511
    %1513 = vrot.lane.b32.xlu0 %v497, 112
    %v1514 = vpop.permute.xlu0 %1513
    %v1520 = vsel %vm677, %v1406, 0
    %v1523 = vsel %vm677, %v1407, 0
    %v1526 = vsel %vm677, %v1408, 0
    %v1529 = vsel %vm677, %v1409, 0
    %1531 = vmatprep.subr.bf16.mxu0 0
    %1532 = vmatpush1.bf16.msra.mxu0 %v1508
    %1533 = vmatprep.subr.bf16.mxu0 0
    %1534 = vmatpush1.bf16.msra.mxu0 %v1510
    %1535 = vmatprep.subr.bf16.mxu0 0
    %1536 = vmatpush1.bf16.msra.mxu0 %v1512
    %1537 = vmatprep.subr.bf16.mxu0 0
    %1538 = vmatpush1.bf16.msra.mxu0 %v1514
    %1539 = vmatprep.subr.bf16.mxu0 0
    %1540 = vmatpush1.bf16.msra.mxu0 0
    %1541 = vmatprep.subr.bf16.mxu0 0
    %1542 = vmatpush1.bf16.msra.mxu0 0
    %1543 = vmatprep.subr.bf16.mxu0 0
    %1544 = vmatpush1.bf16.msra.mxu0 0
    %1545 = vmatprep.subr.bf16.mxu0 0
    %1546 = vmatpush1.bf16.msra.mxu0 0
    %1547 = vmatprep.subr.bf16.mxu0 0
    %1548 = vmatpush1.bf16.msra.mxu0 0
    %1549 = vmatprep.subr.bf16.mxu0 0
    %1550 = vmatpush1.bf16.msra.mxu0 0
    %1551 = vmatprep.subr.bf16.mxu0 0
    %1552 = vmatpush1.bf16.msra.mxu0 0
    %1553 = vmatprep.subr.bf16.mxu0 0
    %1554 = vmatpush1.bf16.msra.mxu0 0
    %1555 = vmatprep.subr.bf16.mxu0 0
    %1556 = vmatpush1.bf16.msra.mxu0 0
    %1557 = vmatprep.subr.bf16.mxu0 0
    %1558 = vmatpush1.bf16.msra.mxu0 0
    %1559 = vmatprep.subr.bf16.mxu0 0
    %1560 = vmatpush1.bf16.msra.mxu0 0
    %1561 = vmatprep.subr.bf16.mxu0 0
    %1562 = vmatpush1.bf16.msra.mxu0 0
    %1563 = vmatprep.mubr.bf16.mxu0 0
    %1564 = vmatmul.mubr.bf16.gmra.mrb[0].mxu0 %v1520
    %v1565 = vpop.f32.mrb[0].mxu0
    %v1566 = vadd.f32 0.0, %v1565
    %v1567 = vpop.f32.mrb[0].mxu0
    %v1568 = vpop.f32.mrb[0].mxu0
    %v1569 = vadd.f32 0.0, %v1568
    %v1570 = vpop.f32.mrb[0].mxu0
    %1571 = vmatprep.mubr.bf16.mxu0 0
    %1572 = vmatmul.mubr.bf16.gmra.mrb[0].mxu0 %v1523
    %v1573 = vpop.f32.mrb[0].mxu0
    %v1574 = vadd.f32 0.0, %v1573
    %v1575 = vpop.f32.mrb[0].mxu0
    %v1576 = vpop.f32.mrb[0].mxu0
    %v1577 = vadd.f32 0.0, %v1576
    %v1578 = vpop.f32.mrb[0].mxu0
    %1579 = vmatprep.mubr.bf16.mxu0 0
    %1580 = vmatmul.mubr.bf16.gmra.mrb[0].mxu0 %v1526
    %v1581 = vpop.f32.mrb[0].mxu0
    %v1582 = vadd.f32 0.0, %v1581
    %v1583 = vpop.f32.mrb[0].mxu0
    %v1584 = vpop.f32.mrb[0].mxu0
    %v1585 = vadd.f32 0.0, %v1584
    %v1586 = vpop.f32.mrb[0].mxu0
    %1587 = vmatprep.mubr.bf16.mxu0 0
    %1588 = vmatmul.mubr.bf16.gmra.mrb[0].mxu0 %v1529
    %v1589 = vpop.f32.mrb[0].mxu0
    %v1590 = vadd.f32 0.0, %v1589
    %v1591 = vpop.f32.mrb[0].mxu0
    %v1592 = vpop.f32.mrb[0].mxu0
    %v1593 = vadd.f32 0.0, %v1592
    %v1594 = vpop.f32.mrb[0].mxu0
    %1595 = vdwg.mxu0
    %v1596 = vrcp.pop %v1356
    %v1597 = vrcp.pop %v1359
    %v1598 = vrcp.pop %v1362
    %v1599 = vrcp.pop %v1365
    %v1600 = vrcp.pop %v1368
    %v1601 = vrcp.pop %v1371
    %v1602 = vrcp.pop %v1374
    %v1603 = vrcp.pop %v1377
    %v1604 = vrcp.pop %v1380
    %v1605 = vrcp.pop %v1383
    %v1606 = vrcp.pop %v1386
    %v1607 = vrcp.pop %v1389
    %v1608 = vrcp.pop %v1392
    %v1609 = vrcp.pop %v1395
    %v1610 = vrcp.pop %v1398
    %v1611 = vrcp.pop %v1401
    %v1612 = vmul.f32 %v1473, %v1596
    %v1613 = vmul.f32 %v1476, %v1597
    %v1614 = vmul.f32 %v1481, %v1598
    %v1615 = vmul.f32 %v1484, %v1599
    %v1616 = vmul.f32 %v1489, %v1600
    %v1617 = vmul.f32 %v1492, %v1601
    %v1618 = vmul.f32 %v1497, %v1602
    %v1619 = vmul.f32 %v1500, %v1603
    %v1620 = vmul.f32 %v1566, %v1604
    %v1621 = vmul.f32 %v1569, %v1605
    %v1622 = vmul.f32 %v1574, %v1606
    %v1623 = vmul.f32 %v1577, %v1607
    %v1624 = vmul.f32 %v1582, %v1608
    %v1625 = vmul.f32 %v1585, %v1609
    %v1626 = vmul.f32 %v1590, %v1610
    %v1627 = vmul.f32 %v1593, %v1611
    %1644 = vrot.lane.b32.xlu0 %v1612, 16
    %v1645 = vpop.permute.xlu0 %1644
    %1646 = vrot.lane.b32.xlu0 %v1613, 16
    %v1647 = vpop.permute.xlu0 %1646
    %1648 = vrot.lane.b32.xlu0 %v1614, 16
    %v1649 = vpop.permute.xlu0 %1648
    %1650 = vrot.lane.b32.xlu0 %v1615, 16
    %v1651 = vpop.permute.xlu0 %1650
    %1652 = vrot.lane.b32.xlu0 %v1616, 16
    %v1653 = vpop.permute.xlu0 %1652
    %1654 = vrot.lane.b32.xlu0 %v1617, 16
    %v1655 = vpop.permute.xlu0 %1654
    %1656 = vrot.lane.b32.xlu0 %v1618, 16
    %v1657 = vpop.permute.xlu0 %1656
    %1658 = vrot.lane.b32.xlu0 %v1619, 16
    %v1659 = vpop.permute.xlu0 %1658
    %1660 = vrot.lane.b32.xlu0 %v1620, 16
    %v1661 = vpop.permute.xlu0 %1660
    %1662 = vrot.lane.b32.xlu0 %v1621, 16
    %v1663 = vpop.permute.xlu0 %1662
    %1664 = vrot.lane.b32.xlu0 %v1622, 16
    %v1665 = vpop.permute.xlu0 %1664
    %1666 = vrot.lane.b32.xlu0 %v1623, 16
    %v1667 = vpop.permute.xlu0 %1666
    %1668 = vrot.lane.b32.xlu0 %v1624, 16
    %v1669 = vpop.permute.xlu0 %1668
    %1670 = vrot.lane.b32.xlu0 %v1625, 16
    %v1671 = vpop.permute.xlu0 %1670
    %1672 = vrot.lane.b32.xlu0 %v1626, 16
    %v1673 = vpop.permute.xlu0 %1672
    %1674 = vrot.lane.b32.xlu0 %v1627, 16
    %v1675 = vpop.permute.xlu0 %1674
    %vm1692 = vcmask 261248
    %1693 = vst.msk [vmem:[#allocation2] sm:$0xff] %vm1692, %v1645
    %1694 = vst.msk [vmem:[#allocation2 + $0x8] sm:$0xff] %vm1692, %v1647
    %1695 = vst.msk [vmem:[#allocation2 + $0x10] sm:$0xff] %vm1692, %v1649
    %1696 = vst.msk [vmem:[#allocation2 + $0x18] sm:$0xff] %vm1692, %v1651
    %1697 = vst.msk [vmem:[#allocation2 + $0x20] sm:$0xff] %vm1692, %v1653
    %1698 = vst.msk [vmem:[#allocation2 + $0x28] sm:$0xff] %vm1692, %v1655
    %1699 = vst.msk [vmem:[#allocation2 + $0x30] sm:$0xff] %vm1692, %v1657
    %1700 = vst.msk [vmem:[#allocation2 + $0x38] sm:$0xff] %vm1692, %v1659
    %1701 = vst.msk [vmem:[#allocation2 + $0x40] sm:$0xff] %vm1692, %v1661
    %1702 = vst.msk [vmem:[#allocation2 + $0x48] sm:$0xff] %vm1692, %v1663
    %1703 = vst.msk [vmem:[#allocation2 + $0x50] sm:$0xff] %vm1692, %v1665
    %1704 = vst.msk [vmem:[#allocation2 + $0x58] sm:$0xff] %vm1692, %v1667
    %1705 = vst.msk [vmem:[#allocation2 + $0x60] sm:$0xff] %vm1692, %v1669
    %1706 = vst.msk [vmem:[#allocation2 + $0x68] sm:$0xff] %vm1692, %v1671
    %1707 = vst.msk [vmem:[#allocation2 + $0x70] sm:$0xff] %vm1692, %v1673
    %1708 = vst.msk [vmem:[#allocation2 + $0x78] sm:$0xff] %vm1692, %v1675
    %1709 = vrot.lane.b32.xlu0 %v474, 96
    %v1710 = vpop.permute.xlu0 %1709
    %1711 = vrot.lane.b32.xlu0 %v475, 96
    %v1712 = vpop.permute.xlu0 %1711
    %1713 = vrot.lane.b32.xlu0 %v476, 96
    %v1714 = vpop.permute.xlu0 %1713
    %1715 = vrot.lane.b32.xlu0 %v477, 96
    %v1716 = vpop.permute.xlu0 %1715
    %1717 = vrot.lane.b32.xlu0 %v482, 96
    %v1718 = vpop.permute.xlu0 %1717
    %1719 = vrot.lane.b32.xlu0 %v483, 96
    %v1720 = vpop.permute.xlu0 %1719
    %1721 = vrot.lane.b32.xlu0 %v484, 96
    %v1722 = vpop.permute.xlu0 %1721
    %1723 = vrot.lane.b32.xlu0 %v485, 96
    %v1724 = vpop.permute.xlu0 %1723
    %v1726 = vsel %vm498, %v1710, 0
    %v1729 = vsel %vm498, %v1712, 0
    %v1732 = vsel %vm498, %v1714, 0
    %v1735 = vsel %vm498, %v1716, 0
    %v1738 = vsel %vm498, %v1718, 0
    %v1741 = vsel %vm498, %v1720, 0
    %v1744 = vsel %vm498, %v1722, 0
    %v1747 = vsel %vm498, %v1724, 0
    %1749 = vmatprep.subr.bf16.mxu0 0
    %1750 = vmatpush1.bf16.xpose.msra.mxu0 %v1738
    %1751 = vmatprep.subr.bf16.mxu0 0
    %1752 = vmatpush1.bf16.xpose.msra.mxu0 %v1741
    %1753 = vmatprep.subr.bf16.mxu0 0
    %1754 = vmatpush1.bf16.xpose.msra.mxu0 %v1744
    %1755 = vmatprep.subr.bf16.mxu0 0
    %1756 = vmatpush1.bf16.xpose.msra.mxu0 %v1747
    %1757 = vmatprep.subr.bf16.mxu0 0
    %1758 = vmatpush1.bf16.xpose.msra.mxu0 0
    %1759 = vmatprep.subr.bf16.mxu0 0
    %1760 = vmatpush1.bf16.xpose.msra.mxu0 0
    %1761 = vmatprep.subr.bf16.mxu0 0
    %1762 = vmatpush1.bf16.xpose.msra.mxu0 0
    %1763 = vmatprep.subr.bf16.mxu0 0
    %1764 = vmatpush1.bf16.xpose.msra.mxu0 0
    %1765 = vmatprep.subr.bf16.mxu0 0
    %1766 = vmatpush1.bf16.xpose.msra.mxu0 0
    %1767 = vmatprep.subr.bf16.mxu0 0
    %1768 = vmatpush1.bf16.xpose.msra.mxu0 0
    %1769 = vmatprep.subr.bf16.mxu0 0
    %1770 = vmatpush1.bf16.xpose.msra.mxu0 0
    %1771 = vmatprep.subr.bf16.mxu0 0
    %1772 = vmatpush1.bf16.xpose.msra.mxu0 0
    %1773 = vmatprep.subr.bf16.mxu0 0
    %1774 = vmatpush1.bf16.xpose.msra.mxu0 0
    %1775 = vmatprep.subr.bf16.mxu0 0
    %1776 = vmatpush1.bf16.xpose.msra.mxu0 0
    %1777 = vmatprep.subr.bf16.mxu0 0
    %1778 = vmatpush1.bf16.xpose.msra.mxu0 0
    %1779 = vmatprep.subr.bf16.mxu0 0
    %1780 = vmatpush1.bf16.xpose.msra.mxu0 0
    %1781 = vmatprep.mubr.bf16.mxu0 0
    %1782 = vmatmul.mubr.bf16.gmra.mrb[0].mxu0 %v1726
    %v1783 = vpop.f32.mrb[0].mxu0
    %v1784 = vadd.f32 0.0, %v1783
    %v1785 = vpop.f32.mrb[0].mxu0
    %v1786 = vpop.f32.mrb[0].mxu0
    %v1787 = vadd.f32 0.0, %v1786
    %v1788 = vpop.f32.mrb[0].mxu0
    %1789 = vmatprep.mubr.bf16.mxu0 0
    %1790 = vmatmul.mubr.bf16.gmra.mrb[0].mxu0 %v1729
    %v1791 = vpop.f32.mrb[0].mxu0
    %v1792 = vadd.f32 0.0, %v1791
    %v1793 = vpop.f32.mrb[0].mxu0
    %v1794 = vpop.f32.mrb[0].mxu0
    %v1795 = vadd.f32 0.0, %v1794
    %v1796 = vpop.f32.mrb[0].mxu0
    %1797 = vmatprep.mubr.bf16.mxu0 0
    %1798 = vmatmul.mubr.bf16.gmra.mrb[0].mxu0 %v1732
    %v1799 = vpop.f32.mrb[0].mxu0
    %v1800 = vadd.f32 0.0, %v1799
    %v1801 = vpop.f32.mrb[0].mxu0
    %v1802 = vpop.f32.mrb[0].mxu0
    %v1803 = vadd.f32 0.0, %v1802
    %v1804 = vpop.f32.mrb[0].mxu0
    %1805 = vmatprep.mubr.bf16.mxu0 0
    %1806 = vmatmul.mubr.bf16.gmra.mrb[0].mxu0 %v1735
    %v1807 = vpop.f32.mrb[0].mxu0
    %v1808 = vadd.f32 0.0, %v1807
    %v1809 = vpop.f32.mrb[0].mxu0
    %v1810 = vpop.f32.mrb[0].mxu0
    %v1811 = vadd.f32 0.0, %v1810
    %v1812 = vpop.f32.mrb[0].mxu0
    %1813 = vdwg.mxu0
    %1814 = vrot.lane.b32.xlu0 %v478, 96
    %v1815 = vpop.permute.xlu0 %1814
    %1816 = vrot.lane.b32.xlu0 %v479, 96
    %v1817 = vpop.permute.xlu0 %1816
    %1818 = vrot.lane.b32.xlu0 %v480, 96
    %v1819 = vpop.permute.xlu0 %1818
    %1820 = vrot.lane.b32.xlu0 %v481, 96
    %v1821 = vpop.permute.xlu0 %1820
    %1822 = vrot.lane.b32.xlu0 %v486, 96
    %v1823 = vpop.permute.xlu0 %1822
    %1824 = vrot.lane.b32.xlu0 %v487, 96
    %v1825 = vpop.permute.xlu0 %1824
    %1826 = vrot.lane.b32.xlu0 %v488, 96
    %v1827 = vpop.permute.xlu0 %1826
    %1828 = vrot.lane.b32.xlu0 %v489, 96
    %v1829 = vpop.permute.xlu0 %1828
    %v1831 = vsel %vm498, %v1815, 0
    %v1834 = vsel %vm498, %v1817, 0
    %v1837 = vsel %vm498, %v1819, 0
    %v1840 = vsel %vm498, %v1821, 0
    %v1843 = vsel %vm498, %v1823, 0
    %v1846 = vsel %vm498, %v1825, 0
    %v1849 = vsel %vm498, %v1827, 0
    %v1852 = vsel %vm498, %v1829, 0
    %1854 = vmatprep.subr.bf16.mxu0 0
    %1855 = vmatpush1.bf16.xpose.msra.mxu0 %v1843
    %1856 = vmatprep.subr.bf16.mxu0 0
    %1857 = vmatpush1.bf16.xpose.msra.mxu0 %v1846
    %1858 = vmatprep.subr.bf16.mxu0 0
    %1859 = vmatpush1.bf16.xpose.msra.mxu0 %v1849
    %1860 = vmatprep.subr.bf16.mxu0 0
    %1861 = vmatpush1.bf16.xpose.msra.mxu0 %v1852
    %1862 = vmatprep.subr.bf16.mxu0 0
    %1863 = vmatpush1.bf16.xpose.msra.mxu0 0
    %1864 = vmatprep.subr.bf16.mxu0 0
    %1865 = vmatpush1.bf16.xpose.msra.mxu0 0
    %1866 = vmatprep.subr.bf16.mxu0 0
    %1867 = vmatpush1.bf16.xpose.msra.mxu0 0
    %1868 = vmatprep.subr.bf16.mxu0 0
    %1869 = vmatpush1.bf16.xpose.msra.mxu0 0
    %1870 = vmatprep.subr.bf16.mxu0 0
    %1871 = vmatpush1.bf16.xpose.msra.mxu0 0
    %1872 = vmatprep.subr.bf16.mxu0 0
    %1873 = vmatpush1.bf16.xpose.msra.mxu0 0
    %1874 = vmatprep.subr.bf16.mxu0 0
    %1875 = vmatpush1.bf16.xpose.msra.mxu0 0
    %1876 = vmatprep.subr.bf16.mxu0 0
    %1877 = vmatpush1.bf16.xpose.msra.mxu0 0
    %1878 = vmatprep.subr.bf16.mxu0 0
    %1879 = vmatpush1.bf16.xpose.msra.mxu0 0
    %1880 = vmatprep.subr.bf16.mxu0 0
    %1881 = vmatpush1.bf16.xpose.msra.mxu0 0
    %1882 = vmatprep.subr.bf16.mxu0 0
    %1883 = vmatpush1.bf16.xpose.msra.mxu0 0
    %1884 = vmatprep.subr.bf16.mxu0 0
    %1885 = vmatpush1.bf16.xpose.msra.mxu0 0
    %1886 = vmatprep.mubr.bf16.mxu0 0
    %1887 = vmatmul.mubr.bf16.gmra.mrb[0].mxu0 %v1831
    %v1888 = vpop.f32.mrb[0].mxu0
    %v1889 = vadd.f32 0.0, %v1888
    %v1890 = vpop.f32.mrb[0].mxu0
    %v1891 = vpop.f32.mrb[0].mxu0
    %v1892 = vadd.f32 0.0, %v1891
    %v1893 = vpop.f32.mrb[0].mxu0
    %1894 = vmatprep.mubr.bf16.mxu0 0
    %1895 = vmatmul.mubr.bf16.gmra.mrb[0].mxu0 %v1834
    %v1896 = vpop.f32.mrb[0].mxu0
    %v1897 = vadd.f32 0.0, %v1896
    %v1898 = vpop.f32.mrb[0].mxu0
    %v1899 = vpop.f32.mrb[0].mxu0
    %v1900 = vadd.f32 0.0, %v1899
    %v1901 = vpop.f32.mrb[0].mxu0
    %1902 = vmatprep.mubr.bf16.mxu0 0
    %1903 = vmatmul.mubr.bf16.gmra.mrb[0].mxu0 %v1837
    %v1904 = vpop.f32.mrb[0].mxu0
    %v1905 = vadd.f32 0.0, %v1904
    %v1906 = vpop.f32.mrb[0].mxu0
    %v1907 = vpop.f32.mrb[0].mxu0
    %v1908 = vadd.f32 0.0, %v1907
    %v1909 = vpop.f32.mrb[0].mxu0
    %1910 = vmatprep.mubr.bf16.mxu0 0
    %1911 = vmatmul.mubr.bf16.gmra.mrb[0].mxu0 %v1840
    %v1912 = vpop.f32.mrb[0].mxu0
    %v1913 = vadd.f32 0.0, %v1912
    %v1914 = vpop.f32.mrb[0].mxu0
    %v1915 = vpop.f32.mrb[0].mxu0
    %v1916 = vadd.f32 0.0, %v1915
    %v1917 = vpop.f32.mrb[0].mxu0
    %1918 = vdwg.mxu0
    %v1919 = vsel %vm677, %v1784, -inf
    %1920 = vmax.xlane.f32.xlu0 %v1919
    %v1921 = vpop.xlane.xlu0 %1920
    %v1922 = vsel %vm677, %v1787, -inf
    %1923 = vmax.xlane.f32.xlu0 %v1922
    %v1924 = vpop.xlane.xlu0 %1923
    %v1925 = vsel %vm677, %v1792, -inf
    %1926 = vmax.xlane.f32.xlu0 %v1925
    %v1927 = vpop.xlane.xlu0 %1926
    %v1928 = vsel %vm677, %v1795, -inf
    %1929 = vmax.xlane.f32.xlu0 %v1928
    %v1930 = vpop.xlane.xlu0 %1929
    %v1931 = vsel %vm677, %v1800, -inf
    %1932 = vmax.xlane.f32.xlu0 %v1931
    %v1933 = vpop.xlane.xlu0 %1932
    %v1934 = vsel %vm677, %v1803, -inf
    %1935 = vmax.xlane.f32.xlu0 %v1934
    %v1936 = vpop.xlane.xlu0 %1935
    %v1937 = vsel %vm677, %v1808, -inf
    %1938 = vmax.xlane.f32.xlu0 %v1937
    %v1939 = vpop.xlane.xlu0 %1938
    %v1940 = vsel %vm677, %v1811, -inf
    %1941 = vmax.xlane.f32.xlu0 %v1940
    %v1942 = vpop.xlane.xlu0 %1941
    %v1943 = vsel %vm677, %v1889, -inf
    %1944 = vmax.xlane.f32.xlu0 %v1943
    %v1945 = vpop.xlane.xlu0 %1944
    %v1946 = vsel %vm677, %v1892, -inf
    %1947 = vmax.xlane.f32.xlu0 %v1946
    %v1948 = vpop.xlane.xlu0 %1947
    %v1949 = vsel %vm677, %v1897, -inf
    %1950 = vmax.xlane.f32.xlu0 %v1949
    %v1951 = vpop.xlane.xlu0 %1950
    %v1952 = vsel %vm677, %v1900, -inf
    %1953 = vmax.xlane.f32.xlu0 %v1952
    %v1954 = vpop.xlane.xlu0 %1953
    %v1955 = vsel %vm677, %v1905, -inf
    %1956 = vmax.xlane.f32.xlu0 %v1955
    %v1957 = vpop.xlane.xlu0 %1956
    %v1958 = vsel %vm677, %v1908, -inf
    %1959 = vmax.xlane.f32.xlu0 %v1958
    %v1960 = vpop.xlane.xlu0 %1959
    %v1961 = vsel %vm677, %v1913, -inf
    %1962 = vmax.xlane.f32.xlu0 %v1961
    %v1963 = vpop.xlane.xlu0 %1962
    %v1964 = vsel %vm677, %v1916, -inf
    %1965 = vmax.xlane.f32.xlu0 %v1964
    %v1966 = vpop.xlane.xlu0 %1965
    %v1967 = vsub.f32 %v1784, %v1921
    %v1968 = vsub.f32 %v1787, %v1924
    %v1969 = vsub.f32 %v1792, %v1927
    %v1970 = vsub.f32 %v1795, %v1930
    %v1971 = vsub.f32 %v1800, %v1933
    %v1972 = vsub.f32 %v1803, %v1936
    %v1973 = vsub.f32 %v1808, %v1939
    %v1974 = vsub.f32 %v1811, %v1942
    %v1975 = vsub.f32 %v1889, %v1945
    %v1976 = vsub.f32 %v1892, %v1948
    %v1977 = vsub.f32 %v1897, %v1951
    %v1978 = vsub.f32 %v1900, %v1954
    %v1979 = vsub.f32 %v1905, %v1957
    %v1980 = vsub.f32 %v1908, %v1960
    %v1981 = vsub.f32 %v1913, %v1963
    %v1982 = vsub.f32 %v1916, %v1966
    %v1983 = vmul.f32 %v1967, 1.442695
    %v1984 = vpow.pop %v1983
    %v1985 = vmul.f32 %v1968, 1.442695
    %v1986 = vpow.pop %v1985
    %v1987 = vmul.f32 %v1969, 1.442695
    %v1988 = vpow.pop %v1987
    %v1989 = vmul.f32 %v1970, 1.442695
    %v1990 = vpow.pop %v1989
    %v1991 = vmul.f32 %v1971, 1.442695
    %v1992 = vpow.pop %v1991
    %v1993 = vmul.f32 %v1972, 1.442695
    %v1994 = vpow.pop %v1993
    %v1995 = vmul.f32 %v1973, 1.442695
    %v1996 = vpow.pop %v1995
    %v1997 = vmul.f32 %v1974, 1.442695
    %v1998 = vpow.pop %v1997
    %v1999 = vmul.f32 %v1975, 1.442695
    %v2000 = vpow.pop %v1999
    %v2001 = vmul.f32 %v1976, 1.442695
    %v2002 = vpow.pop %v2001
    %v2003 = vmul.f32 %v1977, 1.442695
    %v2004 = vpow.pop %v2003
    %v2005 = vmul.f32 %v1978, 1.442695
    %v2006 = vpow.pop %v2005
    %v2007 = vmul.f32 %v1979, 1.442695
    %v2008 = vpow.pop %v2007
    %v2009 = vmul.f32 %v1980, 1.442695
    %v2010 = vpow.pop %v2009
    %v2011 = vmul.f32 %v1981, 1.442695
    %v2012 = vpow.pop %v2011
    %v2013 = vmul.f32 %v1982, 1.442695
    %v2014 = vpow.pop %v2013
    %v2015 = vsel %vm677, %v1984, 0.0
    %2016 = vadd.xlane.f32.xlu0 %v2015
    %v2017 = vpop.xlane.xlu0 %2016
    %v2018 = vsel %vm677, %v1986, 0.0
    %2019 = vadd.xlane.f32.xlu0 %v2018
    %v2020 = vpop.xlane.xlu0 %2019
    %v2021 = vsel %vm677, %v1988, 0.0
    %2022 = vadd.xlane.f32.xlu0 %v2021
    %v2023 = vpop.xlane.xlu0 %2022
    %v2024 = vsel %vm677, %v1990, 0.0
    %2025 = vadd.xlane.f32.xlu0 %v2024
    %v2026 = vpop.xlane.xlu0 %2025
    %v2027 = vsel %vm677, %v1992, 0.0
    %2028 = vadd.xlane.f32.xlu0 %v2027
    %v2029 = vpop.xlane.xlu0 %2028
    %v2030 = vsel %vm677, %v1994, 0.0
    %2031 = vadd.xlane.f32.xlu0 %v2030
    %v2032 = vpop.xlane.xlu0 %2031
    %v2033 = vsel %vm677, %v1996, 0.0
    %2034 = vadd.xlane.f32.xlu0 %v2033
    %v2035 = vpop.xlane.xlu0 %2034
    %v2036 = vsel %vm677, %v1998, 0.0
    %2037 = vadd.xlane.f32.xlu0 %v2036
    %v2038 = vpop.xlane.xlu0 %2037
    %v2039 = vsel %vm677, %v2000, 0.0
    %2040 = vadd.xlane.f32.xlu0 %v2039
    %v2041 = vpop.xlane.xlu0 %2040
    %v2042 = vsel %vm677, %v2002, 0.0
    %2043 = vadd.xlane.f32.xlu0 %v2042
    %v2044 = vpop.xlane.xlu0 %2043
    %v2045 = vsel %vm677, %v2004, 0.0
    %2046 = vadd.xlane.f32.xlu0 %v2045
    %v2047 = vpop.xlane.xlu0 %2046
    %v2048 = vsel %vm677, %v2006, 0.0
    %2049 = vadd.xlane.f32.xlu0 %v2048
    %v2050 = vpop.xlane.xlu0 %2049
    %v2051 = vsel %vm677, %v2008, 0.0
    %2052 = vadd.xlane.f32.xlu0 %v2051
    %v2053 = vpop.xlane.xlu0 %2052
    %v2054 = vsel %vm677, %v2010, 0.0
    %2055 = vadd.xlane.f32.xlu0 %v2054
    %v2056 = vpop.xlane.xlu0 %2055
    %v2057 = vsel %vm677, %v2012, 0.0
    %2058 = vadd.xlane.f32.xlu0 %v2057
    %v2059 = vpop.xlane.xlu0 %2058
    %v2060 = vsel %vm677, %v2014, 0.0
    %2061 = vadd.xlane.f32.xlu0 %v2060
    %v2062 = vpop.xlane.xlu0 %2061
    %v2063 = vpack.c.bf16 %v1986, %v1984
    %v2064 = vpack.c.bf16 %v1990, %v1988
    %v2065 = vpack.c.bf16 %v1994, %v1992
    %v2066 = vpack.c.bf16 %v1998, %v1996
    %v2067 = vpack.c.bf16 %v2002, %v2000
    %v2068 = vpack.c.bf16 %v2006, %v2004
    %v2069 = vpack.c.bf16 %v2010, %v2008
    %v2070 = vpack.c.bf16 %v2014, %v2012
    %2071 = vrot.lane.b32.xlu0 %v490, 96
    %v2072 = vpop.permute.xlu0 %2071
    %2073 = vrot.lane.b32.xlu0 %v491, 96
    %v2074 = vpop.permute.xlu0 %2073
    %2075 = vrot.lane.b32.xlu0 %v492, 96
    %v2076 = vpop.permute.xlu0 %2075
    %2077 = vrot.lane.b32.xlu0 %v493, 96
    %v2078 = vpop.permute.xlu0 %2077
    %v2084 = vsel %vm677, %v2063, 0
    %v2087 = vsel %vm677, %v2064, 0
    %v2090 = vsel %vm677, %v2065, 0
    %v2093 = vsel %vm677, %v2066, 0
    %2095 = vmatprep.subr.bf16.mxu0 0
    %2096 = vmatpush1.bf16.msra.mxu0 %v2072
    %2097 = vmatprep.subr.bf16.mxu0 0
    %2098 = vmatpush1.bf16.msra.mxu0 %v2074
    %2099 = vmatprep.subr.bf16.mxu0 0
    %2100 = vmatpush1.bf16.msra.mxu0 %v2076
    %2101 = vmatprep.subr.bf16.mxu0 0
    %2102 = vmatpush1.bf16.msra.mxu0 %v2078
    %2103 = vmatprep.subr.bf16.mxu0 0
    %2104 = vmatpush1.bf16.msra.mxu0 0
    %2105 = vmatprep.subr.bf16.mxu0 0
    %2106 = vmatpush1.bf16.msra.mxu0 0
    %2107 = vmatprep.subr.bf16.mxu0 0
    %2108 = vmatpush1.bf16.msra.mxu0 0
    %2109 = vmatprep.subr.bf16.mxu0 0
    %2110 = vmatpush1.bf16.msra.mxu0 0
    %2111 = vmatprep.subr.bf16.mxu0 0
    %2112 = vmatpush1.bf16.msra.mxu0 0
    %2113 = vmatprep.subr.bf16.mxu0 0
    %2114 = vmatpush1.bf16.msra.mxu0 0
    %2115 = vmatprep.subr.bf16.mxu0 0
    %2116 = vmatpush1.bf16.msra.mxu0 0
    %2117 = vmatprep.subr.bf16.mxu0 0
    %2118 = vmatpush1.bf16.msra.mxu0 0
    %2119 = vmatprep.subr.bf16.mxu0 0
    %2120 = vmatpush1.bf16.msra.mxu0 0
    %2121 = vmatprep.subr.bf16.mxu0 0
    %2122 = vmatpush1.bf16.msra.mxu0 0
    %2123 = vmatprep.subr.bf16.mxu0 0
    %2124 = vmatpush1.bf16.msra.mxu0 0
    %2125 = vmatprep.subr.bf16.mxu0 0
    %2126 = vmatpush1.bf16.msra.mxu0 0
    %2127 = vmatprep.mubr.bf16.mxu0 0
    %2128 = vmatmul.mubr.bf16.gmra.mrb[0].mxu0 %v2084
    %v2129 = vpop.f32.mrb[0].mxu0
    %v2130 = vadd.f32 0.0, %v2129
    %v2131 = vpop.f32.mrb[0].mxu0
    %v2132 = vpop.f32.mrb[0].mxu0
    %v2133 = vadd.f32 0.0, %v2132
    %v2134 = vpop.f32.mrb[0].mxu0
    %2135 = vmatprep.mubr.bf16.mxu0 0
    %2136 = vmatmul.mubr.bf16.gmra.mrb[0].mxu0 %v2087
    %v2137 = vpop.f32.mrb[0].mxu0
    %v2138 = vadd.f32 0.0, %v2137
    %v2139 = vpop.f32.mrb[0].mxu0
    %v2140 = vpop.f32.mrb[0].mxu0
    %v2141 = vadd.f32 0.0, %v2140
    %v2142 = vpop.f32.mrb[0].mxu0
    %2143 = vmatprep.mubr.bf16.mxu0 0
    %2144 = vmatmul.mubr.bf16.gmra.mrb[0].mxu0 %v2090
    %v2145 = vpop.f32.mrb[0].mxu0
    %v2146 = vadd.f32 0.0, %v2145
    %v2147 = vpop.f32.mrb[0].mxu0
    %v2148 = vpop.f32.mrb[0].mxu0
    %v2149 = vadd.f32 0.0, %v2148
    %v2150 = vpop.f32.mrb[0].mxu0
    %2151 = vmatprep.mubr.bf16.mxu0 0
    %2152 = vmatmul.mubr.bf16.gmra.mrb[0].mxu0 %v2093
    %v2153 = vpop.f32.mrb[0].mxu0
    %v2154 = vadd.f32 0.0, %v2153
    %v2155 = vpop.f32.mrb[0].mxu0
    %v2156 = vpop.f32.mrb[0].mxu0
    %v2157 = vadd.f32 0.0, %v2156
    %v2158 = vpop.f32.mrb[0].mxu0
    %2159 = vdwg.mxu0
    %2160 = vrot.lane.b32.xlu0 %v494, 96
    %v2161 = vpop.permute.xlu0 %2160
    %2162 = vrot.lane.b32.xlu0 %v495, 96
    %v2163 = vpop.permute.xlu0 %2162
    %2164 = vrot.lane.b32.xlu0 %v496, 96
    %v2165 = vpop.permute.xlu0 %2164
    %2166 = vrot.lane.b32.xlu0 %v497, 96
    %v2167 = vpop.permute.xlu0 %2166
    %v2173 = vsel %vm677, %v2067, 0
    %v2176 = vsel %vm677, %v2068, 0
    %v2179 = vsel %vm677, %v2069, 0
    %v2182 = vsel %vm677, %v2070, 0
    %2184 = vmatprep.subr.bf16.mxu0 0
    %2185 = vmatpush1.bf16.msra.mxu0 %v2161
    %2186 = vmatprep.subr.bf16.mxu0 0
    %2187 = vmatpush1.bf16.msra.mxu0 %v2163
    %2188 = vmatprep.subr.bf16.mxu0 0
    %2189 = vmatpush1.bf16.msra.mxu0 %v2165
    %2190 = vmatprep.subr.bf16.mxu0 0
    %2191 = vmatpush1.bf16.msra.mxu0 %v2167
    %2192 = vmatprep.subr.bf16.mxu0 0
    %2193 = vmatpush1.bf16.msra.mxu0 0
    %2194 = vmatprep.subr.bf16.mxu0 0
    %2195 = vmatpush1.bf16.msra.mxu0 0
    %2196 = vmatprep.subr.bf16.mxu0 0
    %2197 = vmatpush1.bf16.msra.mxu0 0
    %2198 = vmatprep.subr.bf16.mxu0 0
    %2199 = vmatpush1.bf16.msra.mxu0 0
    %2200 = vmatprep.subr.bf16.mxu0 0
    %2201 = vmatpush1.bf16.msra.mxu0 0
    %2202 = vmatprep.subr.bf16.mxu0 0
    %2203 = vmatpush1.bf16.msra.mxu0 0
    %2204 = vmatprep.subr.bf16.mxu0 0
    %2205 = vmatpush1.bf16.msra.mxu0 0
    %2206 = vmatprep.subr.bf16.mxu0 0
    %2207 = vmatpush1.bf16.msra.mxu0 0
    %2208 = vmatprep.subr.bf16.mxu0 0
    %2209 = vmatpush1.bf16.msra.mxu0 0
    %2210 = vmatprep.subr.bf16.mxu0 0
    %2211 = vmatpush1.bf16.msra.mxu0 0
    %2212 = vmatprep.subr.bf16.mxu0 0
    %2213 = vmatpush1.bf16.msra.mxu0 0
    %2214 = vmatprep.subr.bf16.mxu0 0
    %2215 = vmatpush1.bf16.msra.mxu0 0
    %2216 = vmatprep.mubr.bf16.mxu0 0
    %2217 = vmatmul.mubr.bf16.gmra.mrb[0].mxu0 %v2173
    %v2218 = vpop.f32.mrb[0].mxu0
    %v2219 = vadd.f32 0.0, %v2218
    %v2220 = vpop.f32.mrb[0].mxu0
    %v2221 = vpop.f32.mrb[0].mxu0
    %v2222 = vadd.f32 0.0, %v2221
    %v2223 = vpop.f32.mrb[0].mxu0
    %2224 = vmatprep.mubr.bf16.mxu0 0
    %2225 = vmatmul.mubr.bf16.gmra.mrb[0].mxu0 %v2176
    %v2226 = vpop.f32.mrb[0].mxu0
    %v2227 = vadd.f32 0.0, %v2226
    %v2228 = vpop.f32.mrb[0].mxu0
    %v2229 = vpop.f32.mrb[0].mxu0
    %v2230 = vadd.f32 0.0, %v2229
    %v2231 = vpop.f32.mrb[0].mxu0
    %2232 = vmatprep.mubr.bf16.mxu0 0
    %2233 = vmatmul.mubr.bf16.gmra.mrb[0].mxu0 %v2179
    %v2234 = vpop.f32.mrb[0].mxu0
    %v2235 = vadd.f32 0.0, %v2234
    %v2236 = vpop.f32.mrb[0].mxu0
    %v2237 = vpop.f32.mrb[0].mxu0
    %v2238 = vadd.f32 0.0, %v2237
    %v2239 = vpop.f32.mrb[0].mxu0
    %2240 = vmatprep.mubr.bf16.mxu0 0
    %2241 = vmatmul.mubr.bf16.gmra.mrb[0].mxu0 %v2182
    %v2242 = vpop.f32.mrb[0].mxu0
    %v2243 = vadd.f32 0.0, %v2242
    %v2244 = vpop.f32.mrb[0].mxu0
    %v2245 = vpop.f32.mrb[0].mxu0
    %v2246 = vadd.f32 0.0, %v2245
    %v2247 = vpop.f32.mrb[0].mxu0
    %2248 = vdwg.mxu0
    %v2249 = vrcp.pop %v2017
    %v2250 = vrcp.pop %v2020
    %v2251 = vrcp.pop %v2023
    %v2252 = vrcp.pop %v2026
    %v2253 = vrcp.pop %v2029
    %v2254 = vrcp.pop %v2032
    %v2255 = vrcp.pop %v2035
    %v2256 = vrcp.pop %v2038
    %v2257 = vrcp.pop %v2041
    %v2258 = vrcp.pop %v2044
    %v2259 = vrcp.pop %v2047
    %v2260 = vrcp.pop %v2050
    %v2261 = vrcp.pop %v2053
    %v2262 = vrcp.pop %v2056
    %v2263 = vrcp.pop %v2059
    %v2264 = vrcp.pop %v2062
    %v2265 = vmul.f32 %v2130, %v2249
    %v2266 = vmul.f32 %v2133, %v2250
    %v2267 = vmul.f32 %v2138, %v2251
    %v2268 = vmul.f32 %v2141, %v2252
    %v2269 = vmul.f32 %v2146, %v2253
    %v2270 = vmul.f32 %v2149, %v2254
    %v2271 = vmul.f32 %v2154, %v2255
    %v2272 = vmul.f32 %v2157, %v2256
    %v2273 = vmul.f32 %v2219, %v2257
    %v2274 = vmul.f32 %v2222, %v2258
    %v2275 = vmul.f32 %v2227, %v2259
    %v2276 = vmul.f32 %v2230, %v2260
    %v2277 = vmul.f32 %v2235, %v2261
    %v2278 = vmul.f32 %v2238, %v2262
    %v2279 = vmul.f32 %v2243, %v2263
    %v2280 = vmul.f32 %v2246, %v2264
    %2297 = vrot.lane.b32.xlu0 %v2265, 32
    %v2298 = vpop.permute.xlu0 %2297
    %2299 = vrot.lane.b32.xlu0 %v2266, 32
    %v2300 = vpop.permute.xlu0 %2299
    %2301 = vrot.lane.b32.xlu0 %v2267, 32
    %v2302 = vpop.permute.xlu0 %2301
    %2303 = vrot.lane.b32.xlu0 %v2268, 32
    %v2304 = vpop.permute.xlu0 %2303
    %2305 = vrot.lane.b32.xlu0 %v2269, 32
    %v2306 = vpop.permute.xlu0 %2305
    %2307 = vrot.lane.b32.xlu0 %v2270, 32
    %v2308 = vpop.permute.xlu0 %2307
    %2309 = vrot.lane.b32.xlu0 %v2271, 32
    %v2310 = vpop.permute.xlu0 %2309
    %2311 = vrot.lane.b32.xlu0 %v2272, 32
    %v2312 = vpop.permute.xlu0 %2311
    %2313 = vrot.lane.b32.xlu0 %v2273, 32
    %v2314 = vpop.permute.xlu0 %2313
    %2315 = vrot.lane.b32.xlu0 %v2274, 32
    %v2316 = vpop.permute.xlu0 %2315
    %2317 = vrot.lane.b32.xlu0 %v2275, 32
    %v2318 = vpop.permute.xlu0 %2317
    %2319 = vrot.lane.b32.xlu0 %v2276, 32
    %v2320 = vpop.permute.xlu0 %2319
    %2321 = vrot.lane.b32.xlu0 %v2277, 32
    %v2322 = vpop.permute.xlu0 %2321
    %2323 = vrot.lane.b32.xlu0 %v2278, 32
    %v2324 = vpop.permute.xlu0 %2323
    %2325 = vrot.lane.b32.xlu0 %v2279, 32
    %v2326 = vpop.permute.xlu0 %2325
    %2327 = vrot.lane.b32.xlu0 %v2280, 32
    %v2328 = vpop.permute.xlu0 %2327
    %vm2345 = vcmask 392448
    %2346 = vst.msk [vmem:[#allocation2] sm:$0xff] %vm2345, %v2298
    %2347 = vst.msk [vmem:[#allocation2 + $0x8] sm:$0xff] %vm2345, %v2300
    %2348 = vst.msk [vmem:[#allocation2 + $0x10] sm:$0xff] %vm2345, %v2302
    %2349 = vst.msk [vmem:[#allocation2 + $0x18] sm:$0xff] %vm2345, %v2304
    %2350 = vst.msk [vmem:[#allocation2 + $0x20] sm:$0xff] %vm2345, %v2306
    %2351 = vst.msk [vmem:[#allocation2 + $0x28] sm:$0xff] %vm2345, %v2308
    %2352 = vst.msk [vmem:[#allocation2 + $0x30] sm:$0xff] %vm2345, %v2310
    %2353 = vst.msk [vmem:[#allocation2 + $0x38] sm:$0xff] %vm2345, %v2312
    %2354 = vst.msk [vmem:[#allocation2 + $0x40] sm:$0xff] %vm2345, %v2314
    %2355 = vst.msk [vmem:[#allocation2 + $0x48] sm:$0xff] %vm2345, %v2316
    %2356 = vst.msk [vmem:[#allocation2 + $0x50] sm:$0xff] %vm2345, %v2318
    %2357 = vst.msk [vmem:[#allocation2 + $0x58] sm:$0xff] %vm2345, %v2320
    %2358 = vst.msk [vmem:[#allocation2 + $0x60] sm:$0xff] %vm2345, %v2322
    %2359 = vst.msk [vmem:[#allocation2 + $0x68] sm:$0xff] %vm2345, %v2324
    %2360 = vst.msk [vmem:[#allocation2 + $0x70] sm:$0xff] %vm2345, %v2326
    %2361 = vst.msk [vmem:[#allocation2 + $0x78] sm:$0xff] %vm2345, %v2328
    %2362 = vrot.lane.b32.xlu0 %v474, 80
    %v2363 = vpop.permute.xlu0 %2362
    %2364 = vrot.lane.b32.xlu0 %v475, 80
    %v2365 = vpop.permute.xlu0 %2364
    %2366 = vrot.lane.b32.xlu0 %v476, 80
    %v2367 = vpop.permute.xlu0 %2366
    %2368 = vrot.lane.b32.xlu0 %v477, 80
    %v2369 = vpop.permute.xlu0 %2368
    %2370 = vrot.lane.b32.xlu0 %v482, 80
    %v2371 = vpop.permute.xlu0 %2370
    %2372 = vrot.lane.b32.xlu0 %v483, 80
    %v2373 = vpop.permute.xlu0 %2372
    %2374 = vrot.lane.b32.xlu0 %v484, 80
    %v2375 = vpop.permute.xlu0 %2374
    %2376 = vrot.lane.b32.xlu0 %v485, 80
    %v2377 = vpop.permute.xlu0 %2376
    %v2379 = vsel %vm498, %v2363, 0
    %v2382 = vsel %vm498, %v2365, 0
    %v2385 = vsel %vm498, %v2367, 0
    %v2388 = vsel %vm498, %v2369, 0
    %v2391 = vsel %vm498, %v2371, 0
    %v2394 = vsel %vm498, %v2373, 0
    %v2397 = vsel %vm498, %v2375, 0
    %v2400 = vsel %vm498, %v2377, 0
    %2402 = vmatprep.subr.bf16.mxu0 0
    %2403 = vmatpush1.bf16.xpose.msra.mxu0 %v2391
    %2404 = vmatprep.subr.bf16.mxu0 0
    %2405 = vmatpush1.bf16.xpose.msra.mxu0 %v2394
    %2406 = vmatprep.subr.bf16.mxu0 0
    %2407 = vmatpush1.bf16.xpose.msra.mxu0 %v2397
    %2408 = vmatprep.subr.bf16.mxu0 0
    %2409 = vmatpush1.bf16.xpose.msra.mxu0 %v2400
    %2410 = vmatprep.subr.bf16.mxu0 0
    %2411 = vmatpush1.bf16.xpose.msra.mxu0 0
    %2412 = vmatprep.subr.bf16.mxu0 0
    %2413 = vmatpush1.bf16.xpose.msra.mxu0 0
    %2414 = vmatprep.subr.bf16.mxu0 0
    %2415 = vmatpush1.bf16.xpose.msra.mxu0 0
    %2416 = vmatprep.subr.bf16.mxu0 0
    %2417 = vmatpush1.bf16.xpose.msra.mxu0 0
    %2418 = vmatprep.subr.bf16.mxu0 0
    %2419 = vmatpush1.bf16.xpose.msra.mxu0 0
    %2420 = vmatprep.subr.bf16.mxu0 0
    %2421 = vmatpush1.bf16.xpose.msra.mxu0 0
    %2422 = vmatprep.subr.bf16.mxu0 0
    %2423 = vmatpush1.bf16.xpose.msra.mxu0 0
    %2424 = vmatprep.subr.bf16.mxu0 0
    %2425 = vmatpush1.bf16.xpose.msra.mxu0 0
    %2426 = vmatprep.subr.bf16.mxu0 0
    %2427 = vmatpush1.bf16.xpose.msra.mxu0 0
    %2428 = vmatprep.subr.bf16.mxu0 0
    %2429 = vmatpush1.bf16.xpose.msra.mxu0 0
    %2430 = vmatprep.subr.bf16.mxu0 0
    %2431 = vmatpush1.bf16.xpose.msra.mxu0 0
    %2432 = vmatprep.subr.bf16.mxu0 0
    %2433 = vmatpush1.bf16.xpose.msra.mxu0 0
    %2434 = vmatprep.mubr.bf16.mxu0 0
    %2435 = vmatmul.mubr.bf16.gmra.mrb[0].mxu0 %v2379
    %v2436 = vpop.f32.mrb[0].mxu0
    %v2437 = vadd.f32 0.0, %v2436
    %v2438 = vpop.f32.mrb[0].mxu0
    %v2439 = vpop.f32.mrb[0].mxu0
    %v2440 = vadd.f32 0.0, %v2439
    %v2441 = vpop.f32.mrb[0].mxu0
    %2442 = vmatprep.mubr.bf16.mxu0 0
    %2443 = vmatmul.mubr.bf16.gmra.mrb[0].mxu0 %v2382
    %v2444 = vpop.f32.mrb[0].mxu0
    %v2445 = vadd.f32 0.0, %v2444
    %v2446 = vpop.f32.mrb[0].mxu0
    %v2447 = vpop.f32.mrb[0].mxu0
    %v2448 = vadd.f32 0.0, %v2447
    %v2449 = vpop.f32.mrb[0].mxu0
    %2450 = vmatprep.mubr.bf16.mxu0 0
    %2451 = vmatmul.mubr.bf16.gmra.mrb[0].mxu0 %v2385
    %v2452 = vpop.f32.mrb[0].mxu0
    %v2453 = vadd.f32 0.0, %v2452
    %v2454 = vpop.f32.mrb[0].mxu0
    %v2455 = vpop.f32.mrb[0].mxu0
    %v2456 = vadd.f32 0.0, %v2455
    %v2457 = vpop.f32.mrb[0].mxu0
    %2458 = vmatprep.mubr.bf16.mxu0 0
    %2459 = vmatmul.mubr.bf16.gmra.mrb[0].mxu0 %v2388
    %v2460 = vpop.f32.mrb[0].mxu0
    %v2461 = vadd.f32 0.0, %v2460
    %v2462 = vpop.f32.mrb[0].mxu0
    %v2463 = vpop.f32.mrb[0].mxu0
    %v2464 = vadd.f32 0.0, %v2463
    %v2465 = vpop.f32.mrb[0].mxu0
    %2466 = vdwg.mxu0
    %2467 = vrot.lane.b32.xlu0 %v478, 80
    %v2468 = vpop.permute.xlu0 %2467
    %2469 = vrot.lane.b32.xlu0 %v479, 80
    %v2470 = vpop.permute.xlu0 %2469
    %2471 = vrot.lane.b32.xlu0 %v480, 80
    %v2472 = vpop.permute.xlu0 %2471
    %2473 = vrot.lane.b32.xlu0 %v481, 80
    %v2474 = vpop.permute.xlu0 %2473
    %2475 = vrot.lane.b32.xlu0 %v486, 80
    %v2476 = vpop.permute.xlu0 %2475
    %2477 = vrot.lane.b32.xlu0 %v487, 80
    %v2478 = vpop.permute.xlu0 %2477
    %2479 = vrot.lane.b32.xlu0 %v488, 80
    %v2480 = vpop.permute.xlu0 %2479
    %2481 = vrot.lane.b32.xlu0 %v489, 80
    %v2482 = vpop.permute.xlu0 %2481
    %v2484 = vsel %vm498, %v2468, 0
    %v2487 = vsel %vm498, %v2470, 0
    %v2490 = vsel %vm498, %v2472, 0
    %v2493 = vsel %vm498, %v2474, 0
    %v2496 = vsel %vm498, %v2476, 0
    %v2499 = vsel %vm498, %v2478, 0
    %v2502 = vsel %vm498, %v2480, 0
    %v2505 = vsel %vm498, %v2482, 0
    %2507 = vmatprep.subr.bf16.mxu0 0
    %2508 = vmatpush1.bf16.xpose.msra.mxu0 %v2496
    %2509 = vmatprep.subr.bf16.mxu0 0
    %2510 = vmatpush1.bf16.xpose.msra.mxu0 %v2499
    %2511 = vmatprep.subr.bf16.mxu0 0
    %2512 = vmatpush1.bf16.xpose.msra.mxu0 %v2502
    %2513 = vmatprep.subr.bf16.mxu0 0
    %2514 = vmatpush1.bf16.xpose.msra.mxu0 %v2505
    %2515 = vmatprep.subr.bf16.mxu0 0
    %2516 = vmatpush1.bf16.xpose.msra.mxu0 0
    %2517 = vmatprep.subr.bf16.mxu0 0
    %2518 = vmatpush1.bf16.xpose.msra.mxu0 0
    %2519 = vmatprep.subr.bf16.mxu0 0
    %2520 = vmatpush1.bf16.xpose.msra.mxu0 0
    %2521 = vmatprep.subr.bf16.mxu0 0
    %2522 = vmatpush1.bf16.xpose.msra.mxu0 0
    %2523 = vmatprep.subr.bf16.mxu0 0
    %2524 = vmatpush1.bf16.xpose.msra.mxu0 0
    %2525 = vmatprep.subr.bf16.mxu0 0
    %2526 = vmatpush1.bf16.xpose.msra.mxu0 0
    %2527 = vmatprep.subr.bf16.mxu0 0
    %2528 = vmatpush1.bf16.xpose.msra.mxu0 0
    %2529 = vmatprep.subr.bf16.mxu0 0
    %2530 = vmatpush1.bf16.xpose.msra.mxu0 0
    %2531 = vmatprep.subr.bf16.mxu0 0
    %2532 = vmatpush1.bf16.xpose.msra.mxu0 0
    %2533 = vmatprep.subr.bf16.mxu0 0
    %2534 = vmatpush1.bf16.xpose.msra.mxu0 0
    %2535 = vmatprep.subr.bf16.mxu0 0
    %2536 = vmatpush1.bf16.xpose.msra.mxu0 0
    %2537 = vmatprep.subr.bf16.mxu0 0
    %2538 = vmatpush1.bf16.xpose.msra.mxu0 0
    %2539 = vmatprep.mubr.bf16.mxu0 0
    %2540 = vmatmul.mubr.bf16.gmra.mrb[0].mxu0 %v2484
    %v2541 = vpop.f32.mrb[0].mxu0
    %v2542 = vadd.f32 0.0, %v2541
    %v2543 = vpop.f32.mrb[0].mxu0
    %v2544 = vpop.f32.mrb[0].mxu0
    %v2545 = vadd.f32 0.0, %v2544
    %v2546 = vpop.f32.mrb[0].mxu0
    %2547 = vmatprep.mubr.bf16.mxu0 0
    %2548 = vmatmul.mubr.bf16.gmra.mrb[0].mxu0 %v2487
    %v2549 = vpop.f32.mrb[0].mxu0
    %v2550 = vadd.f32 0.0, %v2549
    %v2551 = vpop.f32.mrb[0].mxu0
    %v2552 = vpop.f32.mrb[0].mxu0
    %v2553 = vadd.f32 0.0, %v2552
    %v2554 = vpop.f32.mrb[0].mxu0
    %2555 = vmatprep.mubr.bf16.mxu0 0
    %2556 = vmatmul.mubr.bf16.gmra.mrb[0].mxu0 %v2490
    %v2557 = vpop.f32.mrb[0].mxu0
    %v2558 = vadd.f32 0.0, %v2557
    %v2559 = vpop.f32.mrb[0].mxu0
    %v2560 = vpop.f32.mrb[0].mxu0
    %v2561 = vadd.f32 0.0, %v2560
    %v2562 = vpop.f32.mrb[0].mxu0
    %2563 = vmatprep.mubr.bf16.mxu0 0
    %2564 = vmatmul.mubr.bf16.gmra.mrb[0].mxu0 %v2493
    %v2565 = vpop.f32.mrb[0].mxu0
    %v2566 = vadd.f32 0.0, %v2565
    %v2567 = vpop.f32.mrb[0].mxu0
    %v2568 = vpop.f32.mrb[0].mxu0
    %v2569 = vadd.f32 0.0, %v2568
    %v2570 = vpop.f32.mrb[0].mxu0
    %2571 = vdwg.mxu0
    %v2572 = vsel %vm677, %v2437, -inf
    %2573 = vmax.xlane.f32.xlu0 %v2572
    %v2574 = vpop.xlane.xlu0 %2573
    %v2575 = vsel %vm677, %v2440, -inf
    %2576 = vmax.xlane.f32.xlu0 %v2575
    %v2577 = vpop.xlane.xlu0 %2576
    %v2578 = vsel %vm677, %v2445, -inf
    %2579 = vmax.xlane.f32.xlu0 %v2578
    %v2580 = vpop.xlane.xlu0 %2579
    %v2581 = vsel %vm677, %v2448, -inf
    %2582 = vmax.xlane.f32.xlu0 %v2581
    %v2583 = vpop.xlane.xlu0 %2582
    %v2584 = vsel %vm677, %v2453, -inf
    %2585 = vmax.xlane.f32.xlu0 %v2584
    %v2586 = vpop.xlane.xlu0 %2585
    %v2587 = vsel %vm677, %v2456, -inf
    %2588 = vmax.xlane.f32.xlu0 %v2587
    %v2589 = vpop.xlane.xlu0 %2588
    %v2590 = vsel %vm677, %v2461, -inf
    %2591 = vmax.xlane.f32.xlu0 %v2590
    %v2592 = vpop.xlane.xlu0 %2591
    %v2593 = vsel %vm677, %v2464, -inf
    %2594 = vmax.xlane.f32.xlu0 %v2593
    %v2595 = vpop.xlane.xlu0 %2594
    %v2596 = vsel %vm677, %v2542, -inf
    %2597 = vmax.xlane.f32.xlu0 %v2596
    %v2598 = vpop.xlane.xlu0 %2597
    %v2599 = vsel %vm677, %v2545, -inf
    %2600 = vmax.xlane.f32.xlu0 %v2599
    %v2601 = vpop.xlane.xlu0 %2600
    %v2602 = vsel %vm677, %v2550, -inf
    %2603 = vmax.xlane.f32.xlu0 %v2602
    %v2604 = vpop.xlane.xlu0 %2603
    %v2605 = vsel %vm677, %v2553, -inf
    %2606 = vmax.xlane.f32.xlu0 %v2605
    %v2607 = vpop.xlane.xlu0 %2606
    %v2608 = vsel %vm677, %v2558, -inf
    %2609 = vmax.xlane.f32.xlu0 %v2608
    %v2610 = vpop.xlane.xlu0 %2609
    %v2611 = vsel %vm677, %v2561, -inf
    %2612 = vmax.xlane.f32.xlu0 %v2611
    %v2613 = vpop.xlane.xlu0 %2612
    %v2614 = vsel %vm677, %v2566, -inf
    %2615 = vmax.xlane.f32.xlu0 %v2614
    %v2616 = vpop.xlane.xlu0 %2615
    %v2617 = vsel %vm677, %v2569, -inf
    %2618 = vmax.xlane.f32.xlu0 %v2617
    %v2619 = vpop.xlane.xlu0 %2618
    %v2620 = vsub.f32 %v2437, %v2574
    %v2621 = vsub.f32 %v2440, %v2577
    %v2622 = vsub.f32 %v2445, %v2580
    %v2623 = vsub.f32 %v2448, %v2583
    %v2624 = vsub.f32 %v2453, %v2586
    %v2625 = vsub.f32 %v2456, %v2589
    %v2626 = vsub.f32 %v2461, %v2592
    %v2627 = vsub.f32 %v2464, %v2595
    %v2628 = vsub.f32 %v2542, %v2598
    %v2629 = vsub.f32 %v2545, %v2601
    %v2630 = vsub.f32 %v2550, %v2604
    %v2631 = vsub.f32 %v2553, %v2607
    %v2632 = vsub.f32 %v2558, %v2610
    %v2633 = vsub.f32 %v2561, %v2613
    %v2634 = vsub.f32 %v2566, %v2616
    %v2635 = vsub.f32 %v2569, %v2619
    %v2636 = vmul.f32 %v2620, 1.442695
    %v2637 = vpow.pop %v2636
    %v2638 = vmul.f32 %v2621, 1.442695
    %v2639 = vpow.pop %v2638
    %v2640 = vmul.f32 %v2622, 1.442695
    %v2641 = vpow.pop %v2640
    %v2642 = vmul.f32 %v2623, 1.442695
    %v2643 = vpow.pop %v2642
    %v2644 = vmul.f32 %v2624, 1.442695
    %v2645 = vpow.pop %v2644
    %v2646 = vmul.f32 %v2625, 1.442695
    %v2647 = vpow.pop %v2646
    %v2648 = vmul.f32 %v2626, 1.442695
    %v2649 = vpow.pop %v2648
    %v2650 = vmul.f32 %v2627, 1.442695
    %v2651 = vpow.pop %v2650
    %v2652 = vmul.f32 %v2628, 1.442695
    %v2653 = vpow.pop %v2652
    %v2654 = vmul.f32 %v2629, 1.442695
    %v2655 = vpow.pop %v2654
    %v2656 = vmul.f32 %v2630, 1.442695
    %v2657 = vpow.pop %v2656
    %v2658 = vmul.f32 %v2631, 1.442695
    %v2659 = vpow.pop %v2658
    %v2660 = vmul.f32 %v2632, 1.442695
    %v2661 = vpow.pop %v2660
    %v2662 = vmul.f32 %v2633, 1.442695
    %v2663 = vpow.pop %v2662
    %v2664 = vmul.f32 %v2634, 1.442695
    %v2665 = vpow.pop %v2664
    %v2666 = vmul.f32 %v2635, 1.442695
    %v2667 = vpow.pop %v2666
    %v2668 = vsel %vm677, %v2637, 0.0
    %2669 = vadd.xlane.f32.xlu0 %v2668
    %v2670 = vpop.xlane.xlu0 %2669
    %v2671 = vsel %vm677, %v2639, 0.0
    %2672 = vadd.xlane.f32.xlu0 %v2671
    %v2673 = vpop.xlane.xlu0 %2672
    %v2674 = vsel %vm677, %v2641, 0.0
    %2675 = vadd.xlane.f32.xlu0 %v2674
    %v2676 = vpop.xlane.xlu0 %2675
    %v2677 = vsel %vm677, %v2643, 0.0
    %2678 = vadd.xlane.f32.xlu0 %v2677
    %v2679 = vpop.xlane.xlu0 %2678
    %v2680 = vsel %vm677, %v2645, 0.0
    %2681 = vadd.xlane.f32.xlu0 %v2680
    %v2682 = vpop.xlane.xlu0 %2681
    %v2683 = vsel %vm677, %v2647, 0.0
    %2684 = vadd.xlane.f32.xlu0 %v2683
    %v2685 = vpop.xlane.xlu0 %2684
    %v2686 = vsel %vm677, %v2649, 0.0
    %2687 = vadd.xlane.f32.xlu0 %v2686
    %v2688 = vpop.xlane.xlu0 %2687
    %v2689 = vsel %vm677, %v2651, 0.0
    %2690 = vadd.xlane.f32.xlu0 %v2689
    %v2691 = vpop.xlane.xlu0 %2690
    %v2692 = vsel %vm677, %v2653, 0.0
    %2693 = vadd.xlane.f32.xlu0 %v2692
    %v2694 = vpop.xlane.xlu0 %2693
    %v2695 = vsel %vm677, %v2655, 0.0
    %2696 = vadd.xlane.f32.xlu0 %v2695
    %v2697 = vpop.xlane.xlu0 %2696
    %v2698 = vsel %vm677, %v2657, 0.0
    %2699 = vadd.xlane.f32.xlu0 %v2698
    %v2700 = vpop.xlane.xlu0 %2699
    %v2701 = vsel %vm677, %v2659, 0.0
    %2702 = vadd.xlane.f32.xlu0 %v2701
    %v2703 = vpop.xlane.xlu0 %2702
    %v2704 = vsel %vm677, %v2661, 0.0
    %2705 = vadd.xlane.f32.xlu0 %v2704
    %v2706 = vpop.xlane.xlu0 %2705
    %v2707 = vsel %vm677, %v2663, 0.0
    %2708 = vadd.xlane.f32.xlu0 %v2707
    %v2709 = vpop.xlane.xlu0 %2708
    %v2710 = vsel %vm677, %v2665, 0.0
    %2711 = vadd.xlane.f32.xlu0 %v2710
    %v2712 = vpop.xlane.xlu0 %2711
    %v2713 = vsel %vm677, %v2667, 0.0
    %2714 = vadd.xlane.f32.xlu0 %v2713
    %v2715 = vpop.xlane.xlu0 %2714
    %v2716 = vpack.c.bf16 %v2639, %v2637
    %v2717 = vpack.c.bf16 %v2643, %v2641
    %v2718 = vpack.c.bf16 %v2647, %v2645
    %v2719 = vpack.c.bf16 %v2651, %v2649
    %v2720 = vpack.c.bf16 %v2655, %v2653
    %v2721 = vpack.c.bf16 %v2659, %v2657
    %v2722 = vpack.c.bf16 %v2663, %v2661
    %v2723 = vpack.c.bf16 %v2667, %v2665
    %2724 = vrot.lane.b32.xlu0 %v490, 80
    %v2725 = vpop.permute.xlu0 %2724
    %2726 = vrot.lane.b32.xlu0 %v491, 80
    %v2727 = vpop.permute.xlu0 %2726
    %2728 = vrot.lane.b32.xlu0 %v492, 80
    %v2729 = vpop.permute.xlu0 %2728
    %2730 = vrot.lane.b32.xlu0 %v493, 80
    %v2731 = vpop.permute.xlu0 %2730
    %v2737 = vsel %vm677, %v2716, 0
    %v2740 = vsel %vm677, %v2717, 0
    %v2743 = vsel %vm677, %v2718, 0
    %v2746 = vsel %vm677, %v2719, 0
    %2748 = vmatprep.subr.bf16.mxu0 0
    %2749 = vmatpush1.bf16.msra.mxu0 %v2725
    %2750 = vmatprep.subr.bf16.mxu0 0
    %2751 = vmatpush1.bf16.msra.mxu0 %v2727
    %2752 = vmatprep.subr.bf16.mxu0 0
    %2753 = vmatpush1.bf16.msra.mxu0 %v2729
    %2754 = vmatprep.subr.bf16.mxu0 0
    %2755 = vmatpush1.bf16.msra.mxu0 %v2731
    %2756 = vmatprep.subr.bf16.mxu0 0
    %2757 = vmatpush1.bf16.msra.mxu0 0
    %2758 = vmatprep.subr.bf16.mxu0 0
    %2759 = vmatpush1.bf16.msra.mxu0 0
    %2760 = vmatprep.subr.bf16.mxu0 0
    %2761 = vmatpush1.bf16.msra.mxu0 0
    %2762 = vmatprep.subr.bf16.mxu0 0
    %2763 = vmatpush1.bf16.msra.mxu0 0
    %2764 = vmatprep.subr.bf16.mxu0 0
    %2765 = vmatpush1.bf16.msra.mxu0 0
    %2766 = vmatprep.subr.bf16.mxu0 0
    %2767 = vmatpush1.bf16.msra.mxu0 0
    %2768 = vmatprep.subr.bf16.mxu0 0
    %2769 = vmatpush1.bf16.msra.mxu0 0
    %2770 = vmatprep.subr.bf16.mxu0 0
    %2771 = vmatpush1.bf16.msra.mxu0 0
    %2772 = vmatprep.subr.bf16.mxu0 0
    %2773 = vmatpush1.bf16.msra.mxu0 0
    %2774 = vmatprep.subr.bf16.mxu0 0
    %2775 = vmatpush1.bf16.msra.mxu0 0
    %2776 = vmatprep.subr.bf16.mxu0 0
    %2777 = vmatpush1.bf16.msra.mxu0 0
    %2778 = vmatprep.subr.bf16.mxu0 0
    %2779 = vmatpush1.bf16.msra.mxu0 0
    %2780 = vmatprep.mubr.bf16.mxu0 0
    %2781 = vmatmul.mubr.bf16.gmra.mrb[0].mxu0 %v2737
    %v2782 = vpop.f32.mrb[0].mxu0
    %v2783 = vadd.f32 0.0, %v2782
    %v2784 = vpop.f32.mrb[0].mxu0
    %v2785 = vpop.f32.mrb[0].mxu0
    %v2786 = vadd.f32 0.0, %v2785
    %v2787 = vpop.f32.mrb[0].mxu0
    %2788 = vmatprep.mubr.bf16.mxu0 0
    %2789 = vmatmul.mubr.bf16.gmra.mrb[0].mxu0 %v2740
    %v2790 = vpop.f32.mrb[0].mxu0
    %v2791 = vadd.f32 0.0, %v2790
    %v2792 = vpop.f32.mrb[0].mxu0
    %v2793 = vpop.f32.mrb[0].mxu0
    %v2794 = vadd.f32 0.0, %v2793
    %v2795 = vpop.f32.mrb[0].mxu0
    %2796 = vmatprep.mubr.bf16.mxu0 0
    %2797 = vmatmul.mubr.bf16.gmra.mrb[0].mxu0 %v2743
    %v2798 = vpop.f32.mrb[0].mxu0
    %v2799 = vadd.f32 0.0, %v2798
    %v2800 = vpop.f32.mrb[0].mxu0
    %v2801 = vpop.f32.mrb[0].mxu0
    %v2802 = vadd.f32 0.0, %v2801
    %v2803 = vpop.f32.mrb[0].mxu0
    %2804 = vmatprep.mubr.bf16.mxu0 0
    %2805 = vmatmul.mubr.bf16.gmra.mrb[0].mxu0 %v2746
    %v2806 = vpop.f32.mrb[0].mxu0
    %v2807 = vadd.f32 0.0, %v2806
    %v2808 = vpop.f32.mrb[0].mxu0
    %v2809 = vpop.f32.mrb[0].mxu0
    %v2810 = vadd.f32 0.0, %v2809
    %v2811 = vpop.f32.mrb[0].mxu0
    %2812 = vdwg.mxu0
    %2813 = vrot.lane.b32.xlu0 %v494, 80
    %v2814 = vpop.permute.xlu0 %2813
    %2815 = vrot.lane.b32.xlu0 %v495, 80
    %v2816 = vpop.permute.xlu0 %2815
    %2817 = vrot.lane.b32.xlu0 %v496, 80
    %v2818 = vpop.permute.xlu0 %2817
    %2819 = vrot.lane.b32.xlu0 %v497, 80
    %v2820 = vpop.permute.xlu0 %2819
    %v2826 = vsel %vm677, %v2720, 0
    %v2829 = vsel %vm677, %v2721, 0
    %v2832 = vsel %vm677, %v2722, 0
    %v2835 = vsel %vm677, %v2723, 0
    %2837 = vmatprep.subr.bf16.mxu0 0
    %2838 = vmatpush1.bf16.msra.mxu0 %v2814
    %2839 = vmatprep.subr.bf16.mxu0 0
    %2840 = vmatpush1.bf16.msra.mxu0 %v2816
    %2841 = vmatprep.subr.bf16.mxu0 0
    %2842 = vmatpush1.bf16.msra.mxu0 %v2818
    %2843 = vmatprep.subr.bf16.mxu0 0
    %2844 = vmatpush1.bf16.msra.mxu0 %v2820
    %2845 = vmatprep.subr.bf16.mxu0 0
    %2846 = vmatpush1.bf16.msra.mxu0 0
    %2847 = vmatprep.subr.bf16.mxu0 0
    %2848 = vmatpush1.bf16.msra.mxu0 0
    %2849 = vmatprep.subr.bf16.mxu0 0
    %2850 = vmatpush1.bf16.msra.mxu0 0
    %2851 = vmatprep.subr.bf16.mxu0 0
    %2852 = vmatpush1.bf16.msra.mxu0 0
    %2853 = vmatprep.subr.bf16.mxu0 0
    %2854 = vmatpush1.bf16.msra.mxu0 0
    %2855 = vmatprep.subr.bf16.mxu0 0
    %2856 = vmatpush1.bf16.msra.mxu0 0
    %2857 = vmatprep.subr.bf16.mxu0 0
    %2858 = vmatpush1.bf16.msra.mxu0 0
    %2859 = vmatprep.subr.bf16.mxu0 0
    %2860 = vmatpush1.bf16.msra.mxu0 0
    %2861 = vmatprep.subr.bf16.mxu0 0
    %2862 = vmatpush1.bf16.msra.mxu0 0
    %2863 = vmatprep.subr.bf16.mxu0 0
    %2864 = vmatpush1.bf16.msra.mxu0 0
    %2865 = vmatprep.subr.bf16.mxu0 0
    %2866 = vmatpush1.bf16.msra.mxu0 0
    %2867 = vmatprep.subr.bf16.mxu0 0
    %2868 = vmatpush1.bf16.msra.mxu0 0
    %2869 = vmatprep.mubr.bf16.mxu0 0
    %2870 = vmatmul.mubr.bf16.gmra.mrb[0].mxu0 %v2826
    %v2871 = vpop.f32.mrb[0].mxu0
    %v2872 = vadd.f32 0.0, %v2871
    %v2873 = vpop.f32.mrb[0].mxu0
    %v2874 = vpop.f32.mrb[0].mxu0
    %v2875 = vadd.f32 0.0, %v2874
    %v2876 = vpop.f32.mrb[0].mxu0
    %2877 = vmatprep.mubr.bf16.mxu0 0
    %2878 = vmatmul.mubr.bf16.gmra.mrb[0].mxu0 %v2829
    %v2879 = vpop.f32.mrb[0].mxu0
    %v2880 = vadd.f32 0.0, %v2879
    %v2881 = vpop.f32.mrb[0].mxu0
    %v2882 = vpop.f32.mrb[0].mxu0
    %v2883 = vadd.f32 0.0, %v2882
    %v2884 = vpop.f32.mrb[0].mxu0
    %2885 = vmatprep.mubr.bf16.mxu0 0
    %2886 = vmatmul.mubr.bf16.gmra.mrb[0].mxu0 %v2832
    %v2887 = vpop.f32.mrb[0].mxu0
    %v2888 = vadd.f32 0.0, %v2887
    %v2889 = vpop.f32.mrb[0].mxu0
    %v2890 = vpop.f32.mrb[0].mxu0
    %v2891 = vadd.f32 0.0, %v2890
    %v2892 = vpop.f32.mrb[0].mxu0
    %2893 = vmatprep.mubr.bf16.mxu0 0
    %2894 = vmatmul.mubr.bf16.gmra.mrb[0].mxu0 %v2835
    %v2895 = vpop.f32.mrb[0].mxu0
    %v2896 = vadd.f32 0.0, %v2895
    %v2897 = vpop.f32.mrb[0].mxu0
    %v2898 = vpop.f32.mrb[0].mxu0
    %v2899 = vadd.f32 0.0, %v2898
    %v2900 = vpop.f32.mrb[0].mxu0
    %2901 = vdwg.mxu0
    %v2902 = vrcp.pop %v2670
    %v2903 = vrcp.pop %v2673
    %v2904 = vrcp.pop %v2676
    %v2905 = vrcp.pop %v2679
    %v2906 = vrcp.pop %v2682
    %v2907 = vrcp.pop %v2685
    %v2908 = vrcp.pop %v2688
    %v2909 = vrcp.pop %v2691
    %v2910 = vrcp.pop %v2694
    %v2911 = vrcp.pop %v2697
    %v2912 = vrcp.pop %v2700
    %v2913 = vrcp.pop %v2703
    %v2914 = vrcp.pop %v2706
    %v2915 = vrcp.pop %v2709
    %v2916 = vrcp.pop %v2712
    %v2917 = vrcp.pop %v2715
    %v2918 = vmul.f32 %v2783, %v2902
    %v2919 = vmul.f32 %v2786, %v2903
    %v2920 = vmul.f32 %v2791, %v2904
    %v2921 = vmul.f32 %v2794, %v2905
    %v2922 = vmul.f32 %v2799, %v2906
    %v2923 = vmul.f32 %v2802, %v2907
    %v2924 = vmul.f32 %v2807, %v2908
    %v2925 = vmul.f32 %v2810, %v2909
    %v2926 = vmul.f32 %v2872, %v2910
    %v2927 = vmul.f32 %v2875, %v2911
    %v2928 = vmul.f32 %v2880, %v2912
    %v2929 = vmul.f32 %v2883, %v2913
    %v2930 = vmul.f32 %v2888, %v2914
    %v2931 = vmul.f32 %v2891, %v2915
    %v2932 = vmul.f32 %v2896, %v2916
    %v2933 = vmul.f32 %v2899, %v2917
    %2950 = vrot.lane.b32.xlu0 %v2918, 48
    %v2951 = vpop.permute.xlu0 %2950
    %2952 = vrot.lane.b32.xlu0 %v2919, 48
    %v2953 = vpop.permute.xlu0 %2952
    %2954 = vrot.lane.b32.xlu0 %v2920, 48
    %v2955 = vpop.permute.xlu0 %2954
    %2956 = vrot.lane.b32.xlu0 %v2921, 48
    %v2957 = vpop.permute.xlu0 %2956
    %2958 = vrot.lane.b32.xlu0 %v2922, 48
    %v2959 = vpop.permute.xlu0 %2958
    %2960 = vrot.lane.b32.xlu0 %v2923, 48
    %v2961 = vpop.permute.xlu0 %2960
    %2962 = vrot.lane.b32.xlu0 %v2924, 48
    %v2963 = vpop.permute.xlu0 %2962
    %2964 = vrot.lane.b32.xlu0 %v2925, 48
    %v2965 = vpop.permute.xlu0 %2964
    %2966 = vrot.lane.b32.xlu0 %v2926, 48
    %v2967 = vpop.permute.xlu0 %2966
    %2968 = vrot.lane.b32.xlu0 %v2927, 48
    %v2969 = vpop.permute.xlu0 %2968
    %2970 = vrot.lane.b32.xlu0 %v2928, 48
    %v2971 = vpop.permute.xlu0 %2970
    %2972 = vrot.lane.b32.xlu0 %v2929, 48
    %v2973 = vpop.permute.xlu0 %2972
    %2974 = vrot.lane.b32.xlu0 %v2930, 48
    %v2975 = vpop.permute.xlu0 %2974
    %2976 = vrot.lane.b32.xlu0 %v2931, 48
    %v2977 = vpop.permute.xlu0 %2976
    %2978 = vrot.lane.b32.xlu0 %v2932, 48
    %v2979 = vpop.permute.xlu0 %2978
    %2980 = vrot.lane.b32.xlu0 %v2933, 48
    %v2981 = vpop.permute.xlu0 %2980
    %vm2998 = vcmask 523648
    %2999 = vst.msk [vmem:[#allocation2] sm:$0xff] %vm2998, %v2951
    %3000 = vst.msk [vmem:[#allocation2 + $0x8] sm:$0xff] %vm2998, %v2953
    %3001 = vst.msk [vmem:[#allocation2 + $0x10] sm:$0xff] %vm2998, %v2955
    %3002 = vst.msk [vmem:[#allocation2 + $0x18] sm:$0xff] %vm2998, %v2957
    %3003 = vst.msk [vmem:[#allocation2 + $0x20] sm:$0xff] %vm2998, %v2959
    %3004 = vst.msk [vmem:[#allocation2 + $0x28] sm:$0xff] %vm2998, %v2961
    %3005 = vst.msk [vmem:[#allocation2 + $0x30] sm:$0xff] %vm2998, %v2963
    %3006 = vst.msk [vmem:[#allocation2 + $0x38] sm:$0xff] %vm2998, %v2965
    %3007 = vst.msk [vmem:[#allocation2 + $0x40] sm:$0xff] %vm2998, %v2967
    %3008 = vst.msk [vmem:[#allocation2 + $0x48] sm:$0xff] %vm2998, %v2969
    %3009 = vst.msk [vmem:[#allocation2 + $0x50] sm:$0xff] %vm2998, %v2971
    %3010 = vst.msk [vmem:[#allocation2 + $0x58] sm:$0xff] %vm2998, %v2973
    %3011 = vst.msk [vmem:[#allocation2 + $0x60] sm:$0xff] %vm2998, %v2975
    %3012 = vst.msk [vmem:[#allocation2 + $0x68] sm:$0xff] %vm2998, %v2977
    %3013 = vst.msk [vmem:[#allocation2 + $0x70] sm:$0xff] %vm2998, %v2979
    %3014 = vst.msk [vmem:[#allocation2 + $0x78] sm:$0xff] %vm2998, %v2981
    %3015 = vrot.lane.b32.xlu0 %v474, 64
    %v3016 = vpop.permute.xlu0 %3015
    %3017 = vrot.lane.b32.xlu0 %v475, 64
    %v3018 = vpop.permute.xlu0 %3017
    %3019 = vrot.lane.b32.xlu0 %v476, 64
    %v3020 = vpop.permute.xlu0 %3019
    %3021 = vrot.lane.b32.xlu0 %v477, 64
    %v3022 = vpop.permute.xlu0 %3021
    %3023 = vrot.lane.b32.xlu0 %v482, 64
    %v3024 = vpop.permute.xlu0 %3023
    %3025 = vrot.lane.b32.xlu0 %v483, 64
    %v3026 = vpop.permute.xlu0 %3025
    %3027 = vrot.lane.b32.xlu0 %v484, 64
    %v3028 = vpop.permute.xlu0 %3027
    %3029 = vrot.lane.b32.xlu0 %v485, 64
    %v3030 = vpop.permute.xlu0 %3029
    %v3032 = vsel %vm498, %v3016, 0
    %v3035 = vsel %vm498, %v3018, 0
    %v3038 = vsel %vm498, %v3020, 0
    %v3041 = vsel %vm498, %v3022, 0
    %v3044 = vsel %vm498, %v3024, 0
    %v3047 = vsel %vm498, %v3026, 0
    %v3050 = vsel %vm498, %v3028, 0
    %v3053 = vsel %vm498, %v3030, 0
    %3055 = vmatprep.subr.bf16.mxu0 0
    %3056 = vmatpush1.bf16.xpose.msra.mxu0 %v3044
    %3057 = vmatprep.subr.bf16.mxu0 0
    %3058 = vmatpush1.bf16.xpose.msra.mxu0 %v3047
    %3059 = vmatprep.subr.bf16.mxu0 0
    %3060 = vmatpush1.bf16.xpose.msra.mxu0 %v3050
    %3061 = vmatprep.subr.bf16.mxu0 0
    %3062 = vmatpush1.bf16.xpose.msra.mxu0 %v3053
    %3063 = vmatprep.subr.bf16.mxu0 0
    %3064 = vmatpush1.bf16.xpose.msra.mxu0 0
    %3065 = vmatprep.subr.bf16.mxu0 0
    %3066 = vmatpush1.bf16.xpose.msra.mxu0 0
    %3067 = vmatprep.subr.bf16.mxu0 0
    %3068 = vmatpush1.bf16.xpose.msra.mxu0 0
    %3069 = vmatprep.subr.bf16.mxu0 0
    %3070 = vmatpush1.bf16.xpose.msra.mxu0 0
    %3071 = vmatprep.subr.bf16.mxu0 0
    %3072 = vmatpush1.bf16.xpose.msra.mxu0 0
    %3073 = vmatprep.subr.bf16.mxu0 0
    %3074 = vmatpush1.bf16.xpose.msra.mxu0 0
    %3075 = vmatprep.subr.bf16.mxu0 0
    %3076 = vmatpush1.bf16.xpose.msra.mxu0 0
    %3077 = vmatprep.subr.bf16.mxu0 0
    %3078 = vmatpush1.bf16.xpose.msra.mxu0 0
    %3079 = vmatprep.subr.bf16.mxu0 0
    %3080 = vmatpush1.bf16.xpose.msra.mxu0 0
    %3081 = vmatprep.subr.bf16.mxu0 0
    %3082 = vmatpush1.bf16.xpose.msra.mxu0 0
    %3083 = vmatprep.subr.bf16.mxu0 0
    %3084 = vmatpush1.bf16.xpose.msra.mxu0 0
    %3085 = vmatprep.subr.bf16.mxu0 0
    %3086 = vmatpush1.bf16.xpose.msra.mxu0 0
    %3087 = vmatprep.mubr.bf16.mxu0 0
    %3088 = vmatmul.mubr.bf16.gmra.mrb[0].mxu0 %v3032
    %v3089 = vpop.f32.mrb[0].mxu0
    %v3090 = vadd.f32 0.0, %v3089
    %v3091 = vpop.f32.mrb[0].mxu0
    %v3092 = vpop.f32.mrb[0].mxu0
    %v3093 = vadd.f32 0.0, %v3092
    %v3094 = vpop.f32.mrb[0].mxu0
    %3095 = vmatprep.mubr.bf16.mxu0 0
    %3096 = vmatmul.mubr.bf16.gmra.mrb[0].mxu0 %v3035
    %v3097 = vpop.f32.mrb[0].mxu0
    %v3098 = vadd.f32 0.0, %v3097
    %v3099 = vpop.f32.mrb[0].mxu0
    %v3100 = vpop.f32.mrb[0].mxu0
    %v3101 = vadd.f32 0.0, %v3100
    %v3102 = vpop.f32.mrb[0].mxu0
    %3103 = vmatprep.mubr.bf16.mxu0 0
    %3104 = vmatmul.mubr.bf16.gmra.mrb[0].mxu0 %v3038
    %v3105 = vpop.f32.mrb[0].mxu0
    %v3106 = vadd.f32 0.0, %v3105
    %v3107 = vpop.f32.mrb[0].mxu0
    %v3108 = vpop.f32.mrb[0].mxu0
    %v3109 = vadd.f32 0.0, %v3108
    %v3110 = vpop.f32.mrb[0].mxu0
    %3111 = vmatprep.mubr.bf16.mxu0 0
    %3112 = vmatmul.mubr.bf16.gmra.mrb[0].mxu0 %v3041
    %v3113 = vpop.f32.mrb[0].mxu0
    %v3114 = vadd.f32 0.0, %v3113
    %v3115 = vpop.f32.mrb[0].mxu0
    %v3116 = vpop.f32.mrb[0].mxu0
    %v3117 = vadd.f32 0.0, %v3116
    %v3118 = vpop.f32.mrb[0].mxu0
    %3119 = vdwg.mxu0
    %3120 = vrot.lane.b32.xlu0 %v478, 64
    %v3121 = vpop.permute.xlu0 %3120
    %3122 = vrot.lane.b32.xlu0 %v479, 64
    %v3123 = vpop.permute.xlu0 %3122
    %3124 = vrot.lane.b32.xlu0 %v480, 64
    %v3125 = vpop.permute.xlu0 %3124
    %3126 = vrot.lane.b32.xlu0 %v481, 64
    %v3127 = vpop.permute.xlu0 %3126
    %3128 = vrot.lane.b32.xlu0 %v486, 64
    %v3129 = vpop.permute.xlu0 %3128
    %3130 = vrot.lane.b32.xlu0 %v487, 64
    %v3131 = vpop.permute.xlu0 %3130
    %3132 = vrot.lane.b32.xlu0 %v488, 64
    %v3133 = vpop.permute.xlu0 %3132
    %3134 = vrot.lane.b32.xlu0 %v489, 64
    %v3135 = vpop.permute.xlu0 %3134
    %v3137 = vsel %vm498, %v3121, 0
    %v3140 = vsel %vm498, %v3123, 0
    %v3143 = vsel %vm498, %v3125, 0
    %v3146 = vsel %vm498, %v3127, 0
    %v3149 = vsel %vm498, %v3129, 0
    %v3152 = vsel %vm498, %v3131, 0
    %v3155 = vsel %vm498, %v3133, 0
    %v3158 = vsel %vm498, %v3135, 0
    %3160 = vmatprep.subr.bf16.mxu0 0
    %3161 = vmatpush1.bf16.xpose.msra.mxu0 %v3149
    %3162 = vmatprep.subr.bf16.mxu0 0
    %3163 = vmatpush1.bf16.xpose.msra.mxu0 %v3152
    %3164 = vmatprep.subr.bf16.mxu0 0
    %3165 = vmatpush1.bf16.xpose.msra.mxu0 %v3155
    %3166 = vmatprep.subr.bf16.mxu0 0
    %3167 = vmatpush1.bf16.xpose.msra.mxu0 %v3158
    %3168 = vmatprep.subr.bf16.mxu0 0
    %3169 = vmatpush1.bf16.xpose.msra.mxu0 0
    %3170 = vmatprep.subr.bf16.mxu0 0
    %3171 = vmatpush1.bf16.xpose.msra.mxu0 0
    %3172 = vmatprep.subr.bf16.mxu0 0
    %3173 = vmatpush1.bf16.xpose.msra.mxu0 0
    %3174 = vmatprep.subr.bf16.mxu0 0
    %3175 = vmatpush1.bf16.xpose.msra.mxu0 0
    %3176 = vmatprep.subr.bf16.mxu0 0
    %3177 = vmatpush1.bf16.xpose.msra.mxu0 0
    %3178 = vmatprep.subr.bf16.mxu0 0
    %3179 = vmatpush1.bf16.xpose.msra.mxu0 0
    %3180 = vmatprep.subr.bf16.mxu0 0
    %3181 = vmatpush1.bf16.xpose.msra.mxu0 0
    %3182 = vmatprep.subr.bf16.mxu0 0
    %3183 = vmatpush1.bf16.xpose.msra.mxu0 0
    %3184 = vmatprep.subr.bf16.mxu0 0
    %3185 = vmatpush1.bf16.xpose.msra.mxu0 0
    %3186 = vmatprep.subr.bf16.mxu0 0
    %3187 = vmatpush1.bf16.xpose.msra.mxu0 0
    %3188 = vmatprep.subr.bf16.mxu0 0
    %3189 = vmatpush1.bf16.xpose.msra.mxu0 0
    %3190 = vmatprep.subr.bf16.mxu0 0
    %3191 = vmatpush1.bf16.xpose.msra.mxu0 0
    %3192 = vmatprep.mubr.bf16.mxu0 0
    %3193 = vmatmul.mubr.bf16.gmra.mrb[0].mxu0 %v3137
    %v3194 = vpop.f32.mrb[0].mxu0
    %v3195 = vadd.f32 0.0, %v3194
    %v3196 = vpop.f32.mrb[0].mxu0
    %v3197 = vpop.f32.mrb[0].mxu0
    %v3198 = vadd.f32 0.0, %v3197
    %v3199 = vpop.f32.mrb[0].mxu0
    %3200 = vmatprep.mubr.bf16.mxu0 0
    %3201 = vmatmul.mubr.bf16.gmra.mrb[0].mxu0 %v3140
    %v3202 = vpop.f32.mrb[0].mxu0
    %v3203 = vadd.f32 0.0, %v3202
    %v3204 = vpop.f32.mrb[0].mxu0
    %v3205 = vpop.f32.mrb[0].mxu0
    %v3206 = vadd.f32 0.0, %v3205
    %v3207 = vpop.f32.mrb[0].mxu0
    %3208 = vmatprep.mubr.bf16.mxu0 0
    %3209 = vmatmul.mubr.bf16.gmra.mrb[0].mxu0 %v3143
    %v3210 = vpop.f32.mrb[0].mxu0
    %v3211 = vadd.f32 0.0, %v3210
    %v3212 = vpop.f32.mrb[0].mxu0
    %v3213 = vpop.f32.mrb[0].mxu0
    %v3214 = vadd.f32 0.0, %v3213
    %v3215 = vpop.f32.mrb[0].mxu0
    %3216 = vmatprep.mubr.bf16.mxu0 0
    %3217 = vmatmul.mubr.bf16.gmra.mrb[0].mxu0 %v3146
    %v3218 = vpop.f32.mrb[0].mxu0
    %v3219 = vadd.f32 0.0, %v3218
    %v3220 = vpop.f32.mrb[0].mxu0
    %v3221 = vpop.f32.mrb[0].mxu0
    %v3222 = vadd.f32 0.0, %v3221
    %v3223 = vpop.f32.mrb[0].mxu0
    %3224 = vdwg.mxu0
    %v3225 = vsel %vm677, %v3090, -inf
    %3226 = vmax.xlane.f32.xlu0 %v3225
    %v3227 = vpop.xlane.xlu0 %3226
    %v3228 = vsel %vm677, %v3093, -inf
    %3229 = vmax.xlane.f32.xlu0 %v3228
    %v3230 = vpop.xlane.xlu0 %3229
    %v3231 = vsel %vm677, %v3098, -inf
    %3232 = vmax.xlane.f32.xlu0 %v3231
    %v3233 = vpop.xlane.xlu0 %3232
    %v3234 = vsel %vm677, %v3101, -inf
    %3235 = vmax.xlane.f32.xlu0 %v3234
    %v3236 = vpop.xlane.xlu0 %3235
    %v3237 = vsel %vm677, %v3106, -inf
    %3238 = vmax.xlane.f32.xlu0 %v3237
    %v3239 = vpop.xlane.xlu0 %3238
    %v3240 = vsel %vm677, %v3109, -inf
    %3241 = vmax.xlane.f32.xlu0 %v3240
    %v3242 = vpop.xlane.xlu0 %3241
    %v3243 = vsel %vm677, %v3114, -inf
    %3244 = vmax.xlane.f32.xlu0 %v3243
    %v3245 = vpop.xlane.xlu0 %3244
    %v3246 = vsel %vm677, %v3117, -inf
    %3247 = vmax.xlane.f32.xlu0 %v3246
    %v3248 = vpop.xlane.xlu0 %3247
    %v3249 = vsel %vm677, %v3195, -inf
    %3250 = vmax.xlane.f32.xlu0 %v3249
    %v3251 = vpop.xlane.xlu0 %3250
    %v3252 = vsel %vm677, %v3198, -inf
    %3253 = vmax.xlane.f32.xlu0 %v3252
    %v3254 = vpop.xlane.xlu0 %3253
    %v3255 = vsel %vm677, %v3203, -inf
    %3256 = vmax.xlane.f32.xlu0 %v3255
    %v3257 = vpop.xlane.xlu0 %3256
    %v3258 = vsel %vm677, %v3206, -inf
    %3259 = vmax.xlane.f32.xlu0 %v3258
    %v3260 = vpop.xlane.xlu0 %3259
    %v3261 = vsel %vm677, %v3211, -inf
    %3262 = vmax.xlane.f32.xlu0 %v3261
    %v3263 = vpop.xlane.xlu0 %3262
    %v3264 = vsel %vm677, %v3214, -inf
    %3265 = vmax.xlane.f32.xlu0 %v3264
    %v3266 = vpop.xlane.xlu0 %3265
    %v3267 = vsel %vm677, %v3219, -inf
    %3268 = vmax.xlane.f32.xlu0 %v3267
    %v3269 = vpop.xlane.xlu0 %3268
    %v3270 = vsel %vm677, %v3222, -inf
    %3271 = vmax.xlane.f32.xlu0 %v3270
    %v3272 = vpop.xlane.xlu0 %3271
    %v3273 = vsub.f32 %v3090, %v3227
    %v3274 = vsub.f32 %v3093, %v3230
    %v3275 = vsub.f32 %v3098, %v3233
    %v3276 = vsub.f32 %v3101, %v3236
    %v3277 = vsub.f32 %v3106, %v3239
    %v3278 = vsub.f32 %v3109, %v3242
    %v3279 = vsub.f32 %v3114, %v3245
    %v3280 = vsub.f32 %v3117, %v3248
    %v3281 = vsub.f32 %v3195, %v3251
    %v3282 = vsub.f32 %v3198, %v3254
    %v3283 = vsub.f32 %v3203, %v3257
    %v3284 = vsub.f32 %v3206, %v3260
    %v3285 = vsub.f32 %v3211, %v3263
    %v3286 = vsub.f32 %v3214, %v3266
    %v3287 = vsub.f32 %v3219, %v3269
    %v3288 = vsub.f32 %v3222, %v3272
    %v3289 = vmul.f32 %v3273, 1.442695
    %v3290 = vpow.pop %v3289
    %v3291 = vmul.f32 %v3274, 1.442695
    %v3292 = vpow.pop %v3291
    %v3293 = vmul.f32 %v3275, 1.442695
    %v3294 = vpow.pop %v3293
    %v3295 = vmul.f32 %v3276, 1.442695
    %v3296 = vpow.pop %v3295
    %v3297 = vmul.f32 %v3277, 1.442695
    %v3298 = vpow.pop %v3297
    %v3299 = vmul.f32 %v3278, 1.442695
    %v3300 = vpow.pop %v3299
    %v3301 = vmul.f32 %v3279, 1.442695
    %v3302 = vpow.pop %v3301
    %v3303 = vmul.f32 %v3280, 1.442695
    %v3304 = vpow.pop %v3303
    %v3305 = vmul.f32 %v3281, 1.442695
    %v3306 = vpow.pop %v3305
    %v3307 = vmul.f32 %v3282, 1.442695
    %v3308 = vpow.pop %v3307
    %v3309 = vmul.f32 %v3283, 1.442695
    %v3310 = vpow.pop %v3309
    %v3311 = vmul.f32 %v3284, 1.442695
    %v3312 = vpow.pop %v3311
    %v3313 = vmul.f32 %v3285, 1.442695
    %v3314 = vpow.pop %v3313
    %v3315 = vmul.f32 %v3286, 1.442695
    %v3316 = vpow.pop %v3315
    %v3317 = vmul.f32 %v3287, 1.442695
    %v3318 = vpow.pop %v3317
    %v3319 = vmul.f32 %v3288, 1.442695
    %v3320 = vpow.pop %v3319
    %v3321 = vsel %vm677, %v3290, 0.0
    %3322 = vadd.xlane.f32.xlu0 %v3321
    %v3323 = vpop.xlane.xlu0 %3322
    %v3324 = vsel %vm677, %v3292, 0.0
    %3325 = vadd.xlane.f32.xlu0 %v3324
    %v3326 = vpop.xlane.xlu0 %3325
    %v3327 = vsel %vm677, %v3294, 0.0
    %3328 = vadd.xlane.f32.xlu0 %v3327
    %v3329 = vpop.xlane.xlu0 %3328
    %v3330 = vsel %vm677, %v3296, 0.0
    %3331 = vadd.xlane.f32.xlu0 %v3330
    %v3332 = vpop.xlane.xlu0 %3331
    %v3333 = vsel %vm677, %v3298, 0.0
    %3334 = vadd.xlane.f32.xlu0 %v3333
    %v3335 = vpop.xlane.xlu0 %3334
    %v3336 = vsel %vm677, %v3300, 0.0
    %3337 = vadd.xlane.f32.xlu0 %v3336
    %v3338 = vpop.xlane.xlu0 %3337
    %v3339 = vsel %vm677, %v3302, 0.0
    %3340 = vadd.xlane.f32.xlu0 %v3339
    %v3341 = vpop.xlane.xlu0 %3340
    %v3342 = vsel %vm677, %v3304, 0.0
    %3343 = vadd.xlane.f32.xlu0 %v3342
    %v3344 = vpop.xlane.xlu0 %3343
    %v3345 = vsel %vm677, %v3306, 0.0
    %3346 = vadd.xlane.f32.xlu0 %v3345
    %v3347 = vpop.xlane.xlu0 %3346
    %v3348 = vsel %vm677, %v3308, 0.0
    %3349 = vadd.xlane.f32.xlu0 %v3348
    %v3350 = vpop.xlane.xlu0 %3349
    %v3351 = vsel %vm677, %v3310, 0.0
    %3352 = vadd.xlane.f32.xlu0 %v3351
    %v3353 = vpop.xlane.xlu0 %3352
    %v3354 = vsel %vm677, %v3312, 0.0
    %3355 = vadd.xlane.f32.xlu0 %v3354
    %v3356 = vpop.xlane.xlu0 %3355
    %v3357 = vsel %vm677, %v3314, 0.0
    %3358 = vadd.xlane.f32.xlu0 %v3357
    %v3359 = vpop.xlane.xlu0 %3358
    %v3360 = vsel %vm677, %v3316, 0.0
    %3361 = vadd.xlane.f32.xlu0 %v3360
    %v3362 = vpop.xlane.xlu0 %3361
    %v3363 = vsel %vm677, %v3318, 0.0
    %3364 = vadd.xlane.f32.xlu0 %v3363
    %v3365 = vpop.xlane.xlu0 %3364
    %v3366 = vsel %vm677, %v3320, 0.0
    %3367 = vadd.xlane.f32.xlu0 %v3366
    %v3368 = vpop.xlane.xlu0 %3367
    %v3369 = vpack.c.bf16 %v3292, %v3290
    %v3370 = vpack.c.bf16 %v3296, %v3294
    %v3371 = vpack.c.bf16 %v3300, %v3298
    %v3372 = vpack.c.bf16 %v3304, %v3302
    %v3373 = vpack.c.bf16 %v3308, %v3306
    %v3374 = vpack.c.bf16 %v3312, %v3310
    %v3375 = vpack.c.bf16 %v3316, %v3314
    %v3376 = vpack.c.bf16 %v3320, %v3318
    %3377 = vrot.lane.b32.xlu0 %v490, 64
    %v3378 = vpop.permute.xlu0 %3377
    %3379 = vrot.lane.b32.xlu0 %v491, 64
    %v3380 = vpop.permute.xlu0 %3379
    %3381 = vrot.lane.b32.xlu0 %v492, 64
    %v3382 = vpop.permute.xlu0 %3381
    %3383 = vrot.lane.b32.xlu0 %v493, 64
    %v3384 = vpop.permute.xlu0 %3383
    %v3390 = vsel %vm677, %v3369, 0
    %v3393 = vsel %vm677, %v3370, 0
    %v3396 = vsel %vm677, %v3371, 0
    %v3399 = vsel %vm677, %v3372, 0
    %3401 = vmatprep.subr.bf16.mxu0 0
    %3402 = vmatpush1.bf16.msra.mxu0 %v3378
    %3403 = vmatprep.subr.bf16.mxu0 0
    %3404 = vmatpush1.bf16.msra.mxu0 %v3380
    %3405 = vmatprep.subr.bf16.mxu0 0
    %3406 = vmatpush1.bf16.msra.mxu0 %v3382
    %3407 = vmatprep.subr.bf16.mxu0 0
    %3408 = vmatpush1.bf16.msra.mxu0 %v3384
    %3409 = vmatprep.subr.bf16.mxu0 0
    %3410 = vmatpush1.bf16.msra.mxu0 0
    %3411 = vmatprep.subr.bf16.mxu0 0
    %3412 = vmatpush1.bf16.msra.mxu0 0
    %3413 = vmatprep.subr.bf16.mxu0 0
    %3414 = vmatpush1.bf16.msra.mxu0 0
    %3415 = vmatprep.subr.bf16.mxu0 0
    %3416 = vmatpush1.bf16.msra.mxu0 0
    %3417 = vmatprep.subr.bf16.mxu0 0
    %3418 = vmatpush1.bf16.msra.mxu0 0
    %3419 = vmatprep.subr.bf16.mxu0 0
    %3420 = vmatpush1.bf16.msra.mxu0 0
    %3421 = vmatprep.subr.bf16.mxu0 0
    %3422 = vmatpush1.bf16.msra.mxu0 0
    %3423 = vmatprep.subr.bf16.mxu0 0
    %3424 = vmatpush1.bf16.msra.mxu0 0
    %3425 = vmatprep.subr.bf16.mxu0 0
    %3426 = vmatpush1.bf16.msra.mxu0 0
    %3427 = vmatprep.subr.bf16.mxu0 0
    %3428 = vmatpush1.bf16.msra.mxu0 0
    %3429 = vmatprep.subr.bf16.mxu0 0
    %3430 = vmatpush1.bf16.msra.mxu0 0
    %3431 = vmatprep.subr.bf16.mxu0 0
    %3432 = vmatpush1.bf16.msra.mxu0 0
    %3433 = vmatprep.mubr.bf16.mxu0 0
    %3434 = vmatmul.mubr.bf16.gmra.mrb[0].mxu0 %v3390
    %v3435 = vpop.f32.mrb[0].mxu0
    %v3436 = vadd.f32 0.0, %v3435
    %v3437 = vpop.f32.mrb[0].mxu0
    %v3438 = vpop.f32.mrb[0].mxu0
    %v3439 = vadd.f32 0.0, %v3438
    %v3440 = vpop.f32.mrb[0].mxu0
    %3441 = vmatprep.mubr.bf16.mxu0 0
    %3442 = vmatmul.mubr.bf16.gmra.mrb[0].mxu0 %v3393
    %v3443 = vpop.f32.mrb[0].mxu0
    %v3444 = vadd.f32 0.0, %v3443
    %v3445 = vpop.f32.mrb[0].mxu0
    %v3446 = vpop.f32.mrb[0].mxu0
    %v3447 = vadd.f32 0.0, %v3446
    %v3448 = vpop.f32.mrb[0].mxu0
    %3449 = vmatprep.mubr.bf16.mxu0 0
    %3450 = vmatmul.mubr.bf16.gmra.mrb[0].mxu0 %v3396
    %v3451 = vpop.f32.mrb[0].mxu0
    %v3452 = vadd.f32 0.0, %v3451
    %v3453 = vpop.f32.mrb[0].mxu0
    %v3454 = vpop.f32.mrb[0].mxu0
    %v3455 = vadd.f32 0.0, %v3454
    %v3456 = vpop.f32.mrb[0].mxu0
    %3457 = vmatprep.mubr.bf16.mxu0 0
    %3458 = vmatmul.mubr.bf16.gmra.mrb[0].mxu0 %v3399
    %v3459 = vpop.f32.mrb[0].mxu0
    %v3460 = vadd.f32 0.0, %v3459
    %v3461 = vpop.f32.mrb[0].mxu0
    %v3462 = vpop.f32.mrb[0].mxu0
    %v3463 = vadd.f32 0.0, %v3462
    %v3464 = vpop.f32.mrb[0].mxu0
    %3465 = vdwg.mxu0
    %3466 = vrot.lane.b32.xlu0 %v494, 64
    %v3467 = vpop.permute.xlu0 %3466
    %3468 = vrot.lane.b32.xlu0 %v495, 64
    %v3469 = vpop.permute.xlu0 %3468
    %3470 = vrot.lane.b32.xlu0 %v496, 64
    %v3471 = vpop.permute.xlu0 %3470
    %3472 = vrot.lane.b32.xlu0 %v497, 64
    %v3473 = vpop.permute.xlu0 %3472
    %v3479 = vsel %vm677, %v3373, 0
    %v3482 = vsel %vm677, %v3374, 0
    %v3485 = vsel %vm677, %v3375, 0
    %v3488 = vsel %vm677, %v3376, 0
    %3490 = vmatprep.subr.bf16.mxu0 0
    %3491 = vmatpush1.bf16.msra.mxu0 %v3467
    %3492 = vmatprep.subr.bf16.mxu0 0
    %3493 = vmatpush1.bf16.msra.mxu0 %v3469
    %3494 = vmatprep.subr.bf16.mxu0 0
    %3495 = vmatpush1.bf16.msra.mxu0 %v3471
    %3496 = vmatprep.subr.bf16.mxu0 0
    %3497 = vmatpush1.bf16.msra.mxu0 %v3473
    %3498 = vmatprep.subr.bf16.mxu0 0
    %3499 = vmatpush1.bf16.msra.mxu0 0
    %3500 = vmatprep.subr.bf16.mxu0 0
    %3501 = vmatpush1.bf16.msra.mxu0 0
    %3502 = vmatprep.subr.bf16.mxu0 0
    %3503 = vmatpush1.bf16.msra.mxu0 0
    %3504 = vmatprep.subr.bf16.mxu0 0
    %3505 = vmatpush1.bf16.msra.mxu0 0
    %3506 = vmatprep.subr.bf16.mxu0 0
    %3507 = vmatpush1.bf16.msra.mxu0 0
    %3508 = vmatprep.subr.bf16.mxu0 0
    %3509 = vmatpush1.bf16.msra.mxu0 0
    %3510 = vmatprep.subr.bf16.mxu0 0
    %3511 = vmatpush1.bf16.msra.mxu0 0
    %3512 = vmatprep.subr.bf16.mxu0 0
    %3513 = vmatpush1.bf16.msra.mxu0 0
    %3514 = vmatprep.subr.bf16.mxu0 0
    %3515 = vmatpush1.bf16.msra.mxu0 0
    %3516 = vmatprep.subr.bf16.mxu0 0
    %3517 = vmatpush1.bf16.msra.mxu0 0
    %3518 = vmatprep.subr.bf16.mxu0 0
    %3519 = vmatpush1.bf16.msra.mxu0 0
    %3520 = vmatprep.subr.bf16.mxu0 0
    %3521 = vmatpush1.bf16.msra.mxu0 0
    %3522 = vmatprep.mubr.bf16.mxu0 0
    %3523 = vmatmul.mubr.bf16.gmra.mrb[0].mxu0 %v3479
    %v3524 = vpop.f32.mrb[0].mxu0
    %v3525 = vadd.f32 0.0, %v3524
    %v3526 = vpop.f32.mrb[0].mxu0
    %v3527 = vpop.f32.mrb[0].mxu0
    %v3528 = vadd.f32 0.0, %v3527
    %v3529 = vpop.f32.mrb[0].mxu0
    %3530 = vmatprep.mubr.bf16.mxu0 0
    %3531 = vmatmul.mubr.bf16.gmra.mrb[0].mxu0 %v3482
    %v3532 = vpop.f32.mrb[0].mxu0
    %v3533 = vadd.f32 0.0, %v3532
    %v3534 = vpop.f32.mrb[0].mxu0
    %v3535 = vpop.f32.mrb[0].mxu0
    %v3536 = vadd.f32 0.0, %v3535
    %v3537 = vpop.f32.mrb[0].mxu0
    %3538 = vmatprep.mubr.bf16.mxu0 0
    %3539 = vmatmul.mubr.bf16.gmra.mrb[0].mxu0 %v3485
    %v3540 = vpop.f32.mrb[0].mxu0
    %v3541 = vadd.f32 0.0, %v3540
    %v3542 = vpop.f32.mrb[0].mxu0
    %v3543 = vpop.f32.mrb[0].mxu0
    %v3544 = vadd.f32 0.0, %v3543
    %v3545 = vpop.f32.mrb[0].mxu0
    %3546 = vmatprep.mubr.bf16.mxu0 0
    %3547 = vmatmul.mubr.bf16.gmra.mrb[0].mxu0 %v3488
    %v3548 = vpop.f32.mrb[0].mxu0
    %v3549 = vadd.f32 0.0, %v3548
    %v3550 = vpop.f32.mrb[0].mxu0
    %v3551 = vpop.f32.mrb[0].mxu0
    %v3552 = vadd.f32 0.0, %v3551
    %v3553 = vpop.f32.mrb[0].mxu0
    %3554 = vdwg.mxu0
    %v3555 = vrcp.pop %v3323
    %v3556 = vrcp.pop %v3326
    %v3557 = vrcp.pop %v3329
    %v3558 = vrcp.pop %v3332
    %v3559 = vrcp.pop %v3335
    %v3560 = vrcp.pop %v3338
    %v3561 = vrcp.pop %v3341
    %v3562 = vrcp.pop %v3344
    %v3563 = vrcp.pop %v3347
    %v3564 = vrcp.pop %v3350
    %v3565 = vrcp.pop %v3353
    %v3566 = vrcp.pop %v3356
    %v3567 = vrcp.pop %v3359
    %v3568 = vrcp.pop %v3362
    %v3569 = vrcp.pop %v3365
    %v3570 = vrcp.pop %v3368
    %v3571 = vmul.f32 %v3436, %v3555
    %v3572 = vmul.f32 %v3439, %v3556
    %v3573 = vmul.f32 %v3444, %v3557
    %v3574 = vmul.f32 %v3447, %v3558
    %v3575 = vmul.f32 %v3452, %v3559
    %v3576 = vmul.f32 %v3455, %v3560
    %v3577 = vmul.f32 %v3460, %v3561
    %v3578 = vmul.f32 %v3463, %v3562
    %v3579 = vmul.f32 %v3525, %v3563
    %v3580 = vmul.f32 %v3528, %v3564
    %v3581 = vmul.f32 %v3533, %v3565
    %v3582 = vmul.f32 %v3536, %v3566
    %v3583 = vmul.f32 %v3541, %v3567
    %v3584 = vmul.f32 %v3544, %v3568
    %v3585 = vmul.f32 %v3549, %v3569
    %v3586 = vmul.f32 %v3552, %v3570
    %3603 = vrot.lane.b32.xlu0 %v3571, 64
    %v3604 = vpop.permute.xlu0 %3603
    %3605 = vrot.lane.b32.xlu0 %v3572, 64
    %v3606 = vpop.permute.xlu0 %3605
    %3607 = vrot.lane.b32.xlu0 %v3573, 64
    %v3608 = vpop.permute.xlu0 %3607
    %3609 = vrot.lane.b32.xlu0 %v3574, 64
    %v3610 = vpop.permute.xlu0 %3609
    %3611 = vrot.lane.b32.xlu0 %v3575, 64
    %v3612 = vpop.permute.xlu0 %3611
    %3613 = vrot.lane.b32.xlu0 %v3576, 64
    %v3614 = vpop.permute.xlu0 %3613
    %3615 = vrot.lane.b32.xlu0 %v3577, 64
    %v3616 = vpop.permute.xlu0 %3615
    %3617 = vrot.lane.b32.xlu0 %v3578, 64
    %v3618 = vpop.permute.xlu0 %3617
    %3619 = vrot.lane.b32.xlu0 %v3579, 64
    %v3620 = vpop.permute.xlu0 %3619
    %3621 = vrot.lane.b32.xlu0 %v3580, 64
    %v3622 = vpop.permute.xlu0 %3621
    %3623 = vrot.lane.b32.xlu0 %v3581, 64
    %v3624 = vpop.permute.xlu0 %3623
    %3625 = vrot.lane.b32.xlu0 %v3582, 64
    %v3626 = vpop.permute.xlu0 %3625
    %3627 = vrot.lane.b32.xlu0 %v3583, 64
    %v3628 = vpop.permute.xlu0 %3627
    %3629 = vrot.lane.b32.xlu0 %v3584, 64
    %v3630 = vpop.permute.xlu0 %3629
    %3631 = vrot.lane.b32.xlu0 %v3585, 64
    %v3632 = vpop.permute.xlu0 %3631
    %3633 = vrot.lane.b32.xlu0 %v3586, 64
    %v3634 = vpop.permute.xlu0 %3633
    %vm3651 = vcmask 654848
    %3652 = vst.msk [vmem:[#allocation2] sm:$0xff] %vm3651, %v3604
    %3653 = vst.msk [vmem:[#allocation2 + $0x8] sm:$0xff] %vm3651, %v3606
    %3654 = vst.msk [vmem:[#allocation2 + $0x10] sm:$0xff] %vm3651, %v3608
    %3655 = vst.msk [vmem:[#allocation2 + $0x18] sm:$0xff] %vm3651, %v3610
    %3656 = vst.msk [vmem:[#allocation2 + $0x20] sm:$0xff] %vm3651, %v3612
    %3657 = vst.msk [vmem:[#allocation2 + $0x28] sm:$0xff] %vm3651, %v3614
    %3658 = vst.msk [vmem:[#allocation2 + $0x30] sm:$0xff] %vm3651, %v3616
    %3659 = vst.msk [vmem:[#allocation2 + $0x38] sm:$0xff] %vm3651, %v3618
    %3660 = vst.msk [vmem:[#allocation2 + $0x40] sm:$0xff] %vm3651, %v3620
    %3661 = vst.msk [vmem:[#allocation2 + $0x48] sm:$0xff] %vm3651, %v3622
    %3662 = vst.msk [vmem:[#allocation2 + $0x50] sm:$0xff] %vm3651, %v3624
    %3663 = vst.msk [vmem:[#allocation2 + $0x58] sm:$0xff] %vm3651, %v3626
    %3664 = vst.msk [vmem:[#allocation2 + $0x60] sm:$0xff] %vm3651, %v3628
    %3665 = vst.msk [vmem:[#allocation2 + $0x68] sm:$0xff] %vm3651, %v3630
    %3666 = vst.msk [vmem:[#allocation2 + $0x70] sm:$0xff] %vm3651, %v3632
    %3667 = vst.msk [vmem:[#allocation2 + $0x78] sm:$0xff] %vm3651, %v3634
    %3668 = vrot.lane.b32.xlu0 %v474, 48
    %v3669 = vpop.permute.xlu0 %3668
    %3670 = vrot.lane.b32.xlu0 %v475, 48
    %v3671 = vpop.permute.xlu0 %3670
    %3672 = vrot.lane.b32.xlu0 %v476, 48
    %v3673 = vpop.permute.xlu0 %3672
    %3674 = vrot.lane.b32.xlu0 %v477, 48
    %v3675 = vpop.permute.xlu0 %3674
    %3676 = vrot.lane.b32.xlu0 %v482, 48
    %v3677 = vpop.permute.xlu0 %3676
    %3678 = vrot.lane.b32.xlu0 %v483, 48
    %v3679 = vpop.permute.xlu0 %3678
    %3680 = vrot.lane.b32.xlu0 %v484, 48
    %v3681 = vpop.permute.xlu0 %3680
    %3682 = vrot.lane.b32.xlu0 %v485, 48
    %v3683 = vpop.permute.xlu0 %3682
    %v3685 = vsel %vm498, %v3669, 0
    %v3688 = vsel %vm498, %v3671, 0
    %v3691 = vsel %vm498, %v3673, 0
    %v3694 = vsel %vm498, %v3675, 0
    %v3697 = vsel %vm498, %v3677, 0
    %v3700 = vsel %vm498, %v3679, 0
    %v3703 = vsel %vm498, %v3681, 0
    %v3706 = vsel %vm498, %v3683, 0
    %3708 = vmatprep.subr.bf16.mxu0 0
    %3709 = vmatpush1.bf16.xpose.msra.mxu0 %v3697
    %3710 = vmatprep.subr.bf16.mxu0 0
    %3711 = vmatpush1.bf16.xpose.msra.mxu0 %v3700
    %3712 = vmatprep.subr.bf16.mxu0 0
    %3713 = vmatpush1.bf16.xpose.msra.mxu0 %v3703
    %3714 = vmatprep.subr.bf16.mxu0 0
    %3715 = vmatpush1.bf16.xpose.msra.mxu0 %v3706
    %3716 = vmatprep.subr.bf16.mxu0 0
    %3717 = vmatpush1.bf16.xpose.msra.mxu0 0
    %3718 = vmatprep.subr.bf16.mxu0 0
    %3719 = vmatpush1.bf16.xpose.msra.mxu0 0
    %3720 = vmatprep.subr.bf16.mxu0 0
    %3721 = vmatpush1.bf16.xpose.msra.mxu0 0
    %3722 = vmatprep.subr.bf16.mxu0 0
    %3723 = vmatpush1.bf16.xpose.msra.mxu0 0
    %3724 = vmatprep.subr.bf16.mxu0 0
    %3725 = vmatpush1.bf16.xpose.msra.mxu0 0
    %3726 = vmatprep.subr.bf16.mxu0 0
    %3727 = vmatpush1.bf16.xpose.msra.mxu0 0
    %3728 = vmatprep.subr.bf16.mxu0 0
    %3729 = vmatpush1.bf16.xpose.msra.mxu0 0
    %3730 = vmatprep.subr.bf16.mxu0 0
    %3731 = vmatpush1.bf16.xpose.msra.mxu0 0
    %3732 = vmatprep.subr.bf16.mxu0 0
    %3733 = vmatpush1.bf16.xpose.msra.mxu0 0
    %3734 = vmatprep.subr.bf16.mxu0 0
    %3735 = vmatpush1.bf16.xpose.msra.mxu0 0
    %3736 = vmatprep.subr.bf16.mxu0 0
    %3737 = vmatpush1.bf16.xpose.msra.mxu0 0
    %3738 = vmatprep.subr.bf16.mxu0 0
    %3739 = vmatpush1.bf16.xpose.msra.mxu0 0
    %3740 = vmatprep.mubr.bf16.mxu0 0
    %3741 = vmatmul.mubr.bf16.gmra.mrb[0].mxu0 %v3685
    %v3742 = vpop.f32.mrb[0].mxu0
    %v3743 = vadd.f32 0.0, %v3742
    %v3744 = vpop.f32.mrb[0].mxu0
    %v3745 = vpop.f32.mrb[0].mxu0
    %v3746 = vadd.f32 0.0, %v3745
    %v3747 = vpop.f32.mrb[0].mxu0
    %3748 = vmatprep.mubr.bf16.mxu0 0
    %3749 = vmatmul.mubr.bf16.gmra.mrb[0].mxu0 %v3688
    %v3750 = vpop.f32.mrb[0].mxu0
    %v3751 = vadd.f32 0.0, %v3750
    %v3752 = vpop.f32.mrb[0].mxu0
    %v3753 = vpop.f32.mrb[0].mxu0
    %v3754 = vadd.f32 0.0, %v3753
    %v3755 = vpop.f32.mrb[0].mxu0
    %3756 = vmatprep.mubr.bf16.mxu0 0
    %3757 = vmatmul.mubr.bf16.gmra.mrb[0].mxu0 %v3691
    %v3758 = vpop.f32.mrb[0].mxu0
    %v3759 = vadd.f32 0.0, %v3758
    %v3760 = vpop.f32.mrb[0].mxu0
    %v3761 = vpop.f32.mrb[0].mxu0
    %v3762 = vadd.f32 0.0, %v3761
    %v3763 = vpop.f32.mrb[0].mxu0
    %3764 = vmatprep.mubr.bf16.mxu0 0
    %3765 = vmatmul.mubr.bf16.gmra.mrb[0].mxu0 %v3694
    %v3766 = vpop.f32.mrb[0].mxu0
    %v3767 = vadd.f32 0.0, %v3766
    %v3768 = vpop.f32.mrb[0].mxu0
    %v3769 = vpop.f32.mrb[0].mxu0
    %v3770 = vadd.f32 0.0, %v3769
    %v3771 = vpop.f32.mrb[0].mxu0
    %3772 = vdwg.mxu0
    %3773 = vrot.lane.b32.xlu0 %v478, 48
    %v3774 = vpop.permute.xlu0 %3773
    %3775 = vrot.lane.b32.xlu0 %v479, 48
    %v3776 = vpop.permute.xlu0 %3775
    %3777 = vrot.lane.b32.xlu0 %v480, 48
    %v3778 = vpop.permute.xlu0 %3777
    %3779 = vrot.lane.b32.xlu0 %v481, 48
    %v3780 = vpop.permute.xlu0 %3779
    %3781 = vrot.lane.b32.xlu0 %v486, 48
    %v3782 = vpop.permute.xlu0 %3781
    %3783 = vrot.lane.b32.xlu0 %v487, 48
    %v3784 = vpop.permute.xlu0 %3783
    %3785 = vrot.lane.b32.xlu0 %v488, 48
    %v3786 = vpop.permute.xlu0 %3785
    %3787 = vrot.lane.b32.xlu0 %v489, 48
    %v3788 = vpop.permute.xlu0 %3787
    %v3790 = vsel %vm498, %v3774, 0
    %v3793 = vsel %vm498, %v3776, 0
    %v3796 = vsel %vm498, %v3778, 0
    %v3799 = vsel %vm498, %v3780, 0
    %v3802 = vsel %vm498, %v3782, 0
    %v3805 = vsel %vm498, %v3784, 0
    %v3808 = vsel %vm498, %v3786, 0
    %v3811 = vsel %vm498, %v3788, 0
    %3813 = vmatprep.subr.bf16.mxu0 0
    %3814 = vmatpush1.bf16.xpose.msra.mxu0 %v3802
    %3815 = vmatprep.subr.bf16.mxu0 0
    %3816 = vmatpush1.bf16.xpose.msra.mxu0 %v3805
    %3817 = vmatprep.subr.bf16.mxu0 0
    %3818 = vmatpush1.bf16.xpose.msra.mxu0 %v3808
    %3819 = vmatprep.subr.bf16.mxu0 0
    %3820 = vmatpush1.bf16.xpose.msra.mxu0 %v3811
    %3821 = vmatprep.subr.bf16.mxu0 0
    %3822 = vmatpush1.bf16.xpose.msra.mxu0 0
    %3823 = vmatprep.subr.bf16.mxu0 0
    %3824 = vmatpush1.bf16.xpose.msra.mxu0 0
    %3825 = vmatprep.subr.bf16.mxu0 0
    %3826 = vmatpush1.bf16.xpose.msra.mxu0 0
    %3827 = vmatprep.subr.bf16.mxu0 0
    %3828 = vmatpush1.bf16.xpose.msra.mxu0 0
    %3829 = vmatprep.subr.bf16.mxu0 0
    %3830 = vmatpush1.bf16.xpose.msra.mxu0 0
    %3831 = vmatprep.subr.bf16.mxu0 0
    %3832 = vmatpush1.bf16.xpose.msra.mxu0 0
    %3833 = vmatprep.subr.bf16.mxu0 0
    %3834 = vmatpush1.bf16.xpose.msra.mxu0 0
    %3835 = vmatprep.subr.bf16.mxu0 0
    %3836 = vmatpush1.bf16.xpose.msra.mxu0 0
    %3837 = vmatprep.subr.bf16.mxu0 0
    %3838 = vmatpush1.bf16.xpose.msra.mxu0 0
    %3839 = vmatprep.subr.bf16.mxu0 0
    %3840 = vmatpush1.bf16.xpose.msra.mxu0 0
    %3841 = vmatprep.subr.bf16.mxu0 0
    %3842 = vmatpush1.bf16.xpose.msra.mxu0 0
    %3843 = vmatprep.subr.bf16.mxu0 0
    %3844 = vmatpush1.bf16.xpose.msra.mxu0 0
    %3845 = vmatprep.mubr.bf16.mxu0 0
    %3846 = vmatmul.mubr.bf16.gmra.mrb[0].mxu0 %v3790
    %v3847 = vpop.f32.mrb[0].mxu0
    %v3848 = vadd.f32 0.0, %v3847
    %v3849 = vpop.f32.mrb[0].mxu0
    %v3850 = vpop.f32.mrb[0].mxu0
    %v3851 = vadd.f32 0.0, %v3850
    %v3852 = vpop.f32.mrb[0].mxu0
    %3853 = vmatprep.mubr.bf16.mxu0 0
    %3854 = vmatmul.mubr.bf16.gmra.mrb[0].mxu0 %v3793
    %v3855 = vpop.f32.mrb[0].mxu0
    %v3856 = vadd.f32 0.0, %v3855
    %v3857 = vpop.f32.mrb[0].mxu0
    %v3858 = vpop.f32.mrb[0].mxu0
    %v3859 = vadd.f32 0.0, %v3858
    %v3860 = vpop.f32.mrb[0].mxu0
    %3861 = vmatprep.mubr.bf16.mxu0 0
    %3862 = vmatmul.mubr.bf16.gmra.mrb[0].mxu0 %v3796
    %v3863 = vpop.f32.mrb[0].mxu0
    %v3864 = vadd.f32 0.0, %v3863
    %v3865 = vpop.f32.mrb[0].mxu0
    %v3866 = vpop.f32.mrb[0].mxu0
    %v3867 = vadd.f32 0.0, %v3866
    %v3868 = vpop.f32.mrb[0].mxu0
    %3869 = vmatprep.mubr.bf16.mxu0 0
    %3870 = vmatmul.mubr.bf16.gmra.mrb[0].mxu0 %v3799
    %v3871 = vpop.f32.mrb[0].mxu0
    %v3872 = vadd.f32 0.0, %v3871
    %v3873 = vpop.f32.mrb[0].mxu0
    %v3874 = vpop.f32.mrb[0].mxu0
    %v3875 = vadd.f32 0.0, %v3874
    %v3876 = vpop.f32.mrb[0].mxu0
    %3877 = vdwg.mxu0
    %v3878 = vsel %vm677, %v3743, -inf
    %3879 = vmax.xlane.f32.xlu0 %v3878
    %v3880 = vpop.xlane.xlu0 %3879
    %v3881 = vsel %vm677, %v3746, -inf
    %3882 = vmax.xlane.f32.xlu0 %v3881
    %v3883 = vpop.xlane.xlu0 %3882
    %v3884 = vsel %vm677, %v3751, -inf
    %3885 = vmax.xlane.f32.xlu0 %v3884
    %v3886 = vpop.xlane.xlu0 %3885
    %v3887 = vsel %vm677, %v3754, -inf
    %3888 = vmax.xlane.f32.xlu0 %v3887
    %v3889 = vpop.xlane.xlu0 %3888
    %v3890 = vsel %vm677, %v3759, -inf
    %3891 = vmax.xlane.f32.xlu0 %v3890
    %v3892 = vpop.xlane.xlu0 %3891
    %v3893 = vsel %vm677, %v3762, -inf
    %3894 = vmax.xlane.f32.xlu0 %v3893
    %v3895 = vpop.xlane.xlu0 %3894
    %v3896 = vsel %vm677, %v3767, -inf
    %3897 = vmax.xlane.f32.xlu0 %v3896
    %v3898 = vpop.xlane.xlu0 %3897
    %v3899 = vsel %vm677, %v3770, -inf
    %3900 = vmax.xlane.f32.xlu0 %v3899
    %v3901 = vpop.xlane.xlu0 %3900
    %v3902 = vsel %vm677, %v3848, -inf
    %3903 = vmax.xlane.f32.xlu0 %v3902
    %v3904 = vpop.xlane.xlu0 %3903
    %v3905 = vsel %vm677, %v3851, -inf
    %3906 = vmax.xlane.f32.xlu0 %v3905
    %v3907 = vpop.xlane.xlu0 %3906
    %v3908 = vsel %vm677, %v3856, -inf
    %3909 = vmax.xlane.f32.xlu0 %v3908
    %v3910 = vpop.xlane.xlu0 %3909
    %v3911 = vsel %vm677, %v3859, -inf
    %3912 = vmax.xlane.f32.xlu0 %v3911
    %v3913 = vpop.xlane.xlu0 %3912
    %v3914 = vsel %vm677, %v3864, -inf
    %3915 = vmax.xlane.f32.xlu0 %v3914
    %v3916 = vpop.xlane.xlu0 %3915
    %v3917 = vsel %vm677, %v3867, -inf
    %3918 = vmax.xlane.f32.xlu0 %v3917
    %v3919 = vpop.xlane.xlu0 %3918
    %v3920 = vsel %vm677, %v3872, -inf
    %3921 = vmax.xlane.f32.xlu0 %v3920
    %v3922 = vpop.xlane.xlu0 %3921
    %v3923 = vsel %vm677, %v3875, -inf
    %3924 = vmax.xlane.f32.xlu0 %v3923
    %v3925 = vpop.xlane.xlu0 %3924
    %v3926 = vsub.f32 %v3743, %v3880
    %v3927 = vsub.f32 %v3746, %v3883
    %v3928 = vsub.f32 %v3751, %v3886
    %v3929 = vsub.f32 %v3754, %v3889
    %v3930 = vsub.f32 %v3759, %v3892
    %v3931 = vsub.f32 %v3762, %v3895
    %v3932 = vsub.f32 %v3767, %v3898
    %v3933 = vsub.f32 %v3770, %v3901
    %v3934 = vsub.f32 %v3848, %v3904
    %v3935 = vsub.f32 %v3851, %v3907
    %v3936 = vsub.f32 %v3856, %v3910
    %v3937 = vsub.f32 %v3859, %v3913
    %v3938 = vsub.f32 %v3864, %v3916
    %v3939 = vsub.f32 %v3867, %v3919
    %v3940 = vsub.f32 %v3872, %v3922
    %v3941 = vsub.f32 %v3875, %v3925
    %v3942 = vmul.f32 %v3926, 1.442695
    %v3943 = vpow.pop %v3942
    %v3944 = vmul.f32 %v3927, 1.442695
    %v3945 = vpow.pop %v3944
    %v3946 = vmul.f32 %v3928, 1.442695
    %v3947 = vpow.pop %v3946
    %v3948 = vmul.f32 %v3929, 1.442695
    %v3949 = vpow.pop %v3948
    %v3950 = vmul.f32 %v3930, 1.442695
    %v3951 = vpow.pop %v3950
    %v3952 = vmul.f32 %v3931, 1.442695
    %v3953 = vpow.pop %v3952
    %v3954 = vmul.f32 %v3932, 1.442695
    %v3955 = vpow.pop %v3954
    %v3956 = vmul.f32 %v3933, 1.442695
    %v3957 = vpow.pop %v3956
    %v3958 = vmul.f32 %v3934, 1.442695
    %v3959 = vpow.pop %v3958
    %v3960 = vmul.f32 %v3935, 1.442695
    %v3961 = vpow.pop %v3960
    %v3962 = vmul.f32 %v3936, 1.442695
    %v3963 = vpow.pop %v3962
    %v3964 = vmul.f32 %v3937, 1.442695
    %v3965 = vpow.pop %v3964
    %v3966 = vmul.f32 %v3938, 1.442695
    %v3967 = vpow.pop %v3966
    %v3968 = vmul.f32 %v3939, 1.442695
    %v3969 = vpow.pop %v3968
    %v3970 = vmul.f32 %v3940, 1.442695
    %v3971 = vpow.pop %v3970
    %v3972 = vmul.f32 %v3941, 1.442695
    %v3973 = vpow.pop %v3972
    %v3974 = vsel %vm677, %v3943, 0.0
    %3975 = vadd.xlane.f32.xlu0 %v3974
    %v3976 = vpop.xlane.xlu0 %3975
    %v3977 = vsel %vm677, %v3945, 0.0
    %3978 = vadd.xlane.f32.xlu0 %v3977
    %v3979 = vpop.xlane.xlu0 %3978
    %v3980 = vsel %vm677, %v3947, 0.0
    %3981 = vadd.xlane.f32.xlu0 %v3980
    %v3982 = vpop.xlane.xlu0 %3981
    %v3983 = vsel %vm677, %v3949, 0.0
    %3984 = vadd.xlane.f32.xlu0 %v3983
    %v3985 = vpop.xlane.xlu0 %3984
    %v3986 = vsel %vm677, %v3951, 0.0
    %3987 = vadd.xlane.f32.xlu0 %v3986
    %v3988 = vpop.xlane.xlu0 %3987
    %v3989 = vsel %vm677, %v3953, 0.0
    %3990 = vadd.xlane.f32.xlu0 %v3989
    %v3991 = vpop.xlane.xlu0 %3990
    %v3992 = vsel %vm677, %v3955, 0.0
    %3993 = vadd.xlane.f32.xlu0 %v3992
    %v3994 = vpop.xlane.xlu0 %3993
    %v3995 = vsel %vm677, %v3957, 0.0
    %3996 = vadd.xlane.f32.xlu0 %v3995
    %v3997 = vpop.xlane.xlu0 %3996
    %v3998 = vsel %vm677, %v3959, 0.0
    %3999 = vadd.xlane.f32.xlu0 %v3998
    %v4000 = vpop.xlane.xlu0 %3999
    %v4001 = vsel %vm677, %v3961, 0.0
    %4002 = vadd.xlane.f32.xlu0 %v4001
    %v4003 = vpop.xlane.xlu0 %4002
    %v4004 = vsel %vm677, %v3963, 0.0
    %4005 = vadd.xlane.f32.xlu0 %v4004
    %v4006 = vpop.xlane.xlu0 %4005
    %v4007 = vsel %vm677, %v3965, 0.0
    %4008 = vadd.xlane.f32.xlu0 %v4007
    %v4009 = vpop.xlane.xlu0 %4008
    %v4010 = vsel %vm677, %v3967, 0.0
    %4011 = vadd.xlane.f32.xlu0 %v4010
    %v4012 = vpop.xlane.xlu0 %4011
    %v4013 = vsel %vm677, %v3969, 0.0
    %4014 = vadd.xlane.f32.xlu0 %v4013
    %v4015 = vpop.xlane.xlu0 %4014
    %v4016 = vsel %vm677, %v3971, 0.0
    %4017 = vadd.xlane.f32.xlu0 %v4016
    %v4018 = vpop.xlane.xlu0 %4017
    %v4019 = vsel %vm677, %v3973, 0.0
    %4020 = vadd.xlane.f32.xlu0 %v4019
    %v4021 = vpop.xlane.xlu0 %4020
    %v4022 = vpack.c.bf16 %v3945, %v3943
    %v4023 = vpack.c.bf16 %v3949, %v3947
    %v4024 = vpack.c.bf16 %v3953, %v3951
    %v4025 = vpack.c.bf16 %v3957, %v3955
    %v4026 = vpack.c.bf16 %v3961, %v3959
    %v4027 = vpack.c.bf16 %v3965, %v3963
    %v4028 = vpack.c.bf16 %v3969, %v3967
    %v4029 = vpack.c.bf16 %v3973, %v3971
    %4030 = vrot.lane.b32.xlu0 %v490, 48
    %v4031 = vpop.permute.xlu0 %4030
    %4032 = vrot.lane.b32.xlu0 %v491, 48
    %v4033 = vpop.permute.xlu0 %4032
    %4034 = vrot.lane.b32.xlu0 %v492, 48
    %v4035 = vpop.permute.xlu0 %4034
    %4036 = vrot.lane.b32.xlu0 %v493, 48
    %v4037 = vpop.permute.xlu0 %4036
    %v4043 = vsel %vm677, %v4022, 0
    %v4046 = vsel %vm677, %v4023, 0
    %v4049 = vsel %vm677, %v4024, 0
    %v4052 = vsel %vm677, %v4025, 0
    %4054 = vmatprep.subr.bf16.mxu0 0
    %4055 = vmatpush1.bf16.msra.mxu0 %v4031
    %4056 = vmatprep.subr.bf16.mxu0 0
    %4057 = vmatpush1.bf16.msra.mxu0 %v4033
    %4058 = vmatprep.subr.bf16.mxu0 0
    %4059 = vmatpush1.bf16.msra.mxu0 %v4035
    %4060 = vmatprep.subr.bf16.mxu0 0
    %4061 = vmatpush1.bf16.msra.mxu0 %v4037
    %4062 = vmatprep.subr.bf16.mxu0 0
    %4063 = vmatpush1.bf16.msra.mxu0 0
    %4064 = vmatprep.subr.bf16.mxu0 0
    %4065 = vmatpush1.bf16.msra.mxu0 0
    %4066 = vmatprep.subr.bf16.mxu0 0
    %4067 = vmatpush1.bf16.msra.mxu0 0
    %4068 = vmatprep.subr.bf16.mxu0 0
    %4069 = vmatpush1.bf16.msra.mxu0 0
    %4070 = vmatprep.subr.bf16.mxu0 0
    %4071 = vmatpush1.bf16.msra.mxu0 0
    %4072 = vmatprep.subr.bf16.mxu0 0
    %4073 = vmatpush1.bf16.msra.mxu0 0
    %4074 = vmatprep.subr.bf16.mxu0 0
    %4075 = vmatpush1.bf16.msra.mxu0 0
    %4076 = vmatprep.subr.bf16.mxu0 0
    %4077 = vmatpush1.bf16.msra.mxu0 0
    %4078 = vmatprep.subr.bf16.mxu0 0
    %4079 = vmatpush1.bf16.msra.mxu0 0
    %4080 = vmatprep.subr.bf16.mxu0 0
    %4081 = vmatpush1.bf16.msra.mxu0 0
    %4082 = vmatprep.subr.bf16.mxu0 0
    %4083 = vmatpush1.bf16.msra.mxu0 0
    %4084 = vmatprep.subr.bf16.mxu0 0
    %4085 = vmatpush1.bf16.msra.mxu0 0
    %4086 = vmatprep.mubr.bf16.mxu0 0
    %4087 = vmatmul.mubr.bf16.gmra.mrb[0].mxu0 %v4043
    %v4088 = vpop.f32.mrb[0].mxu0
    %v4089 = vadd.f32 0.0, %v4088
    %v4090 = vpop.f32.mrb[0].mxu0
    %v4091 = vpop.f32.mrb[0].mxu0
    %v4092 = vadd.f32 0.0, %v4091
    %v4093 = vpop.f32.mrb[0].mxu0
    %4094 = vmatprep.mubr.bf16.mxu0 0
    %4095 = vmatmul.mubr.bf16.gmra.mrb[0].mxu0 %v4046
    %v4096 = vpop.f32.mrb[0].mxu0
    %v4097 = vadd.f32 0.0, %v4096
    %v4098 = vpop.f32.mrb[0].mxu0
    %v4099 = vpop.f32.mrb[0].mxu0
    %v4100 = vadd.f32 0.0, %v4099
    %v4101 = vpop.f32.mrb[0].mxu0
    %4102 = vmatprep.mubr.bf16.mxu0 0
    %4103 = vmatmul.mubr.bf16.gmra.mrb[0].mxu0 %v4049
    %v4104 = vpop.f32.mrb[0].mxu0
    %v4105 = vadd.f32 0.0, %v4104
    %v4106 = vpop.f32.mrb[0].mxu0
    %v4107 = vpop.f32.mrb[0].mxu0
    %v4108 = vadd.f32 0.0, %v4107
    %v4109 = vpop.f32.mrb[0].mxu0
    %4110 = vmatprep.mubr.bf16.mxu0 0
    %4111 = vmatmul.mubr.bf16.gmra.mrb[0].mxu0 %v4052
    %v4112 = vpop.f32.mrb[0].mxu0
    %v4113 = vadd.f32 0.0, %v4112
    %v4114 = vpop.f32.mrb[0].mxu0
    %v4115 = vpop.f32.mrb[0].mxu0
    %v4116 = vadd.f32 0.0, %v4115
    %v4117 = vpop.f32.mrb[0].mxu0
    %4118 = vdwg.mxu0
    %4119 = vrot.lane.b32.xlu0 %v494, 48
    %v4120 = vpop.permute.xlu0 %4119
    %4121 = vrot.lane.b32.xlu0 %v495, 48
    %v4122 = vpop.permute.xlu0 %4121
    %4123 = vrot.lane.b32.xlu0 %v496, 48
    %v4124 = vpop.permute.xlu0 %4123
    %4125 = vrot.lane.b32.xlu0 %v497, 48
    %v4126 = vpop.permute.xlu0 %4125
    %v4132 = vsel %vm677, %v4026, 0
    %v4135 = vsel %vm677, %v4027, 0
    %v4138 = vsel %vm677, %v4028, 0
    %v4141 = vsel %vm677, %v4029, 0
    %4143 = vmatprep.subr.bf16.mxu0 0
    %4144 = vmatpush1.bf16.msra.mxu0 %v4120
    %4145 = vmatprep.subr.bf16.mxu0 0
    %4146 = vmatpush1.bf16.msra.mxu0 %v4122
    %4147 = vmatprep.subr.bf16.mxu0 0
    %4148 = vmatpush1.bf16.msra.mxu0 %v4124
    %4149 = vmatprep.subr.bf16.mxu0 0
    %4150 = vmatpush1.bf16.msra.mxu0 %v4126
    %4151 = vmatprep.subr.bf16.mxu0 0
    %4152 = vmatpush1.bf16.msra.mxu0 0
    %4153 = vmatprep.subr.bf16.mxu0 0
    %4154 = vmatpush1.bf16.msra.mxu0 0
    %4155 = vmatprep.subr.bf16.mxu0 0
    %4156 = vmatpush1.bf16.msra.mxu0 0
    %4157 = vmatprep.subr.bf16.mxu0 0
    %4158 = vmatpush1.bf16.msra.mxu0 0
    %4159 = vmatprep.subr.bf16.mxu0 0
    %4160 = vmatpush1.bf16.msra.mxu0 0
    %4161 = vmatprep.subr.bf16.mxu0 0
    %4162 = vmatpush1.bf16.msra.mxu0 0
    %4163 = vmatprep.subr.bf16.mxu0 0
    %4164 = vmatpush1.bf16.msra.mxu0 0
    %4165 = vmatprep.subr.bf16.mxu0 0
    %4166 = vmatpush1.bf16.msra.mxu0 0
    %4167 = vmatprep.subr.bf16.mxu0 0
    %4168 = vmatpush1.bf16.msra.mxu0 0
    %4169 = vmatprep.subr.bf16.mxu0 0
    %4170 = vmatpush1.bf16.msra.mxu0 0
    %4171 = vmatprep.subr.bf16.mxu0 0
    %4172 = vmatpush1.bf16.msra.mxu0 0
    %4173 = vmatprep.subr.bf16.mxu0 0
    %4174 = vmatpush1.bf16.msra.mxu0 0
    %4175 = vmatprep.mubr.bf16.mxu0 0
    %4176 = vmatmul.mubr.bf16.gmra.mrb[0].mxu0 %v4132
    %v4177 = vpop.f32.mrb[0].mxu0
    %v4178 = vadd.f32 0.0, %v4177
    %v4179 = vpop.f32.mrb[0].mxu0
    %v4180 = vpop.f32.mrb[0].mxu0
    %v4181 = vadd.f32 0.0, %v4180
    %v4182 = vpop.f32.mrb[0].mxu0
    %4183 = vmatprep.mubr.bf16.mxu0 0
    %4184 = vmatmul.mubr.bf16.gmra.mrb[0].mxu0 %v4135
    %v4185 = vpop.f32.mrb[0].mxu0
    %v4186 = vadd.f32 0.0, %v4185
    %v4187 = vpop.f32.mrb[0].mxu0
    %v4188 = vpop.f32.mrb[0].mxu0
    %v4189 = vadd.f32 0.0, %v4188
    %v4190 = vpop.f32.mrb[0].mxu0
    %4191 = vmatprep.mubr.bf16.mxu0 0
    %4192 = vmatmul.mubr.bf16.gmra.mrb[0].mxu0 %v4138
    %v4193 = vpop.f32.mrb[0].mxu0
    %v4194 = vadd.f32 0.0, %v4193
    %v4195 = vpop.f32.mrb[0].mxu0
    %v4196 = vpop.f32.mrb[0].mxu0
    %v4197 = vadd.f32 0.0, %v4196
    %v4198 = vpop.f32.mrb[0].mxu0
    %4199 = vmatprep.mubr.bf16.mxu0 0
    %4200 = vmatmul.mubr.bf16.gmra.mrb[0].mxu0 %v4141
    %v4201 = vpop.f32.mrb[0].mxu0
    %v4202 = vadd.f32 0.0, %v4201
    %v4203 = vpop.f32.mrb[0].mxu0
    %v4204 = vpop.f32.mrb[0].mxu0
    %v4205 = vadd.f32 0.0, %v4204
    %v4206 = vpop.f32.mrb[0].mxu0
    %4207 = vdwg.mxu0
    %v4208 = vrcp.pop %v3976
    %v4209 = vrcp.pop %v3979
    %v4210 = vrcp.pop %v3982
    %v4211 = vrcp.pop %v3985
    %v4212 = vrcp.pop %v3988
    %v4213 = vrcp.pop %v3991
    %v4214 = vrcp.pop %v3994
    %v4215 = vrcp.pop %v3997
    %v4216 = vrcp.pop %v4000
    %v4217 = vrcp.pop %v4003
    %v4218 = vrcp.pop %v4006
    %v4219 = vrcp.pop %v4009
    %v4220 = vrcp.pop %v4012
    %v4221 = vrcp.pop %v4015
    %v4222 = vrcp.pop %v4018
    %v4223 = vrcp.pop %v4021
    %v4224 = vmul.f32 %v4089, %v4208
    %v4225 = vmul.f32 %v4092, %v4209
    %v4226 = vmul.f32 %v4097, %v4210
    %v4227 = vmul.f32 %v4100, %v4211
    %v4228 = vmul.f32 %v4105, %v4212
    %v4229 = vmul.f32 %v4108, %v4213
    %v4230 = vmul.f32 %v4113, %v4214
    %v4231 = vmul.f32 %v4116, %v4215
    %v4232 = vmul.f32 %v4178, %v4216
    %v4233 = vmul.f32 %v4181, %v4217
    %v4234 = vmul.f32 %v4186, %v4218
    %v4235 = vmul.f32 %v4189, %v4219
    %v4236 = vmul.f32 %v4194, %v4220
    %v4237 = vmul.f32 %v4197, %v4221
    %v4238 = vmul.f32 %v4202, %v4222
    %v4239 = vmul.f32 %v4205, %v4223
    %4256 = vrot.lane.b32.xlu0 %v4224, 80
    %v4257 = vpop.permute.xlu0 %4256
    %4258 = vrot.lane.b32.xlu0 %v4225, 80
    %v4259 = vpop.permute.xlu0 %4258
    %4260 = vrot.lane.b32.xlu0 %v4226, 80
    %v4261 = vpop.permute.xlu0 %4260
    %4262 = vrot.lane.b32.xlu0 %v4227, 80
    %v4263 = vpop.permute.xlu0 %4262
    %4264 = vrot.lane.b32.xlu0 %v4228, 80
    %v4265 = vpop.permute.xlu0 %4264
    %4266 = vrot.lane.b32.xlu0 %v4229, 80
    %v4267 = vpop.permute.xlu0 %4266
    %4268 = vrot.lane.b32.xlu0 %v4230, 80
    %v4269 = vpop.permute.xlu0 %4268
    %4270 = vrot.lane.b32.xlu0 %v4231, 80
    %v4271 = vpop.permute.xlu0 %4270
    %4272 = vrot.lane.b32.xlu0 %v4232, 80
    %v4273 = vpop.permute.xlu0 %4272
    %4274 = vrot.lane.b32.xlu0 %v4233, 80
    %v4275 = vpop.permute.xlu0 %4274
    %4276 = vrot.lane.b32.xlu0 %v4234, 80
    %v4277 = vpop.permute.xlu0 %4276
    %4278 = vrot.lane.b32.xlu0 %v4235, 80
    %v4279 = vpop.permute.xlu0 %4278
    %4280 = vrot.lane.b32.xlu0 %v4236, 80
    %v4281 = vpop.permute.xlu0 %4280
    %4282 = vrot.lane.b32.xlu0 %v4237, 80
    %v4283 = vpop.permute.xlu0 %4282
    %4284 = vrot.lane.b32.xlu0 %v4238, 80
    %v4285 = vpop.permute.xlu0 %4284
    %4286 = vrot.lane.b32.xlu0 %v4239, 80
    %v4287 = vpop.permute.xlu0 %4286
    %vm4304 = vcmask 786048
    %4305 = vst.msk [vmem:[#allocation2] sm:$0xff] %vm4304, %v4257
    %4306 = vst.msk [vmem:[#allocation2 + $0x8] sm:$0xff] %vm4304, %v4259
    %4307 = vst.msk [vmem:[#allocation2 + $0x10] sm:$0xff] %vm4304, %v4261
    %4308 = vst.msk [vmem:[#allocation2 + $0x18] sm:$0xff] %vm4304, %v4263
    %4309 = vst.msk [vmem:[#allocation2 + $0x20] sm:$0xff] %vm4304, %v4265
    %4310 = vst.msk [vmem:[#allocation2 + $0x28] sm:$0xff] %vm4304, %v4267
    %4311 = vst.msk [vmem:[#allocation2 + $0x30] sm:$0xff] %vm4304, %v4269
    %4312 = vst.msk [vmem:[#allocation2 + $0x38] sm:$0xff] %vm4304, %v4271
    %4313 = vst.msk [vmem:[#allocation2 + $0x40] sm:$0xff] %vm4304, %v4273
    %4314 = vst.msk [vmem:[#allocation2 + $0x48] sm:$0xff] %vm4304, %v4275
    %4315 = vst.msk [vmem:[#allocation2 + $0x50] sm:$0xff] %vm4304, %v4277
    %4316 = vst.msk [vmem:[#allocation2 + $0x58] sm:$0xff] %vm4304, %v4279
    %4317 = vst.msk [vmem:[#allocation2 + $0x60] sm:$0xff] %vm4304, %v4281
    %4318 = vst.msk [vmem:[#allocation2 + $0x68] sm:$0xff] %vm4304, %v4283
    %4319 = vst.msk [vmem:[#allocation2 + $0x70] sm:$0xff] %vm4304, %v4285
    %4320 = vst.msk [vmem:[#allocation2 + $0x78] sm:$0xff] %vm4304, %v4287
    %4321 = vrot.lane.b32.xlu0 %v474, 32
    %v4322 = vpop.permute.xlu0 %4321
    %4323 = vrot.lane.b32.xlu0 %v475, 32
    %v4324 = vpop.permute.xlu0 %4323
    %4325 = vrot.lane.b32.xlu0 %v476, 32
    %v4326 = vpop.permute.xlu0 %4325
    %4327 = vrot.lane.b32.xlu0 %v477, 32
    %v4328 = vpop.permute.xlu0 %4327
    %4329 = vrot.lane.b32.xlu0 %v482, 32
    %v4330 = vpop.permute.xlu0 %4329
    %4331 = vrot.lane.b32.xlu0 %v483, 32
    %v4332 = vpop.permute.xlu0 %4331
    %4333 = vrot.lane.b32.xlu0 %v484, 32
    %v4334 = vpop.permute.xlu0 %4333
    %4335 = vrot.lane.b32.xlu0 %v485, 32
    %v4336 = vpop.permute.xlu0 %4335
    %v4338 = vsel %vm498, %v4322, 0
    %v4341 = vsel %vm498, %v4324, 0
    %v4344 = vsel %vm498, %v4326, 0
    %v4347 = vsel %vm498, %v4328, 0
    %v4350 = vsel %vm498, %v4330, 0
    %v4353 = vsel %vm498, %v4332, 0
    %v4356 = vsel %vm498, %v4334, 0
    %v4359 = vsel %vm498, %v4336, 0
    %4361 = vmatprep.subr.bf16.mxu0 0
    %4362 = vmatpush1.bf16.xpose.msra.mxu0 %v4350
    %4363 = vmatprep.subr.bf16.mxu0 0
    %4364 = vmatpush1.bf16.xpose.msra.mxu0 %v4353
    %4365 = vmatprep.subr.bf16.mxu0 0
    %4366 = vmatpush1.bf16.xpose.msra.mxu0 %v4356
    %4367 = vmatprep.subr.bf16.mxu0 0
    %4368 = vmatpush1.bf16.xpose.msra.mxu0 %v4359
    %4369 = vmatprep.subr.bf16.mxu0 0
    %4370 = vmatpush1.bf16.xpose.msra.mxu0 0
    %4371 = vmatprep.subr.bf16.mxu0 0
    %4372 = vmatpush1.bf16.xpose.msra.mxu0 0
    %4373 = vmatprep.subr.bf16.mxu0 0
    %4374 = vmatpush1.bf16.xpose.msra.mxu0 0
    %4375 = vmatprep.subr.bf16.mxu0 0
    %4376 = vmatpush1.bf16.xpose.msra.mxu0 0
    %4377 = vmatprep.subr.bf16.mxu0 0
    %4378 = vmatpush1.bf16.xpose.msra.mxu0 0
    %4379 = vmatprep.subr.bf16.mxu0 0
    %4380 = vmatpush1.bf16.xpose.msra.mxu0 0
    %4381 = vmatprep.subr.bf16.mxu0 0
    %4382 = vmatpush1.bf16.xpose.msra.mxu0 0
    %4383 = vmatprep.subr.bf16.mxu0 0
    %4384 = vmatpush1.bf16.xpose.msra.mxu0 0
    %4385 = vmatprep.subr.bf16.mxu0 0
    %4386 = vmatpush1.bf16.xpose.msra.mxu0 0
    %4387 = vmatprep.subr.bf16.mxu0 0
    %4388 = vmatpush1.bf16.xpose.msra.mxu0 0
    %4389 = vmatprep.subr.bf16.mxu0 0
    %4390 = vmatpush1.bf16.xpose.msra.mxu0 0
    %4391 = vmatprep.subr.bf16.mxu0 0
    %4392 = vmatpush1.bf16.xpose.msra.mxu0 0
    %4393 = vmatprep.mubr.bf16.mxu0 0
    %4394 = vmatmul.mubr.bf16.gmra.mrb[0].mxu0 %v4338
    %v4395 = vpop.f32.mrb[0].mxu0
    %v4396 = vadd.f32 0.0, %v4395
    %v4397 = vpop.f32.mrb[0].mxu0
    %v4398 = vpop.f32.mrb[0].mxu0
    %v4399 = vadd.f32 0.0, %v4398
    %v4400 = vpop.f32.mrb[0].mxu0
    %4401 = vmatprep.mubr.bf16.mxu0 0
    %4402 = vmatmul.mubr.bf16.gmra.mrb[0].mxu0 %v4341
    %v4403 = vpop.f32.mrb[0].mxu0
    %v4404 = vadd.f32 0.0, %v4403
    %v4405 = vpop.f32.mrb[0].mxu0
    %v4406 = vpop.f32.mrb[0].mxu0
    %v4407 = vadd.f32 0.0, %v4406
    %v4408 = vpop.f32.mrb[0].mxu0
    %4409 = vmatprep.mubr.bf16.mxu0 0
    %4410 = vmatmul.mubr.bf16.gmra.mrb[0].mxu0 %v4344
    %v4411 = vpop.f32.mrb[0].mxu0
    %v4412 = vadd.f32 0.0, %v4411
    %v4413 = vpop.f32.mrb[0].mxu0
    %v4414 = vpop.f32.mrb[0].mxu0
    %v4415 = vadd.f32 0.0, %v4414
    %v4416 = vpop.f32.mrb[0].mxu0
    %4417 = vmatprep.mubr.bf16.mxu0 0
    %4418 = vmatmul.mubr.bf16.gmra.mrb[0].mxu0 %v4347
    %v4419 = vpop.f32.mrb[0].mxu0
    %v4420 = vadd.f32 0.0, %v4419
    %v4421 = vpop.f32.mrb[0].mxu0
    %v4422 = vpop.f32.mrb[0].mxu0
    %v4423 = vadd.f32 0.0, %v4422
    %v4424 = vpop.f32.mrb[0].mxu0
    %4425 = vdwg.mxu0
    %4426 = vrot.lane.b32.xlu0 %v478, 32
    %v4427 = vpop.permute.xlu0 %4426
    %4428 = vrot.lane.b32.xlu0 %v479, 32
    %v4429 = vpop.permute.xlu0 %4428
    %4430 = vrot.lane.b32.xlu0 %v480, 32
    %v4431 = vpop.permute.xlu0 %4430
    %4432 = vrot.lane.b32.xlu0 %v481, 32
    %v4433 = vpop.permute.xlu0 %4432
    %4434 = vrot.lane.b32.xlu0 %v486, 32
    %v4435 = vpop.permute.xlu0 %4434
    %4436 = vrot.lane.b32.xlu0 %v487, 32
    %v4437 = vpop.permute.xlu0 %4436
    %4438 = vrot.lane.b32.xlu0 %v488, 32
    %v4439 = vpop.permute.xlu0 %4438
    %4440 = vrot.lane.b32.xlu0 %v489, 32
    %v4441 = vpop.permute.xlu0 %4440
    %v4443 = vsel %vm498, %v4427, 0
    %v4446 = vsel %vm498, %v4429, 0
    %v4449 = vsel %vm498, %v4431, 0
    %v4452 = vsel %vm498, %v4433, 0
    %v4455 = vsel %vm498, %v4435, 0
    %v4458 = vsel %vm498, %v4437, 0
    %v4461 = vsel %vm498, %v4439, 0
    %v4464 = vsel %vm498, %v4441, 0
    %4466 = vmatprep.subr.bf16.mxu0 0
    %4467 = vmatpush1.bf16.xpose.msra.mxu0 %v4455
    %4468 = vmatprep.subr.bf16.mxu0 0
    %4469 = vmatpush1.bf16.xpose.msra.mxu0 %v4458
    %4470 = vmatprep.subr.bf16.mxu0 0
    %4471 = vmatpush1.bf16.xpose.msra.mxu0 %v4461
    %4472 = vmatprep.subr.bf16.mxu0 0
    %4473 = vmatpush1.bf16.xpose.msra.mxu0 %v4464
    %4474 = vmatprep.subr.bf16.mxu0 0
    %4475 = vmatpush1.bf16.xpose.msra.mxu0 0
    %4476 = vmatprep.subr.bf16.mxu0 0
    %4477 = vmatpush1.bf16.xpose.msra.mxu0 0
    %4478 = vmatprep.subr.bf16.mxu0 0
    %4479 = vmatpush1.bf16.xpose.msra.mxu0 0
    %4480 = vmatprep.subr.bf16.mxu0 0
    %4481 = vmatpush1.bf16.xpose.msra.mxu0 0
    %4482 = vmatprep.subr.bf16.mxu0 0
    %4483 = vmatpush1.bf16.xpose.msra.mxu0 0
    %4484 = vmatprep.subr.bf16.mxu0 0
    %4485 = vmatpush1.bf16.xpose.msra.mxu0 0
    %4486 = vmatprep.subr.bf16.mxu0 0
    %4487 = vmatpush1.bf16.xpose.msra.mxu0 0
    %4488 = vmatprep.subr.bf16.mxu0 0
    %4489 = vmatpush1.bf16.xpose.msra.mxu0 0
    %4490 = vmatprep.subr.bf16.mxu0 0
    %4491 = vmatpush1.bf16.xpose.msra.mxu0 0
    %4492 = vmatprep.subr.bf16.mxu0 0
    %4493 = vmatpush1.bf16.xpose.msra.mxu0 0
    %4494 = vmatprep.subr.bf16.mxu0 0
    %4495 = vmatpush1.bf16.xpose.msra.mxu0 0
    %4496 = vmatprep.subr.bf16.mxu0 0
    %4497 = vmatpush1.bf16.xpose.msra.mxu0 0
    %4498 = vmatprep.mubr.bf16.mxu0 0
    %4499 = vmatmul.mubr.bf16.gmra.mrb[0].mxu0 %v4443
    %v4500 = vpop.f32.mrb[0].mxu0
    %v4501 = vadd.f32 0.0, %v4500
    %v4502 = vpop.f32.mrb[0].mxu0
    %v4503 = vpop.f32.mrb[0].mxu0
    %v4504 = vadd.f32 0.0, %v4503
    %v4505 = vpop.f32.mrb[0].mxu0
    %4506 = vmatprep.mubr.bf16.mxu0 0
    %4507 = vmatmul.mubr.bf16.gmra.mrb[0].mxu0 %v4446
    %v4508 = vpop.f32.mrb[0].mxu0
    %v4509 = vadd.f32 0.0, %v4508
    %v4510 = vpop.f32.mrb[0].mxu0
    %v4511 = vpop.f32.mrb[0].mxu0
    %v4512 = vadd.f32 0.0, %v4511
    %v4513 = vpop.f32.mrb[0].mxu0
    %4514 = vmatprep.mubr.bf16.mxu0 0
    %4515 = vmatmul.mubr.bf16.gmra.mrb[0].mxu0 %v4449
    %v4516 = vpop.f32.mrb[0].mxu0
    %v4517 = vadd.f32 0.0, %v4516
    %v4518 = vpop.f32.mrb[0].mxu0
    %v4519 = vpop.f32.mrb[0].mxu0
    %v4520 = vadd.f32 0.0, %v4519
    %v4521 = vpop.f32.mrb[0].mxu0
    %4522 = vmatprep.mubr.bf16.mxu0 0
    %4523 = vmatmul.mubr.bf16.gmra.mrb[0].mxu0 %v4452
    %v4524 = vpop.f32.mrb[0].mxu0
    %v4525 = vadd.f32 0.0, %v4524
    %v4526 = vpop.f32.mrb[0].mxu0
    %v4527 = vpop.f32.mrb[0].mxu0
    %v4528 = vadd.f32 0.0, %v4527
    %v4529 = vpop.f32.mrb[0].mxu0
    %4530 = vdwg.mxu0
    %v4531 = vsel %vm677, %v4396, -inf
    %4532 = vmax.xlane.f32.xlu0 %v4531
    %v4533 = vpop.xlane.xlu0 %4532
    %v4534 = vsel %vm677, %v4399, -inf
    %4535 = vmax.xlane.f32.xlu0 %v4534
    %v4536 = vpop.xlane.xlu0 %4535
    %v4537 = vsel %vm677, %v4404, -inf
    %4538 = vmax.xlane.f32.xlu0 %v4537
    %v4539 = vpop.xlane.xlu0 %4538
    %v4540 = vsel %vm677, %v4407, -inf
    %4541 = vmax.xlane.f32.xlu0 %v4540
    %v4542 = vpop.xlane.xlu0 %4541
    %v4543 = vsel %vm677, %v4412, -inf
    %4544 = vmax.xlane.f32.xlu0 %v4543
    %v4545 = vpop.xlane.xlu0 %4544
    %v4546 = vsel %vm677, %v4415, -inf
    %4547 = vmax.xlane.f32.xlu0 %v4546
    %v4548 = vpop.xlane.xlu0 %4547
    %v4549 = vsel %vm677, %v4420, -inf
    %4550 = vmax.xlane.f32.xlu0 %v4549
    %v4551 = vpop.xlane.xlu0 %4550
    %v4552 = vsel %vm677, %v4423, -inf
    %4553 = vmax.xlane.f32.xlu0 %v4552
    %v4554 = vpop.xlane.xlu0 %4553
    %v4555 = vsel %vm677, %v4501, -inf
    %4556 = vmax.xlane.f32.xlu0 %v4555
    %v4557 = vpop.xlane.xlu0 %4556
    %v4558 = vsel %vm677, %v4504, -inf
    %4559 = vmax.xlane.f32.xlu0 %v4558
    %v4560 = vpop.xlane.xlu0 %4559
    %v4561 = vsel %vm677, %v4509, -inf
    %4562 = vmax.xlane.f32.xlu0 %v4561
    %v4563 = vpop.xlane.xlu0 %4562
    %v4564 = vsel %vm677, %v4512, -inf
    %4565 = vmax.xlane.f32.xlu0 %v4564
    %v4566 = vpop.xlane.xlu0 %4565
    %v4567 = vsel %vm677, %v4517, -inf
    %4568 = vmax.xlane.f32.xlu0 %v4567
    %v4569 = vpop.xlane.xlu0 %4568
    %v4570 = vsel %vm677, %v4520, -inf
    %4571 = vmax.xlane.f32.xlu0 %v4570
    %v4572 = vpop.xlane.xlu0 %4571
    %v4573 = vsel %vm677, %v4525, -inf
    %4574 = vmax.xlane.f32.xlu0 %v4573
    %v4575 = vpop.xlane.xlu0 %4574
    %v4576 = vsel %vm677, %v4528, -inf
    %4577 = vmax.xlane.f32.xlu0 %v4576
    %v4578 = vpop.xlane.xlu0 %4577
    %v4579 = vsub.f32 %v4396, %v4533
    %v4580 = vsub.f32 %v4399, %v4536
    %v4581 = vsub.f32 %v4404, %v4539
    %v4582 = vsub.f32 %v4407, %v4542
    %v4583 = vsub.f32 %v4412, %v4545
    %v4584 = vsub.f32 %v4415, %v4548
    %v4585 = vsub.f32 %v4420, %v4551
    %v4586 = vsub.f32 %v4423, %v4554
    %v4587 = vsub.f32 %v4501, %v4557
    %v4588 = vsub.f32 %v4504, %v4560
    %v4589 = vsub.f32 %v4509, %v4563
    %v4590 = vsub.f32 %v4512, %v4566
    %v4591 = vsub.f32 %v4517, %v4569
    %v4592 = vsub.f32 %v4520, %v4572
    %v4593 = vsub.f32 %v4525, %v4575
    %v4594 = vsub.f32 %v4528, %v4578
    %v4595 = vmul.f32 %v4579, 1.442695
    %v4596 = vpow.pop %v4595
    %v4597 = vmul.f32 %v4580, 1.442695
    %v4598 = vpow.pop %v4597
    %v4599 = vmul.f32 %v4581, 1.442695
    %v4600 = vpow.pop %v4599
    %v4601 = vmul.f32 %v4582, 1.442695
    %v4602 = vpow.pop %v4601
    %v4603 = vmul.f32 %v4583, 1.442695
    %v4604 = vpow.pop %v4603
    %v4605 = vmul.f32 %v4584, 1.442695
    %v4606 = vpow.pop %v4605
    %v4607 = vmul.f32 %v4585, 1.442695
    %v4608 = vpow.pop %v4607
    %v4609 = vmul.f32 %v4586, 1.442695
    %v4610 = vpow.pop %v4609
    %v4611 = vmul.f32 %v4587, 1.442695
    %v4612 = vpow.pop %v4611
    %v4613 = vmul.f32 %v4588, 1.442695
    %v4614 = vpow.pop %v4613
    %v4615 = vmul.f32 %v4589, 1.442695
    %v4616 = vpow.pop %v4615
    %v4617 = vmul.f32 %v4590, 1.442695
    %v4618 = vpow.pop %v4617
    %v4619 = vmul.f32 %v4591, 1.442695
    %v4620 = vpow.pop %v4619
    %v4621 = vmul.f32 %v4592, 1.442695
    %v4622 = vpow.pop %v4621
    %v4623 = vmul.f32 %v4593, 1.442695
    %v4624 = vpow.pop %v4623
    %v4625 = vmul.f32 %v4594, 1.442695
    %v4626 = vpow.pop %v4625
    %v4627 = vsel %vm677, %v4596, 0.0
    %4628 = vadd.xlane.f32.xlu0 %v4627
    %v4629 = vpop.xlane.xlu0 %4628
    %v4630 = vsel %vm677, %v4598, 0.0
    %4631 = vadd.xlane.f32.xlu0 %v4630
    %v4632 = vpop.xlane.xlu0 %4631
    %v4633 = vsel %vm677, %v4600, 0.0
    %4634 = vadd.xlane.f32.xlu0 %v4633
    %v4635 = vpop.xlane.xlu0 %4634
    %v4636 = vsel %vm677, %v4602, 0.0
    %4637 = vadd.xlane.f32.xlu0 %v4636
    %v4638 = vpop.xlane.xlu0 %4637
    %v4639 = vsel %vm677, %v4604, 0.0
    %4640 = vadd.xlane.f32.xlu0 %v4639
    %v4641 = vpop.xlane.xlu0 %4640
    %v4642 = vsel %vm677, %v4606, 0.0
    %4643 = vadd.xlane.f32.xlu0 %v4642
    %v4644 = vpop.xlane.xlu0 %4643
    %v4645 = vsel %vm677, %v4608, 0.0
    %4646 = vadd.xlane.f32.xlu0 %v4645
    %v4647 = vpop.xlane.xlu0 %4646
    %v4648 = vsel %vm677, %v4610, 0.0
    %4649 = vadd.xlane.f32.xlu0 %v4648
    %v4650 = vpop.xlane.xlu0 %4649
    %v4651 = vsel %vm677, %v4612, 0.0
    %4652 = vadd.xlane.f32.xlu0 %v4651
    %v4653 = vpop.xlane.xlu0 %4652
    %v4654 = vsel %vm677, %v4614, 0.0
    %4655 = vadd.xlane.f32.xlu0 %v4654
    %v4656 = vpop.xlane.xlu0 %4655
    %v4657 = vsel %vm677, %v4616, 0.0
    %4658 = vadd.xlane.f32.xlu0 %v4657
    %v4659 = vpop.xlane.xlu0 %4658
    %v4660 = vsel %vm677, %v4618, 0.0
    %4661 = vadd.xlane.f32.xlu0 %v4660
    %v4662 = vpop.xlane.xlu0 %4661
    %v4663 = vsel %vm677, %v4620, 0.0
    %4664 = vadd.xlane.f32.xlu0 %v4663
    %v4665 = vpop.xlane.xlu0 %4664
    %v4666 = vsel %vm677, %v4622, 0.0
    %4667 = vadd.xlane.f32.xlu0 %v4666
    %v4668 = vpop.xlane.xlu0 %4667
    %v4669 = vsel %vm677, %v4624, 0.0
    %4670 = vadd.xlane.f32.xlu0 %v4669
    %v4671 = vpop.xlane.xlu0 %4670
    %v4672 = vsel %vm677, %v4626, 0.0
    %4673 = vadd.xlane.f32.xlu0 %v4672
    %v4674 = vpop.xlane.xlu0 %4673
    %v4675 = vpack.c.bf16 %v4598, %v4596
    %v4676 = vpack.c.bf16 %v4602, %v4600
    %v4677 = vpack.c.bf16 %v4606, %v4604
    %v4678 = vpack.c.bf16 %v4610, %v4608
    %v4679 = vpack.c.bf16 %v4614, %v4612
    %v4680 = vpack.c.bf16 %v4618, %v4616
    %v4681 = vpack.c.bf16 %v4622, %v4620
    %v4682 = vpack.c.bf16 %v4626, %v4624
    %4683 = vrot.lane.b32.xlu0 %v490, 32
    %v4684 = vpop.permute.xlu0 %4683
    %4685 = vrot.lane.b32.xlu0 %v491, 32
    %v4686 = vpop.permute.xlu0 %4685
    %4687 = vrot.lane.b32.xlu0 %v492, 32
    %v4688 = vpop.permute.xlu0 %4687
    %4689 = vrot.lane.b32.xlu0 %v493, 32
    %v4690 = vpop.permute.xlu0 %4689
    %v4696 = vsel %vm677, %v4675, 0
    %v4699 = vsel %vm677, %v4676, 0
    %v4702 = vsel %vm677, %v4677, 0
    %v4705 = vsel %vm677, %v4678, 0
    %4707 = vmatprep.subr.bf16.mxu0 0
    %4708 = vmatpush1.bf16.msra.mxu0 %v4684
    %4709 = vmatprep.subr.bf16.mxu0 0
    %4710 = vmatpush1.bf16.msra.mxu0 %v4686
    %4711 = vmatprep.subr.bf16.mxu0 0
    %4712 = vmatpush1.bf16.msra.mxu0 %v4688
    %4713 = vmatprep.subr.bf16.mxu0 0
    %4714 = vmatpush1.bf16.msra.mxu0 %v4690
    %4715 = vmatprep.subr.bf16.mxu0 0
    %4716 = vmatpush1.bf16.msra.mxu0 0
    %4717 = vmatprep.subr.bf16.mxu0 0
    %4718 = vmatpush1.bf16.msra.mxu0 0
    %4719 = vmatprep.subr.bf16.mxu0 0
    %4720 = vmatpush1.bf16.msra.mxu0 0
    %4721 = vmatprep.subr.bf16.mxu0 0
    %4722 = vmatpush1.bf16.msra.mxu0 0
    %4723 = vmatprep.subr.bf16.mxu0 0
    %4724 = vmatpush1.bf16.msra.mxu0 0
    %4725 = vmatprep.subr.bf16.mxu0 0
    %4726 = vmatpush1.bf16.msra.mxu0 0
    %4727 = vmatprep.subr.bf16.mxu0 0
    %4728 = vmatpush1.bf16.msra.mxu0 0
    %4729 = vmatprep.subr.bf16.mxu0 0
    %4730 = vmatpush1.bf16.msra.mxu0 0
    %4731 = vmatprep.subr.bf16.mxu0 0
    %4732 = vmatpush1.bf16.msra.mxu0 0
    %4733 = vmatprep.subr.bf16.mxu0 0
    %4734 = vmatpush1.bf16.msra.mxu0 0
    %4735 = vmatprep.subr.bf16.mxu0 0
    %4736 = vmatpush1.bf16.msra.mxu0 0
    %4737 = vmatprep.subr.bf16.mxu0 0
    %4738 = vmatpush1.bf16.msra.mxu0 0
    %4739 = vmatprep.mubr.bf16.mxu0 0
    %4740 = vmatmul.mubr.bf16.gmra.mrb[0].mxu0 %v4696
    %v4741 = vpop.f32.mrb[0].mxu0
    %v4742 = vadd.f32 0.0, %v4741
    %v4743 = vpop.f32.mrb[0].mxu0
    %v4744 = vpop.f32.mrb[0].mxu0
    %v4745 = vadd.f32 0.0, %v4744
    %v4746 = vpop.f32.mrb[0].mxu0
    %4747 = vmatprep.mubr.bf16.mxu0 0
    %4748 = vmatmul.mubr.bf16.gmra.mrb[0].mxu0 %v4699
    %v4749 = vpop.f32.mrb[0].mxu0
    %v4750 = vadd.f32 0.0, %v4749
    %v4751 = vpop.f32.mrb[0].mxu0
    %v4752 = vpop.f32.mrb[0].mxu0
    %v4753 = vadd.f32 0.0, %v4752
    %v4754 = vpop.f32.mrb[0].mxu0
    %4755 = vmatprep.mubr.bf16.mxu0 0
    %4756 = vmatmul.mubr.bf16.gmra.mrb[0].mxu0 %v4702
    %v4757 = vpop.f32.mrb[0].mxu0
    %v4758 = vadd.f32 0.0, %v4757
    %v4759 = vpop.f32.mrb[0].mxu0
    %v4760 = vpop.f32.mrb[0].mxu0
    %v4761 = vadd.f32 0.0, %v4760
    %v4762 = vpop.f32.mrb[0].mxu0
    %4763 = vmatprep.mubr.bf16.mxu0 0
    %4764 = vmatmul.mubr.bf16.gmra.mrb[0].mxu0 %v4705
    %v4765 = vpop.f32.mrb[0].mxu0
    %v4766 = vadd.f32 0.0, %v4765
    %v4767 = vpop.f32.mrb[0].mxu0
    %v4768 = vpop.f32.mrb[0].mxu0
    %v4769 = vadd.f32 0.0, %v4768
    %v4770 = vpop.f32.mrb[0].mxu0
    %4771 = vdwg.mxu0
    %4772 = vrot.lane.b32.xlu0 %v494, 32
    %v4773 = vpop.permute.xlu0 %4772
    %4774 = vrot.lane.b32.xlu0 %v495, 32
    %v4775 = vpop.permute.xlu0 %4774
    %4776 = vrot.lane.b32.xlu0 %v496, 32
    %v4777 = vpop.permute.xlu0 %4776
    %4778 = vrot.lane.b32.xlu0 %v497, 32
    %v4779 = vpop.permute.xlu0 %4778
    %v4785 = vsel %vm677, %v4679, 0
    %v4788 = vsel %vm677, %v4680, 0
    %v4791 = vsel %vm677, %v4681, 0
    %v4794 = vsel %vm677, %v4682, 0
    %4796 = vmatprep.subr.bf16.mxu0 0
    %4797 = vmatpush1.bf16.msra.mxu0 %v4773
    %4798 = vmatprep.subr.bf16.mxu0 0
    %4799 = vmatpush1.bf16.msra.mxu0 %v4775
    %4800 = vmatprep.subr.bf16.mxu0 0
    %4801 = vmatpush1.bf16.msra.mxu0 %v4777
    %4802 = vmatprep.subr.bf16.mxu0 0
    %4803 = vmatpush1.bf16.msra.mxu0 %v4779
    %4804 = vmatprep.subr.bf16.mxu0 0
    %4805 = vmatpush1.bf16.msra.mxu0 0
    %4806 = vmatprep.subr.bf16.mxu0 0
    %4807 = vmatpush1.bf16.msra.mxu0 0
    %4808 = vmatprep.subr.bf16.mxu0 0
    %4809 = vmatpush1.bf16.msra.mxu0 0
    %4810 = vmatprep.subr.bf16.mxu0 0
    %4811 = vmatpush1.bf16.msra.mxu0 0
    %4812 = vmatprep.subr.bf16.mxu0 0
    %4813 = vmatpush1.bf16.msra.mxu0 0
    %4814 = vmatprep.subr.bf16.mxu0 0
    %4815 = vmatpush1.bf16.msra.mxu0 0
    %4816 = vmatprep.subr.bf16.mxu0 0
    %4817 = vmatpush1.bf16.msra.mxu0 0
    %4818 = vmatprep.subr.bf16.mxu0 0
    %4819 = vmatpush1.bf16.msra.mxu0 0
    %4820 = vmatprep.subr.bf16.mxu0 0
    %4821 = vmatpush1.bf16.msra.mxu0 0
    %4822 = vmatprep.subr.bf16.mxu0 0
    %4823 = vmatpush1.bf16.msra.mxu0 0
    %4824 = vmatprep.subr.bf16.mxu0 0
    %4825 = vmatpush1.bf16.msra.mxu0 0
    %4826 = vmatprep.subr.bf16.mxu0 0
    %4827 = vmatpush1.bf16.msra.mxu0 0
    %4828 = vmatprep.mubr.bf16.mxu0 0
    %4829 = vmatmul.mubr.bf16.gmra.mrb[0].mxu0 %v4785
    %v4830 = vpop.f32.mrb[0].mxu0
    %v4831 = vadd.f32 0.0, %v4830
    %v4832 = vpop.f32.mrb[0].mxu0
    %v4833 = vpop.f32.mrb[0].mxu0
    %v4834 = vadd.f32 0.0, %v4833
    %v4835 = vpop.f32.mrb[0].mxu0
    %4836 = vmatprep.mubr.bf16.mxu0 0
    %4837 = vmatmul.mubr.bf16.gmra.mrb[0].mxu0 %v4788
    %v4838 = vpop.f32.mrb[0].mxu0
    %v4839 = vadd.f32 0.0, %v4838
    %v4840 = vpop.f32.mrb[0].mxu0
    %v4841 = vpop.f32.mrb[0].mxu0
    %v4842 = vadd.f32 0.0, %v4841
    %v4843 = vpop.f32.mrb[0].mxu0
    %4844 = vmatprep.mubr.bf16.mxu0 0
    %4845 = vmatmul.mubr.bf16.gmra.mrb[0].mxu0 %v4791
    %v4846 = vpop.f32.mrb[0].mxu0
    %v4847 = vadd.f32 0.0, %v4846
    %v4848 = vpop.f32.mrb[0].mxu0
    %v4849 = vpop.f32.mrb[0].mxu0
    %v4850 = vadd.f32 0.0, %v4849
    %v4851 = vpop.f32.mrb[0].mxu0
    %4852 = vmatprep.mubr.bf16.mxu0 0
    %4853 = vmatmul.mubr.bf16.gmra.mrb[0].mxu0 %v4794
    %v4854 = vpop.f32.mrb[0].mxu0
    %v4855 = vadd.f32 0.0, %v4854
    %v4856 = vpop.f32.mrb[0].mxu0
    %v4857 = vpop.f32.mrb[0].mxu0
    %v4858 = vadd.f32 0.0, %v4857
    %v4859 = vpop.f32.mrb[0].mxu0
    %4860 = vdwg.mxu0
    %v4861 = vrcp.pop %v4629
    %v4862 = vrcp.pop %v4632
    %v4863 = vrcp.pop %v4635
    %v4864 = vrcp.pop %v4638
    %v4865 = vrcp.pop %v4641
    %v4866 = vrcp.pop %v4644
    %v4867 = vrcp.pop %v4647
    %v4868 = vrcp.pop %v4650
    %v4869 = vrcp.pop %v4653
    %v4870 = vrcp.pop %v4656
    %v4871 = vrcp.pop %v4659
    %v4872 = vrcp.pop %v4662
    %v4873 = vrcp.pop %v4665
    %v4874 = vrcp.pop %v4668
    %v4875 = vrcp.pop %v4671
    %v4876 = vrcp.pop %v4674
    %v4877 = vmul.f32 %v4742, %v4861
    %v4878 = vmul.f32 %v4745, %v4862
    %v4879 = vmul.f32 %v4750, %v4863
    %v4880 = vmul.f32 %v4753, %v4864
    %v4881 = vmul.f32 %v4758, %v4865
    %v4882 = vmul.f32 %v4761, %v4866
    %v4883 = vmul.f32 %v4766, %v4867
    %v4884 = vmul.f32 %v4769, %v4868
    %v4885 = vmul.f32 %v4831, %v4869
    %v4886 = vmul.f32 %v4834, %v4870
    %v4887 = vmul.f32 %v4839, %v4871
    %v4888 = vmul.f32 %v4842, %v4872
    %v4889 = vmul.f32 %v4847, %v4873
    %v4890 = vmul.f32 %v4850, %v4874
    %v4891 = vmul.f32 %v4855, %v4875
    %v4892 = vmul.f32 %v4858, %v4876
    %4909 = vrot.lane.b32.xlu0 %v4877, 96
    %v4910 = vpop.permute.xlu0 %4909
    %4911 = vrot.lane.b32.xlu0 %v4878, 96
    %v4912 = vpop.permute.xlu0 %4911
    %4913 = vrot.lane.b32.xlu0 %v4879, 96
    %v4914 = vpop.permute.xlu0 %4913
    %4915 = vrot.lane.b32.xlu0 %v4880, 96
    %v4916 = vpop.permute.xlu0 %4915
    %4917 = vrot.lane.b32.xlu0 %v4881, 96
    %v4918 = vpop.permute.xlu0 %4917
    %4919 = vrot.lane.b32.xlu0 %v4882, 96
    %v4920 = vpop.permute.xlu0 %4919
    %4921 = vrot.lane.b32.xlu0 %v4883, 96
    %v4922 = vpop.permute.xlu0 %4921
    %4923 = vrot.lane.b32.xlu0 %v4884, 96
    %v4924 = vpop.permute.xlu0 %4923
    %4925 = vrot.lane.b32.xlu0 %v4885, 96
    %v4926 = vpop.permute.xlu0 %4925
    %4927 = vrot.lane.b32.xlu0 %v4886, 96
    %v4928 = vpop.permute.xlu0 %4927
    %4929 = vrot.lane.b32.xlu0 %v4887, 96
    %v4930 = vpop.permute.xlu0 %4929
    %4931 = vrot.lane.b32.xlu0 %v4888, 96
    %v4932 = vpop.permute.xlu0 %4931
    %4933 = vrot.lane.b32.xlu0 %v4889, 96
    %v4934 = vpop.permute.xlu0 %4933
    %4935 = vrot.lane.b32.xlu0 %v4890, 96
    %v4936 = vpop.permute.xlu0 %4935
    %4937 = vrot.lane.b32.xlu0 %v4891, 96
    %v4938 = vpop.permute.xlu0 %4937
    %4939 = vrot.lane.b32.xlu0 %v4892, 96
    %v4940 = vpop.permute.xlu0 %4939
    %vm4957 = vcmask 917248
    %4958 = vst.msk [vmem:[#allocation2] sm:$0xff] %vm4957, %v4910
    %4959 = vst.msk [vmem:[#allocation2 + $0x8] sm:$0xff] %vm4957, %v4912
    %4960 = vst.msk [vmem:[#allocation2 + $0x10] sm:$0xff] %vm4957, %v4914
    %4961 = vst.msk [vmem:[#allocation2 + $0x18] sm:$0xff] %vm4957, %v4916
    %4962 = vst.msk [vmem:[#allocation2 + $0x20] sm:$0xff] %vm4957, %v4918
    %4963 = vst.msk [vmem:[#allocation2 + $0x28] sm:$0xff] %vm4957, %v4920
    %4964 = vst.msk [vmem:[#allocation2 + $0x30] sm:$0xff] %vm4957, %v4922
    %4965 = vst.msk [vmem:[#allocation2 + $0x38] sm:$0xff] %vm4957, %v4924
    %4966 = vst.msk [vmem:[#allocation2 + $0x40] sm:$0xff] %vm4957, %v4926
    %4967 = vst.msk [vmem:[#allocation2 + $0x48] sm:$0xff] %vm4957, %v4928
    %4968 = vst.msk [vmem:[#allocation2 + $0x50] sm:$0xff] %vm4957, %v4930
    %4969 = vst.msk [vmem:[#allocation2 + $0x58] sm:$0xff] %vm4957, %v4932
    %4970 = vst.msk [vmem:[#allocation2 + $0x60] sm:$0xff] %vm4957, %v4934
    %4971 = vst.msk [vmem:[#allocation2 + $0x68] sm:$0xff] %vm4957, %v4936
    %4972 = vst.msk [vmem:[#allocation2 + $0x70] sm:$0xff] %vm4957, %v4938
    %4973 = vst.msk [vmem:[#allocation2 + $0x78] sm:$0xff] %vm4957, %v4940
    %4974 = vrot.lane.b32.xlu0 %v474, 16
    %v4975 = vpop.permute.xlu0 %4974
    %4976 = vrot.lane.b32.xlu0 %v475, 16
    %v4977 = vpop.permute.xlu0 %4976
    %4978 = vrot.lane.b32.xlu0 %v476, 16
    %v4979 = vpop.permute.xlu0 %4978
    %4980 = vrot.lane.b32.xlu0 %v477, 16
    %v4981 = vpop.permute.xlu0 %4980
    %4982 = vrot.lane.b32.xlu0 %v482, 16
    %v4983 = vpop.permute.xlu0 %4982
    %4984 = vrot.lane.b32.xlu0 %v483, 16
    %v4985 = vpop.permute.xlu0 %4984
    %4986 = vrot.lane.b32.xlu0 %v484, 16
    %v4987 = vpop.permute.xlu0 %4986
    %4988 = vrot.lane.b32.xlu0 %v485, 16
    %v4989 = vpop.permute.xlu0 %4988
    %v4991 = vsel %vm498, %v4975, 0
    %v4994 = vsel %vm498, %v4977, 0
    %v4997 = vsel %vm498, %v4979, 0
    %v5000 = vsel %vm498, %v4981, 0
    %v5003 = vsel %vm498, %v4983, 0
    %v5006 = vsel %vm498, %v4985, 0
    %v5009 = vsel %vm498, %v4987, 0
    %v5012 = vsel %vm498, %v4989, 0
    %5014 = vmatprep.subr.bf16.mxu0 0
    %5015 = vmatpush1.bf16.xpose.msra.mxu0 %v5003
    %5016 = vmatprep.subr.bf16.mxu0 0
    %5017 = vmatpush1.bf16.xpose.msra.mxu0 %v5006
    %5018 = vmatprep.subr.bf16.mxu0 0
    %5019 = vmatpush1.bf16.xpose.msra.mxu0 %v5009
    %5020 = vmatprep.subr.bf16.mxu0 0
    %5021 = vmatpush1.bf16.xpose.msra.mxu0 %v5012
    %5022 = vmatprep.subr.bf16.mxu0 0
    %5023 = vmatpush1.bf16.xpose.msra.mxu0 0
    %5024 = vmatprep.subr.bf16.mxu0 0
    %5025 = vmatpush1.bf16.xpose.msra.mxu0 0
    %5026 = vmatprep.subr.bf16.mxu0 0
    %5027 = vmatpush1.bf16.xpose.msra.mxu0 0
    %5028 = vmatprep.subr.bf16.mxu0 0
    %5029 = vmatpush1.bf16.xpose.msra.mxu0 0
    %5030 = vmatprep.subr.bf16.mxu0 0
    %5031 = vmatpush1.bf16.xpose.msra.mxu0 0
    %5032 = vmatprep.subr.bf16.mxu0 0
    %5033 = vmatpush1.bf16.xpose.msra.mxu0 0
    %5034 = vmatprep.subr.bf16.mxu0 0
    %5035 = vmatpush1.bf16.xpose.msra.mxu0 0
    %5036 = vmatprep.subr.bf16.mxu0 0
    %5037 = vmatpush1.bf16.xpose.msra.mxu0 0
    %5038 = vmatprep.subr.bf16.mxu0 0
    %5039 = vmatpush1.bf16.xpose.msra.mxu0 0
    %5040 = vmatprep.subr.bf16.mxu0 0
    %5041 = vmatpush1.bf16.xpose.msra.mxu0 0
    %5042 = vmatprep.subr.bf16.mxu0 0
    %5043 = vmatpush1.bf16.xpose.msra.mxu0 0
    %5044 = vmatprep.subr.bf16.mxu0 0
    %5045 = vmatpush1.bf16.xpose.msra.mxu0 0
    %5046 = vmatprep.mubr.bf16.mxu0 0
    %5047 = vmatmul.mubr.bf16.gmra.mrb[0].mxu0 %v4991
    %v5048 = vpop.f32.mrb[0].mxu0
    %v5049 = vadd.f32 0.0, %v5048
    %v5050 = vpop.f32.mrb[0].mxu0
    %v5051 = vpop.f32.mrb[0].mxu0
    %v5052 = vadd.f32 0.0, %v5051
    %v5053 = vpop.f32.mrb[0].mxu0
    %5054 = vmatprep.mubr.bf16.mxu0 0
    %5055 = vmatmul.mubr.bf16.gmra.mrb[0].mxu0 %v4994
    %v5056 = vpop.f32.mrb[0].mxu0
    %v5057 = vadd.f32 0.0, %v5056
    %v5058 = vpop.f32.mrb[0].mxu0
    %v5059 = vpop.f32.mrb[0].mxu0
    %v5060 = vadd.f32 0.0, %v5059
    %v5061 = vpop.f32.mrb[0].mxu0
    %5062 = vmatprep.mubr.bf16.mxu0 0
    %5063 = vmatmul.mubr.bf16.gmra.mrb[0].mxu0 %v4997
    %v5064 = vpop.f32.mrb[0].mxu0
    %v5065 = vadd.f32 0.0, %v5064
    %v5066 = vpop.f32.mrb[0].mxu0
    %v5067 = vpop.f32.mrb[0].mxu0
    %v5068 = vadd.f32 0.0, %v5067
    %v5069 = vpop.f32.mrb[0].mxu0
    %5070 = vmatprep.mubr.bf16.mxu0 0
    %5071 = vmatmul.mubr.bf16.gmra.mrb[0].mxu0 %v5000
    %v5072 = vpop.f32.mrb[0].mxu0
    %v5073 = vadd.f32 0.0, %v5072
    %v5074 = vpop.f32.mrb[0].mxu0
    %v5075 = vpop.f32.mrb[0].mxu0
    %v5076 = vadd.f32 0.0, %v5075
    %v5077 = vpop.f32.mrb[0].mxu0
    %5078 = vdwg.mxu0
    %5079 = vrot.lane.b32.xlu0 %v478, 16
    %v5080 = vpop.permute.xlu0 %5079
    %5081 = vrot.lane.b32.xlu0 %v479, 16
    %v5082 = vpop.permute.xlu0 %5081
    %5083 = vrot.lane.b32.xlu0 %v480, 16
    %v5084 = vpop.permute.xlu0 %5083
    %5085 = vrot.lane.b32.xlu0 %v481, 16
    %v5086 = vpop.permute.xlu0 %5085
    %5087 = vrot.lane.b32.xlu0 %v486, 16
    %v5088 = vpop.permute.xlu0 %5087
    %5089 = vrot.lane.b32.xlu0 %v487, 16
    %v5090 = vpop.permute.xlu0 %5089
    %5091 = vrot.lane.b32.xlu0 %v488, 16
    %v5092 = vpop.permute.xlu0 %5091
    %5093 = vrot.lane.b32.xlu0 %v489, 16
    %v5094 = vpop.permute.xlu0 %5093
    %v5096 = vsel %vm498, %v5080, 0
    %v5099 = vsel %vm498, %v5082, 0
    %v5102 = vsel %vm498, %v5084, 0
    %v5105 = vsel %vm498, %v5086, 0
    %v5108 = vsel %vm498, %v5088, 0
    %v5111 = vsel %vm498, %v5090, 0
    %v5114 = vsel %vm498, %v5092, 0
    %v5117 = vsel %vm498, %v5094, 0
    %5119 = vmatprep.subr.bf16.mxu0 0
    %5120 = vmatpush1.bf16.xpose.msra.mxu0 %v5108
    %5121 = vmatprep.subr.bf16.mxu0 0
    %5122 = vmatpush1.bf16.xpose.msra.mxu0 %v5111
    %5123 = vmatprep.subr.bf16.mxu0 0
    %5124 = vmatpush1.bf16.xpose.msra.mxu0 %v5114
    %5125 = vmatprep.subr.bf16.mxu0 0
    %5126 = vmatpush1.bf16.xpose.msra.mxu0 %v5117
    %5127 = vmatprep.subr.bf16.mxu0 0
    %5128 = vmatpush1.bf16.xpose.msra.mxu0 0
    %5129 = vmatprep.subr.bf16.mxu0 0
    %5130 = vmatpush1.bf16.xpose.msra.mxu0 0
    %5131 = vmatprep.subr.bf16.mxu0 0
    %5132 = vmatpush1.bf16.xpose.msra.mxu0 0
    %5133 = vmatprep.subr.bf16.mxu0 0
    %5134 = vmatpush1.bf16.xpose.msra.mxu0 0
    %5135 = vmatprep.subr.bf16.mxu0 0
    %5136 = vmatpush1.bf16.xpose.msra.mxu0 0
    %5137 = vmatprep.subr.bf16.mxu0 0
    %5138 = vmatpush1.bf16.xpose.msra.mxu0 0
    %5139 = vmatprep.subr.bf16.mxu0 0
    %5140 = vmatpush1.bf16.xpose.msra.mxu0 0
    %5141 = vmatprep.subr.bf16.mxu0 0
    %5142 = vmatpush1.bf16.xpose.msra.mxu0 0
    %5143 = vmatprep.subr.bf16.mxu0 0
    %5144 = vmatpush1.bf16.xpose.msra.mxu0 0
    %5145 = vmatprep.subr.bf16.mxu0 0
    %5146 = vmatpush1.bf16.xpose.msra.mxu0 0
    %5147 = vmatprep.subr.bf16.mxu0 0
    %5148 = vmatpush1.bf16.xpose.msra.mxu0 0
    %5149 = vmatprep.subr.bf16.mxu0 0
    %5150 = vmatpush1.bf16.xpose.msra.mxu0 0
    %5151 = vmatprep.mubr.bf16.mxu0 0
    %5152 = vmatmul.mubr.bf16.gmra.mrb[0].mxu0 %v5096
    %v5153 = vpop.f32.mrb[0].mxu0
    %v5154 = vadd.f32 0.0, %v5153
    %v5155 = vpop.f32.mrb[0].mxu0
    %v5156 = vpop.f32.mrb[0].mxu0
    %v5157 = vadd.f32 0.0, %v5156
    %v5158 = vpop.f32.mrb[0].mxu0
    %5159 = vmatprep.mubr.bf16.mxu0 0
    %5160 = vmatmul.mubr.bf16.gmra.mrb[0].mxu0 %v5099
    %v5161 = vpop.f32.mrb[0].mxu0
    %v5162 = vadd.f32 0.0, %v5161
    %v5163 = vpop.f32.mrb[0].mxu0
    %v5164 = vpop.f32.mrb[0].mxu0
    %v5165 = vadd.f32 0.0, %v5164
    %v5166 = vpop.f32.mrb[0].mxu0
    %5167 = vmatprep.mubr.bf16.mxu0 0
    %5168 = vmatmul.mubr.bf16.gmra.mrb[0].mxu0 %v5102
    %v5169 = vpop.f32.mrb[0].mxu0
    %v5170 = vadd.f32 0.0, %v5169
    %v5171 = vpop.f32.mrb[0].mxu0
    %v5172 = vpop.f32.mrb[0].mxu0
    %v5173 = vadd.f32 0.0, %v5172
    %v5174 = vpop.f32.mrb[0].mxu0
    %5175 = vmatprep.mubr.bf16.mxu0 0
    %5176 = vmatmul.mubr.bf16.gmra.mrb[0].mxu0 %v5105
    %v5177 = vpop.f32.mrb[0].mxu0
    %v5178 = vadd.f32 0.0, %v5177
    %v5179 = vpop.f32.mrb[0].mxu0
    %v5180 = vpop.f32.mrb[0].mxu0
    %v5181 = vadd.f32 0.0, %v5180
    %v5182 = vpop.f32.mrb[0].mxu0
    %5183 = vdwg.mxu0
    %v5184 = vsel %vm677, %v5049, -inf
    %5185 = vmax.xlane.f32.xlu0 %v5184
    %v5186 = vpop.xlane.xlu0 %5185
    %v5187 = vsel %vm677, %v5052, -inf
    %5188 = vmax.xlane.f32.xlu0 %v5187
    %v5189 = vpop.xlane.xlu0 %5188
    %v5190 = vsel %vm677, %v5057, -inf
    %5191 = vmax.xlane.f32.xlu0 %v5190
    %v5192 = vpop.xlane.xlu0 %5191
    %v5193 = vsel %vm677, %v5060, -inf
    %5194 = vmax.xlane.f32.xlu0 %v5193
    %v5195 = vpop.xlane.xlu0 %5194
    %v5196 = vsel %vm677, %v5065, -inf
    %5197 = vmax.xlane.f32.xlu0 %v5196
    %v5198 = vpop.xlane.xlu0 %5197
    %v5199 = vsel %vm677, %v5068, -inf
    %5200 = vmax.xlane.f32.xlu0 %v5199
    %v5201 = vpop.xlane.xlu0 %5200
    %v5202 = vsel %vm677, %v5073, -inf
    %5203 = vmax.xlane.f32.xlu0 %v5202
    %v5204 = vpop.xlane.xlu0 %5203
    %v5205 = vsel %vm677, %v5076, -inf
    %5206 = vmax.xlane.f32.xlu0 %v5205
    %v5207 = vpop.xlane.xlu0 %5206
    %v5208 = vsel %vm677, %v5154, -inf
    %5209 = vmax.xlane.f32.xlu0 %v5208
    %v5210 = vpop.xlane.xlu0 %5209
    %v5211 = vsel %vm677, %v5157, -inf
    %5212 = vmax.xlane.f32.xlu0 %v5211
    %v5213 = vpop.xlane.xlu0 %5212
    %v5214 = vsel %vm677, %v5162, -inf
    %5215 = vmax.xlane.f32.xlu0 %v5214
    %v5216 = vpop.xlane.xlu0 %5215
    %v5217 = vsel %vm677, %v5165, -inf
    %5218 = vmax.xlane.f32.xlu0 %v5217
    %v5219 = vpop.xlane.xlu0 %5218
    %v5220 = vsel %vm677, %v5170, -inf
    %5221 = vmax.xlane.f32.xlu0 %v5220
    %v5222 = vpop.xlane.xlu0 %5221
    %v5223 = vsel %vm677, %v5173, -inf
    %5224 = vmax.xlane.f32.xlu0 %v5223
    %v5225 = vpop.xlane.xlu0 %5224
    %v5226 = vsel %vm677, %v5178, -inf
    %5227 = vmax.xlane.f32.xlu0 %v5226
    %v5228 = vpop.xlane.xlu0 %5227
    %v5229 = vsel %vm677, %v5181, -inf
    %5230 = vmax.xlane.f32.xlu0 %v5229
    %v5231 = vpop.xlane.xlu0 %5230
    %v5232 = vsub.f32 %v5049, %v5186
    %v5233 = vsub.f32 %v5052, %v5189
    %v5234 = vsub.f32 %v5057, %v5192
    %v5235 = vsub.f32 %v5060, %v5195
    %v5236 = vsub.f32 %v5065, %v5198
    %v5237 = vsub.f32 %v5068, %v5201
    %v5238 = vsub.f32 %v5073, %v5204
    %v5239 = vsub.f32 %v5076, %v5207
    %v5240 = vsub.f32 %v5154, %v5210
    %v5241 = vsub.f32 %v5157, %v5213
    %v5242 = vsub.f32 %v5162, %v5216
    %v5243 = vsub.f32 %v5165, %v5219
    %v5244 = vsub.f32 %v5170, %v5222
    %v5245 = vsub.f32 %v5173, %v5225
    %v5246 = vsub.f32 %v5178, %v5228
    %v5247 = vsub.f32 %v5181, %v5231
    %v5248 = vmul.f32 %v5232, 1.442695
    %v5249 = vpow.pop %v5248
    %v5250 = vmul.f32 %v5233, 1.442695
    %v5251 = vpow.pop %v5250
    %v5252 = vmul.f32 %v5234, 1.442695
    %v5253 = vpow.pop %v5252
    %v5254 = vmul.f32 %v5235, 1.442695
    %v5255 = vpow.pop %v5254
    %v5256 = vmul.f32 %v5236, 1.442695
    %v5257 = vpow.pop %v5256
    %v5258 = vmul.f32 %v5237, 1.442695
    %v5259 = vpow.pop %v5258
    %v5260 = vmul.f32 %v5238, 1.442695
    %v5261 = vpow.pop %v5260
    %v5262 = vmul.f32 %v5239, 1.442695
    %v5263 = vpow.pop %v5262
    %v5264 = vmul.f32 %v5240, 1.442695
    %v5265 = vpow.pop %v5264
    %v5266 = vmul.f32 %v5241, 1.442695
    %v5267 = vpow.pop %v5266
    %v5268 = vmul.f32 %v5242, 1.442695
    %v5269 = vpow.pop %v5268
    %v5270 = vmul.f32 %v5243, 1.442695
    %v5271 = vpow.pop %v5270
    %v5272 = vmul.f32 %v5244, 1.442695
    %v5273 = vpow.pop %v5272
    %v5274 = vmul.f32 %v5245, 1.442695
    %v5275 = vpow.pop %v5274
    %v5276 = vmul.f32 %v5246, 1.442695
    %v5277 = vpow.pop %v5276
    %v5278 = vmul.f32 %v5247, 1.442695
    %v5279 = vpow.pop %v5278
    %v5280 = vsel %vm677, %v5249, 0.0
    %5281 = vadd.xlane.f32.xlu0 %v5280
    %v5282 = vpop.xlane.xlu0 %5281
    %v5283 = vsel %vm677, %v5251, 0.0
    %5284 = vadd.xlane.f32.xlu0 %v5283
    %v5285 = vpop.xlane.xlu0 %5284
    %v5286 = vsel %vm677, %v5253, 0.0
    %5287 = vadd.xlane.f32.xlu0 %v5286
    %v5288 = vpop.xlane.xlu0 %5287
    %v5289 = vsel %vm677, %v5255, 0.0
    %5290 = vadd.xlane.f32.xlu0 %v5289
    %v5291 = vpop.xlane.xlu0 %5290
    %v5292 = vsel %vm677, %v5257, 0.0
    %5293 = vadd.xlane.f32.xlu0 %v5292
    %v5294 = vpop.xlane.xlu0 %5293
    %v5295 = vsel %vm677, %v5259, 0.0
    %5296 = vadd.xlane.f32.xlu0 %v5295
    %v5297 = vpop.xlane.xlu0 %5296
    %v5298 = vsel %vm677, %v5261, 0.0
    %5299 = vadd.xlane.f32.xlu0 %v5298
    %v5300 = vpop.xlane.xlu0 %5299
    %v5301 = vsel %vm677, %v5263, 0.0
    %5302 = vadd.xlane.f32.xlu0 %v5301
    %v5303 = vpop.xlane.xlu0 %5302
    %v5304 = vsel %vm677, %v5265, 0.0
    %5305 = vadd.xlane.f32.xlu0 %v5304
    %v5306 = vpop.xlane.xlu0 %5305
    %v5307 = vsel %vm677, %v5267, 0.0
    %5308 = vadd.xlane.f32.xlu0 %v5307
    %v5309 = vpop.xlane.xlu0 %5308
    %v5310 = vsel %vm677, %v5269, 0.0
    %5311 = vadd.xlane.f32.xlu0 %v5310
    %v5312 = vpop.xlane.xlu0 %5311
    %v5313 = vsel %vm677, %v5271, 0.0
    %5314 = vadd.xlane.f32.xlu0 %v5313
    %v5315 = vpop.xlane.xlu0 %5314
    %v5316 = vsel %vm677, %v5273, 0.0
    %5317 = vadd.xlane.f32.xlu0 %v5316
    %v5318 = vpop.xlane.xlu0 %5317
    %v5319 = vsel %vm677, %v5275, 0.0
    %5320 = vadd.xlane.f32.xlu0 %v5319
    %v5321 = vpop.xlane.xlu0 %5320
    %v5322 = vsel %vm677, %v5277, 0.0
    %5323 = vadd.xlane.f32.xlu0 %v5322
    %v5324 = vpop.xlane.xlu0 %5323
    %v5325 = vsel %vm677, %v5279, 0.0
    %5326 = vadd.xlane.f32.xlu0 %v5325
    %v5327 = vpop.xlane.xlu0 %5326
    %v5328 = vpack.c.bf16 %v5251, %v5249
    %v5329 = vpack.c.bf16 %v5255, %v5253
    %v5330 = vpack.c.bf16 %v5259, %v5257
    %v5331 = vpack.c.bf16 %v5263, %v5261
    %v5332 = vpack.c.bf16 %v5267, %v5265
    %v5333 = vpack.c.bf16 %v5271, %v5269
    %v5334 = vpack.c.bf16 %v5275, %v5273
    %v5335 = vpack.c.bf16 %v5279, %v5277
    %5336 = vrot.lane.b32.xlu0 %v490, 16
    %v5337 = vpop.permute.xlu0 %5336
    %5338 = vrot.lane.b32.xlu0 %v491, 16
    %v5339 = vpop.permute.xlu0 %5338
    %5340 = vrot.lane.b32.xlu0 %v492, 16
    %v5341 = vpop.permute.xlu0 %5340
    %5342 = vrot.lane.b32.xlu0 %v493, 16
    %v5343 = vpop.permute.xlu0 %5342
    %v5349 = vsel %vm677, %v5328, 0
    %v5352 = vsel %vm677, %v5329, 0
    %v5355 = vsel %vm677, %v5330, 0
    %v5358 = vsel %vm677, %v5331, 0
    %5360 = vmatprep.subr.bf16.mxu0 0
    %5361 = vmatpush1.bf16.msra.mxu0 %v5337
    %5362 = vmatprep.subr.bf16.mxu0 0
    %5363 = vmatpush1.bf16.msra.mxu0 %v5339
    %5364 = vmatprep.subr.bf16.mxu0 0
    %5365 = vmatpush1.bf16.msra.mxu0 %v5341
    %5366 = vmatprep.subr.bf16.mxu0 0
    %5367 = vmatpush1.bf16.msra.mxu0 %v5343
    %5368 = vmatprep.subr.bf16.mxu0 0
    %5369 = vmatpush1.bf16.msra.mxu0 0
    %5370 = vmatprep.subr.bf16.mxu0 0
    %5371 = vmatpush1.bf16.msra.mxu0 0
    %5372 = vmatprep.subr.bf16.mxu0 0
    %5373 = vmatpush1.bf16.msra.mxu0 0
    %5374 = vmatprep.subr.bf16.mxu0 0
    %5375 = vmatpush1.bf16.msra.mxu0 0
    %5376 = vmatprep.subr.bf16.mxu0 0
    %5377 = vmatpush1.bf16.msra.mxu0 0
    %5378 = vmatprep.subr.bf16.mxu0 0
    %5379 = vmatpush1.bf16.msra.mxu0 0
    %5380 = vmatprep.subr.bf16.mxu0 0
    %5381 = vmatpush1.bf16.msra.mxu0 0
    %5382 = vmatprep.subr.bf16.mxu0 0
    %5383 = vmatpush1.bf16.msra.mxu0 0
    %5384 = vmatprep.subr.bf16.mxu0 0
    %5385 = vmatpush1.bf16.msra.mxu0 0
    %5386 = vmatprep.subr.bf16.mxu0 0
    %5387 = vmatpush1.bf16.msra.mxu0 0
    %5388 = vmatprep.subr.bf16.mxu0 0
    %5389 = vmatpush1.bf16.msra.mxu0 0
    %5390 = vmatprep.subr.bf16.mxu0 0
    %5391 = vmatpush1.bf16.msra.mxu0 0
    %5392 = vmatprep.mubr.bf16.mxu0 0
    %5393 = vmatmul.mubr.bf16.gmra.mrb[0].mxu0 %v5349
    %v5394 = vpop.f32.mrb[0].mxu0
    %v5395 = vadd.f32 0.0, %v5394
    %v5396 = vpop.f32.mrb[0].mxu0
    %v5397 = vpop.f32.mrb[0].mxu0
    %v5398 = vadd.f32 0.0, %v5397
    %v5399 = vpop.f32.mrb[0].mxu0
    %5400 = vmatprep.mubr.bf16.mxu0 0
    %5401 = vmatmul.mubr.bf16.gmra.mrb[0].mxu0 %v5352
    %v5402 = vpop.f32.mrb[0].mxu0
    %v5403 = vadd.f32 0.0, %v5402
    %v5404 = vpop.f32.mrb[0].mxu0
    %v5405 = vpop.f32.mrb[0].mxu0
    %v5406 = vadd.f32 0.0, %v5405
    %v5407 = vpop.f32.mrb[0].mxu0
    %5408 = vmatprep.mubr.bf16.mxu0 0
    %5409 = vmatmul.mubr.bf16.gmra.mrb[0].mxu0 %v5355
    %v5410 = vpop.f32.mrb[0].mxu0
    %v5411 = vadd.f32 0.0, %v5410
    %v5412 = vpop.f32.mrb[0].mxu0
    %v5413 = vpop.f32.mrb[0].mxu0
    %v5414 = vadd.f32 0.0, %v5413
    %v5415 = vpop.f32.mrb[0].mxu0
    %5416 = vmatprep.mubr.bf16.mxu0 0
    %5417 = vmatmul.mubr.bf16.gmra.mrb[0].mxu0 %v5358
    %v5418 = vpop.f32.mrb[0].mxu0
    %v5419 = vadd.f32 0.0, %v5418
    %v5420 = vpop.f32.mrb[0].mxu0
    %v5421 = vpop.f32.mrb[0].mxu0
    %v5422 = vadd.f32 0.0, %v5421
    %v5423 = vpop.f32.mrb[0].mxu0
    %5424 = vdwg.mxu0
    %5425 = vrot.lane.b32.xlu0 %v494, 16
    %v5426 = vpop.permute.xlu0 %5425
    %5427 = vrot.lane.b32.xlu0 %v495, 16
    %v5428 = vpop.permute.xlu0 %5427
    %5429 = vrot.lane.b32.xlu0 %v496, 16
    %v5430 = vpop.permute.xlu0 %5429
    %5431 = vrot.lane.b32.xlu0 %v497, 16
    %v5432 = vpop.permute.xlu0 %5431
    %v5438 = vsel %vm677, %v5332, 0
    %v5441 = vsel %vm677, %v5333, 0
    %v5444 = vsel %vm677, %v5334, 0
    %v5447 = vsel %vm677, %v5335, 0
    %5449 = vmatprep.subr.bf16.mxu0 0
    %5450 = vmatpush1.bf16.msra.mxu0 %v5426
    %5451 = vmatprep.subr.bf16.mxu0 0
    %5452 = vmatpush1.bf16.msra.mxu0 %v5428
    %5453 = vmatprep.subr.bf16.mxu0 0
    %5454 = vmatpush1.bf16.msra.mxu0 %v5430
    %5455 = vmatprep.subr.bf16.mxu0 0
    %5456 = vmatpush1.bf16.msra.mxu0 %v5432
    %5457 = vmatprep.subr.bf16.mxu0 0
    %5458 = vmatpush1.bf16.msra.mxu0 0
    %5459 = vmatprep.subr.bf16.mxu0 0
    %5460 = vmatpush1.bf16.msra.mxu0 0
    %5461 = vmatprep.subr.bf16.mxu0 0
    %5462 = vmatpush1.bf16.msra.mxu0 0
    %5463 = vmatprep.subr.bf16.mxu0 0
    %5464 = vmatpush1.bf16.msra.mxu0 0
    %5465 = vmatprep.subr.bf16.mxu0 0
    %5466 = vmatpush1.bf16.msra.mxu0 0
    %5467 = vmatprep.subr.bf16.mxu0 0
    %5468 = vmatpush1.bf16.msra.mxu0 0
    %5469 = vmatprep.subr.bf16.mxu0 0
    %5470 = vmatpush1.bf16.msra.mxu0 0
    %5471 = vmatprep.subr.bf16.mxu0 0
    %5472 = vmatpush1.bf16.msra.mxu0 0
    %5473 = vmatprep.subr.bf16.mxu0 0
    %5474 = vmatpush1.bf16.msra.mxu0 0
    %5475 = vmatprep.subr.bf16.mxu0 0
    %5476 = vmatpush1.bf16.msra.mxu0 0
    %5477 = vmatprep.subr.bf16.mxu0 0
    %5478 = vmatpush1.bf16.msra.mxu0 0
    %5479 = vmatprep.subr.bf16.mxu0 0
    %5480 = vmatpush1.bf16.msra.mxu0 0
    %5481 = vmatprep.mubr.bf16.mxu0 0
    %5482 = vmatmul.mubr.bf16.gmra.mrb[0].mxu0 %v5438
    %v5483 = vpop.f32.mrb[0].mxu0
    %v5484 = vadd.f32 0.0, %v5483
    %v5485 = vpop.f32.mrb[0].mxu0
    %v5486 = vpop.f32.mrb[0].mxu0
    %v5487 = vadd.f32 0.0, %v5486
    %v5488 = vpop.f32.mrb[0].mxu0
    %5489 = vmatprep.mubr.bf16.mxu0 0
    %5490 = vmatmul.mubr.bf16.gmra.mrb[0].mxu0 %v5441
    %v5491 = vpop.f32.mrb[0].mxu0
    %v5492 = vadd.f32 0.0, %v5491
    %v5493 = vpop.f32.mrb[0].mxu0
    %v5494 = vpop.f32.mrb[0].mxu0
    %v5495 = vadd.f32 0.0, %v5494
    %v5496 = vpop.f32.mrb[0].mxu0
    %5497 = vmatprep.mubr.bf16.mxu0 0
    %5498 = vmatmul.mubr.bf16.gmra.mrb[0].mxu0 %v5444
    %v5499 = vpop.f32.mrb[0].mxu0
    %v5500 = vadd.f32 0.0, %v5499
    %v5501 = vpop.f32.mrb[0].mxu0
    %v5502 = vpop.f32.mrb[0].mxu0
    %v5503 = vadd.f32 0.0, %v5502
    %v5504 = vpop.f32.mrb[0].mxu0
    %5505 = vmatprep.mubr.bf16.mxu0 0
    %5506 = vmatmul.mubr.bf16.gmra.mrb[0].mxu0 %v5447
    %v5507 = vpop.f32.mrb[0].mxu0
    %v5508 = vadd.f32 0.0, %v5507
    %v5509 = vpop.f32.mrb[0].mxu0
    %v5510 = vpop.f32.mrb[0].mxu0
    %v5511 = vadd.f32 0.0, %v5510
    %v5512 = vpop.f32.mrb[0].mxu0
    %5513 = vdwg.mxu0
    %v5514 = vrcp.pop %v5282
    %v5515 = vrcp.pop %v5285
    %v5516 = vrcp.pop %v5288
    %v5517 = vrcp.pop %v5291
    %v5518 = vrcp.pop %v5294
    %v5519 = vrcp.pop %v5297
    %v5520 = vrcp.pop %v5300
    %v5521 = vrcp.pop %v5303
    %v5522 = vrcp.pop %v5306
    %v5523 = vrcp.pop %v5309
    %v5524 = vrcp.pop %v5312
    %v5525 = vrcp.pop %v5315
    %v5526 = vrcp.pop %v5318
    %v5527 = vrcp.pop %v5321
    %v5528 = vrcp.pop %v5324
    %v5529 = vrcp.pop %v5327
    %v5530 = vmul.f32 %v5395, %v5514
    %v5531 = vmul.f32 %v5398, %v5515
    %v5532 = vmul.f32 %v5403, %v5516
    %v5533 = vmul.f32 %v5406, %v5517
    %v5534 = vmul.f32 %v5411, %v5518
    %v5535 = vmul.f32 %v5414, %v5519
    %v5536 = vmul.f32 %v5419, %v5520
    %v5537 = vmul.f32 %v5422, %v5521
    %v5538 = vmul.f32 %v5484, %v5522
    %v5539 = vmul.f32 %v5487, %v5523
    %v5540 = vmul.f32 %v5492, %v5524
    %v5541 = vmul.f32 %v5495, %v5525
    %v5542 = vmul.f32 %v5500, %v5526
    %v5543 = vmul.f32 %v5503, %v5527
    %v5544 = vmul.f32 %v5508, %v5528
    %v5545 = vmul.f32 %v5511, %v5529
    %5562 = vrot.lane.b32.xlu0 %v5530, 112
    %v5563 = vpop.permute.xlu0 %5562
    %5564 = vrot.lane.b32.xlu0 %v5531, 112
    %v5565 = vpop.permute.xlu0 %5564
    %5566 = vrot.lane.b32.xlu0 %v5532, 112
    %v5567 = vpop.permute.xlu0 %5566
    %5568 = vrot.lane.b32.xlu0 %v5533, 112
    %v5569 = vpop.permute.xlu0 %5568
    %5570 = vrot.lane.b32.xlu0 %v5534, 112
    %v5571 = vpop.permute.xlu0 %5570
    %5572 = vrot.lane.b32.xlu0 %v5535, 112
    %v5573 = vpop.permute.xlu0 %5572
    %5574 = vrot.lane.b32.xlu0 %v5536, 112
    %v5575 = vpop.permute.xlu0 %5574
    %5576 = vrot.lane.b32.xlu0 %v5537, 112
    %v5577 = vpop.permute.xlu0 %5576
    %5578 = vrot.lane.b32.xlu0 %v5538, 112
    %v5579 = vpop.permute.xlu0 %5578
    %5580 = vrot.lane.b32.xlu0 %v5539, 112
    %v5581 = vpop.permute.xlu0 %5580
    %5582 = vrot.lane.b32.xlu0 %v5540, 112
    %v5583 = vpop.permute.xlu0 %5582
    %5584 = vrot.lane.b32.xlu0 %v5541, 112
    %v5585 = vpop.permute.xlu0 %5584
    %5586 = vrot.lane.b32.xlu0 %v5542, 112
    %v5587 = vpop.permute.xlu0 %5586
    %5588 = vrot.lane.b32.xlu0 %v5543, 112
    %v5589 = vpop.permute.xlu0 %5588
    %5590 = vrot.lane.b32.xlu0 %v5544, 112
    %v5591 = vpop.permute.xlu0 %5590
    %5592 = vrot.lane.b32.xlu0 %v5545, 112
    %v5593 = vpop.permute.xlu0 %5592
    %vm5610 = vcmask 1048448
    %5611 = vst.msk [vmem:[#allocation2] sm:$0xff] %vm5610, %v5563
    %5612 = vst.msk [vmem:[#allocation2 + $0x8] sm:$0xff] %vm5610, %v5565
    %5613 = vst.msk [vmem:[#allocation2 + $0x10] sm:$0xff] %vm5610, %v5567
    %5614 = vst.msk [vmem:[#allocation2 + $0x18] sm:$0xff] %vm5610, %v5569
    %5615 = vst.msk [vmem:[#allocation2 + $0x20] sm:$0xff] %vm5610, %v5571
    %5616 = vst.msk [vmem:[#allocation2 + $0x28] sm:$0xff] %vm5610, %v5573
    %5617 = vst.msk [vmem:[#allocation2 + $0x30] sm:$0xff] %vm5610, %v5575
    %5618 = vst.msk [vmem:[#allocation2 + $0x38] sm:$0xff] %vm5610, %v5577
    %5619 = vst.msk [vmem:[#allocation2 + $0x40] sm:$0xff] %vm5610, %v5579
    %5620 = vst.msk [vmem:[#allocation2 + $0x48] sm:$0xff] %vm5610, %v5581
    %5621 = vst.msk [vmem:[#allocation2 + $0x50] sm:$0xff] %vm5610, %v5583
    %5622 = vst.msk [vmem:[#allocation2 + $0x58] sm:$0xff] %vm5610, %v5585
    %5623 = vst.msk [vmem:[#allocation2 + $0x60] sm:$0xff] %vm5610, %v5587
    %5624 = vst.msk [vmem:[#allocation2 + $0x68] sm:$0xff] %vm5610, %v5589
    %5625 = vst.msk [vmem:[#allocation2 + $0x70] sm:$0xff] %vm5610, %v5591
    %5626 = vst.msk [vmem:[#allocation2 + $0x78] sm:$0xff] %vm5610, %v5593
    %v5627 = vld [vmem:[#allocation2] sm:$0xff]
    %v5628 = vld [vmem:[#allocation2 + $0x8] sm:$0xff]
    %v5629 = vld [vmem:[#allocation2 + $0x10] sm:$0xff]
    %v5630 = vld [vmem:[#allocation2 + $0x18] sm:$0xff]
    %v5631 = vld [vmem:[#allocation2 + $0x20] sm:$0xff]
    %v5632 = vld [vmem:[#allocation2 + $0x28] sm:$0xff]
    %v5633 = vld [vmem:[#allocation2 + $0x30] sm:$0xff]
    %v5634 = vld [vmem:[#allocation2 + $0x38] sm:$0xff]
    %v5635 = vld [vmem:[#allocation2 + $0x40] sm:$0xff]
    %v5636 = vld [vmem:[#allocation2 + $0x48] sm:$0xff]
    %v5637 = vld [vmem:[#allocation2 + $0x50] sm:$0xff]
    %v5638 = vld [vmem:[#allocation2 + $0x58] sm:$0xff]
    %v5639 = vld [vmem:[#allocation2 + $0x60] sm:$0xff]
    %v5640 = vld [vmem:[#allocation2 + $0x68] sm:$0xff]
    %v5641 = vld [vmem:[#allocation2 + $0x70] sm:$0xff]
    %v5642 = vld [vmem:[#allocation2 + $0x78] sm:$0xff]
    %v5643 = vpack.c.bf16 %v5628, %v5627
    %v5644 = vpack.c.bf16 %v5630, %v5629
    %v5645 = vpack.c.bf16 %v5632, %v5631
    %v5646 = vpack.c.bf16 %v5634, %v5633
    %v5647 = vpack.c.bf16 %v5636, %v5635
    %v5648 = vpack.c.bf16 %v5638, %v5637
    %v5649 = vpack.c.bf16 %v5640, %v5639
    %v5650 = vpack.c.bf16 %v5642, %v5641
    %v5651 = vld [vmem:[#allocation8] sm:$0xf]
    %v5652 = vld [vmem:[#allocation8 + $0x4] sm:$0xf]
    %v5653 = vld [vmem:[#allocation8 + $0x8] sm:$0xf]
    %v5654 = vld [vmem:[#allocation8 + $0xc] sm:$0xf]
    %v5655 = vld [vmem:[#allocation8 + $0x10] sm:$0xf]
    %v5656 = vld [vmem:[#allocation8 + $0x14] sm:$0xf]
    %v5657 = vld [vmem:[#allocation8 + $0x18] sm:$0xf]
    %v5658 = vld [vmem:[#allocation8 + $0x1c] sm:$0xf]
    %v5659 = vld [vmem:[#allocation8 + $0x20] sm:$0xf]
    %v5660 = vld [vmem:[#allocation8 + $0x24] sm:$0xf]
    %v5661 = vld [vmem:[#allocation8 + $0x28] sm:$0xf]
    %v5662 = vld [vmem:[#allocation8 + $0x2c] sm:$0xf]
    %v5663 = vld [vmem:[#allocation8 + $0x30] sm:$0xf]
    %v5664 = vld [vmem:[#allocation8 + $0x34] sm:$0xf]
    %v5665 = vld [vmem:[#allocation8 + $0x38] sm:$0xf]
    %v5666 = vld [vmem:[#allocation8 + $0x3c] sm:$0xf]
    %v5667 = vld [vmem:[%s4] sm:$0x1]
    %v5669 = vlaneseq
    %v5670 = vshrl.u32 %v5669, 7
    %v5671 = vsub.s32 0, %v5670
    %v5672 = vrot.slane %v5667, %v5671
    %v5690 = vunpack.c.l.b16 %v5651
    %v5691 = vunpack.c.l.b16 %v5652
    %v5692 = vunpack.c.l.b16 %v5653
    %v5693 = vunpack.c.l.b16 %v5654
    %v5694 = vunpack.c.l.b16 %v5655
    %v5695 = vunpack.c.l.b16 %v5656
    %v5696 = vunpack.c.l.b16 %v5657
    %v5697 = vunpack.c.l.b16 %v5658
    %v5698 = vunpack.c.l.b16 %v5659
    %v5699 = vunpack.c.l.b16 %v5660
    %v5700 = vunpack.c.l.b16 %v5661
    %v5701 = vunpack.c.l.b16 %v5662
    %v5702 = vunpack.c.l.b16 %v5663
    %v5703 = vunpack.c.l.b16 %v5664
    %v5704 = vunpack.c.l.b16 %v5665
    %v5705 = vunpack.c.l.b16 %v5666
    %v5706 = vpack.c.b16 %v5691, %v5690
    %v5707 = vpack.c.b16 %v5693, %v5692
    %v5708 = vpack.c.b16 %v5695, %v5694
    %v5709 = vpack.c.b16 %v5697, %v5696
    %v5710 = vpack.c.b16 %v5699, %v5698
    %v5711 = vpack.c.b16 %v5701, %v5700
    %v5712 = vpack.c.b16 %v5703, %v5702
    %v5713 = vpack.c.b16 %v5705, %v5704
    %5722 = vmatprep.subr.bf16.mxu0 0
    %5723 = vmatpush1.bf16.msra.mxu0 %v5706
    %5724 = vmatprep.subr.bf16.mxu0 0
    %5725 = vmatpush1.bf16.msra.mxu0 %v5707
    %5726 = vmatprep.subr.bf16.mxu0 0
    %5727 = vmatpush1.bf16.msra.mxu0 %v5708
    %5728 = vmatprep.subr.bf16.mxu0 0
    %5729 = vmatpush1.bf16.msra.mxu0 %v5709
    %5730 = vmatprep.subr.bf16.mxu0 0
    %5731 = vmatpush1.bf16.msra.mxu0 %v5710
    %5732 = vmatprep.subr.bf16.mxu0 0
    %5733 = vmatpush1.bf16.msra.mxu0 %v5711
    %5734 = vmatprep.subr.bf16.mxu0 0
    %5735 = vmatpush1.bf16.msra.mxu0 %v5712
    %5736 = vmatprep.subr.bf16.mxu0 0
    %5737 = vmatpush1.bf16.msra.mxu0 %v5713
    %5738 = vmatprep.subr.bf16.mxu0 0
    %5739 = vmatpush1.bf16.msra.mxu0 0
    %5740 = vmatprep.subr.bf16.mxu0 0
    %5741 = vmatpush1.bf16.msra.mxu0 0
    %5742 = vmatprep.subr.bf16.mxu0 0
    %5743 = vmatpush1.bf16.msra.mxu0 0
    %5744 = vmatprep.subr.bf16.mxu0 0
    %5745 = vmatpush1.bf16.msra.mxu0 0
    %5746 = vmatprep.subr.bf16.mxu0 0
    %5747 = vmatpush1.bf16.msra.mxu0 0
    %5748 = vmatprep.subr.bf16.mxu0 0
    %5749 = vmatpush1.bf16.msra.mxu0 0
    %5750 = vmatprep.subr.bf16.mxu0 0
    %5751 = vmatpush1.bf16.msra.mxu0 0
    %5752 = vmatprep.subr.bf16.mxu0 0
    %5753 = vmatpush1.bf16.msra.mxu0 0
    %5754 = vmatprep.mubr.bf16.mxu0 0
    %5755 = vmatmul.mubr.bf16.gmra.mrb[0].mxu0 %v5643
    %v5756 = vpop.f32.mrb[0].mxu0
    %v5757 = vadd.f32 %v5672, %v5756
    %v5758 = vpop.f32.mrb[0].mxu0
    %v5759 = vpop.f32.mrb[0].mxu0
    %v5760 = vadd.f32 %v5672, %v5759
    %v5761 = vpop.f32.mrb[0].mxu0
    %5762 = vmatprep.mubr.bf16.mxu0 0
    %5763 = vmatmul.mubr.bf16.gmra.mrb[0].mxu0 %v5644
    %v5764 = vpop.f32.mrb[0].mxu0
    %v5765 = vadd.f32 %v5672, %v5764
    %v5766 = vpop.f32.mrb[0].mxu0
    %v5767 = vpop.f32.mrb[0].mxu0
    %v5768 = vadd.f32 %v5672, %v5767
    %v5769 = vpop.f32.mrb[0].mxu0
    %5770 = vmatprep.mubr.bf16.mxu0 0
    %5771 = vmatmul.mubr.bf16.gmra.mrb[0].mxu0 %v5645
    %v5772 = vpop.f32.mrb[0].mxu0
    %v5773 = vadd.f32 %v5672, %v5772
    %v5774 = vpop.f32.mrb[0].mxu0
    %v5775 = vpop.f32.mrb[0].mxu0
    %v5776 = vadd.f32 %v5672, %v5775
    %v5777 = vpop.f32.mrb[0].mxu0
    %5778 = vmatprep.mubr.bf16.mxu0 0
    %5779 = vmatmul.mubr.bf16.gmra.mrb[0].mxu0 %v5646
    %v5780 = vpop.f32.mrb[0].mxu0
    %v5781 = vadd.f32 %v5672, %v5780
    %v5782 = vpop.f32.mrb[0].mxu0
    %v5783 = vpop.f32.mrb[0].mxu0
    %v5784 = vadd.f32 %v5672, %v5783
    %v5785 = vpop.f32.mrb[0].mxu0
    %5786 = vmatprep.mubr.bf16.mxu0 0
    %5787 = vmatmul.mubr.bf16.gmra.mrb[0].mxu0 %v5647
    %v5788 = vpop.f32.mrb[0].mxu0
    %v5789 = vadd.f32 %v5672, %v5788
    %v5790 = vpop.f32.mrb[0].mxu0
    %v5791 = vpop.f32.mrb[0].mxu0
    %v5792 = vadd.f32 %v5672, %v5791
    %v5793 = vpop.f32.mrb[0].mxu0
    %5794 = vmatprep.mubr.bf16.mxu0 0
    %5795 = vmatmul.mubr.bf16.gmra.mrb[0].mxu0 %v5648
    %v5796 = vpop.f32.mrb[0].mxu0
    %v5797 = vadd.f32 %v5672, %v5796
    %v5798 = vpop.f32.mrb[0].mxu0
    %v5799 = vpop.f32.mrb[0].mxu0
    %v5800 = vadd.f32 %v5672, %v5799
    %v5801 = vpop.f32.mrb[0].mxu0
    %5802 = vmatprep.mubr.bf16.mxu0 0
    %5803 = vmatmul.mubr.bf16.gmra.mrb[0].mxu0 %v5649
    %v5804 = vpop.f32.mrb[0].mxu0
    %v5805 = vadd.f32 %v5672, %v5804
    %v5806 = vpop.f32.mrb[0].mxu0
    %v5807 = vpop.f32.mrb[0].mxu0
    %v5808 = vadd.f32 %v5672, %v5807
    %v5809 = vpop.f32.mrb[0].mxu0
    %5810 = vmatprep.mubr.bf16.mxu0 0
    %5811 = vmatmul.mubr.bf16.gmra.mrb[0].mxu0 %v5650
    %v5812 = vpop.f32.mrb[0].mxu0
    %v5813 = vadd.f32 %v5672, %v5812
    %v5814 = vpop.f32.mrb[0].mxu0
    %v5815 = vpop.f32.mrb[0].mxu0
    %v5816 = vadd.f32 %v5672, %v5815
    %v5817 = vpop.f32.mrb[0].mxu0
    %5818 = vdwg.mxu0
    %5819 = vst [vmem:[#allocation9] sm:$0xff] %v5757
    %5820 = vst [vmem:[#allocation9 + $0x8] sm:$0xff] %v5760
    %5821 = vst [vmem:[#allocation9 + $0x10] sm:$0xff] %v5765
    %5822 = vst [vmem:[#allocation9 + $0x18] sm:$0xff] %v5768
    %5823 = vst [vmem:[#allocation9 + $0x20] sm:$0xff] %v5773
    %5824 = vst [vmem:[#allocation9 + $0x28] sm:$0xff] %v5776
    %5825 = vst [vmem:[#allocation9 + $0x30] sm:$0xff] %v5781
    %5826 = vst [vmem:[#allocation9 + $0x38] sm:$0xff] %v5784
    %5827 = vst [vmem:[#allocation9 + $0x40] sm:$0xff] %v5789
    %5828 = vst [vmem:[#allocation9 + $0x48] sm:$0xff] %v5792
    %5829 = vst [vmem:[#allocation9 + $0x50] sm:$0xff] %v5797
    %5830 = vst [vmem:[#allocation9 + $0x58] sm:$0xff] %v5800
    %5831 = vst [vmem:[#allocation9 + $0x60] sm:$0xff] %v5805
    %5832 = vst [vmem:[#allocation9 + $0x68] sm:$0xff] %v5808
    %5833 = vst [vmem:[#allocation9 + $0x70] sm:$0xff] %v5813
    %5834 = vst [vmem:[#allocation9 + $0x78] sm:$0xff] %v5816
    // Predicated region
    $region34: #{tpu_custom_call.1} parent=1 // pred_check
      _
    $region35: #{tpu_custom_call.1} parent=1 // pred_check_branch
      %5836 = sbr.rel (0) target = $region37
    $region36: #{tpu_custom_call.1} parent=1 // pred_region
      %s5838 = ssub.s32 2048, 2048
      %5839 = vsyncadd [#allocation5], %s5838
      %s5840 = sshll.u32 [#allocation9], 4
      %s5841 = int_to_ptr.vmem [resolvable:$true] %s5840
      %5846 = dma.vmem_to_hbm [thread:$0]  %s5841, 2048, %s5, [#allocation5], 128, 128, 8
    $region37: #{tpu_custom_call.1} parent=1 // pred_fallthru
      _
    // Predicated region
    $region38: #{tpu_custom_call.1} parent=1 // pred_check
      _
    $region39: #{tpu_custom_call.1} parent=1 // pred_check_branch
      %5848 = sbr.rel (0) target = $region41
    $region40: #{tpu_custom_call.1} parent=1 // pred_region
      %5849 = dma.done [#allocation5], 2048
    $region41: #{tpu_custom_call.1} parent=1 // pred_fallthru
      _
    %5850 = vsyncpa [#allocation4], 1
    %5851 = vsyncpa [#allocation7], 1
    %5852 = vsyncpa [#allocation5], 1

</llo_original>
